<compile_context>
chip_gen: v6e
topology: v6e:2x2x1
jax: 0.10.0
libtpu: 0.0.40
codegen_flags: <defaults>
</compile_context>

<pallas_src>
import functools

import jax
import jax.numpy as jnp
import numpy as np
from jax.experimental import pallas as pl
from jax.experimental.pallas import tpu as pltpu


# ----------------------------------- kernel -----------------------------------

def _inverted_residual_kernel(
    x_ref,      # (NB, H, W*Cin)    lane-dense bf16 input slab (NB batch items per grid step)
    w1_ref,     # (W*Cin, W*Chid)   block-diag 1x1 expand weight, bf16 (BN1 scale folded in)
    b1_ref,     # (1, W*Chid)       folded BN1 bias (f32), tiled over W
    wdw_ref,    # (9, W*Chid)       depthwise taps (f32, BN2 scale folded in), tiled over W
    b2_ref,     # (1, W*Chid)       folded BN2 bias (f32)
    w3_ref,     # (W*Chid, W*Cout)  block-diag 1x1 project weight, bf16 (BN3 scale folded in)
    b3_ref,     # (1, W*Cout)       folded BN3 bias (f32)
    o_ref,      # (NB, H, W*Cout)   lane-dense f32 output slab
    *, W: int, Chid: int, use_res_connect: bool,
):
    NB, H, WC_in = x_ref.shape
    WC = W * Chid
    WC_out = o_ref.shape[2]

    x = x_ref[...]                                             # (NB, H, WC_in) bf16

    # ---- 1x1 expand (+ folded BN1) + ReLU6 : bf16 block-diag matmul, f32 accumulate ----
    # Flattening (NB, H) -> NB*H keeps the lane dim, so it's layout-free, and raises the MXU M
    # dimension (better pipeline fill when the batch is collapsed on single-TC chips).
    h = jnp.dot(x.reshape(NB * H, WC_in), w1_ref[...],
                preferred_element_type=jnp.float32)            # (NB*H, WC) f32
    h = jnp.clip(h + b1_ref[...], 0.0, 6.0)
    h3 = h.reshape(NB, H, WC)                                  # batch-separated for the dw conv

    # ---- depthwise 3x3, stride 1, pad 1 : in-register shifted taps (f32 on the VPU) ----
    # Outer loop = W shift (cross-lane concat, XLU) -> only 2 lane concats total;
    # inner loop = H shift (cheap sublane concat).  acc starts from the center tap.
    taps = wdw_ref[...]                                        # (9, WC), single hoisted load
    zrow = jnp.zeros((NB, 1, WC), jnp.float32)
    zlane = jnp.zeros((NB, H, Chid), jnp.float32)

    acc = h3 * taps[4]                                         # center tap (di=1, dj=1)
    for dj in range(3):                                        # W offset dj-1 in {-1, 0, 1}
        if dj == 0:        # out[..., j] += h[..., j-1] * k[., 0]
            vw = jnp.concatenate([zlane, h3[:, :, : WC - Chid]], axis=2)
        elif dj == 2:      # out[..., j] += h[..., j+1] * k[., 2]
            vw = jnp.concatenate([h3[:, :, Chid:], zlane], axis=2)
        else:
            vw = h3
        for di in range(3):                                    # H offset di-1 in {-1, 0, 1}
            if di == 1 and dj == 1:
                continue                                       # center already in acc
            if di == 0:
                v = jnp.concatenate([zrow, vw[:, : H - 1, :]], axis=1)
            elif di == 2:
                v = jnp.concatenate([vw[:, 1:, :], zrow], axis=1)
            else:
                v = vw
            acc = acc + v * taps[di * 3 + dj]
    h2 = jnp.clip(acc + b2_ref[...], 0.0, 6.0)                 # folded BN2 + ReLU6, (NB,H,WC)

    # ---- 1x1 project (+ folded BN3) : bf16 block-diag matmul, lane-dense result ----
    y = jnp.dot(h2.reshape(NB * H, WC).astype(jnp.bfloat16), w3_ref[...],
                preferred_element_type=jnp.float32)            # (NB*H, WC_out) f32
    y = (y + b3_ref[...]).reshape(NB, H, WC_out)

    if use_res_connect:
        # DropPath is identity at inference; Cin == Cout so layouts match exactly.
        y = y + x.astype(jnp.float32)

    o_ref[...] = y                                             # unmasked 128-lane stores


# ------------------------------ wrappers / prep ------------------------------

def _num_parallel_tensorcores():
    """2 on v7x (2 TensorCores per chip); 1 on v5e/v6e (single TC)."""
    try:
        kind = jax.devices()[0].device_kind.lower()
    except Exception:
        return 1
    if "v7" in kind or "7x" in kind:
        return 2
    return 1


def prepare_kernel_params(folded_params, W):
    """One-time (per-model) weight prep, hoisted off the per-forward path.

    Builds the kron(I_W, w) block-diagonal MXU weights (cast to bf16) and the W-tiled
    depthwise taps / biases (kept f32 for the VPU path).
    """
    w1f, b1, wdwf, b2, w3f, b3 = folded_params
    Cin, Chid = w1f.shape
    Cout = w3f.shape[1]
    eye_w = jnp.eye(W, dtype=jnp.float32)
    w1bd = jnp.kron(eye_w, w1f.astype(jnp.float32)).astype(jnp.bfloat16)   # (W*Cin,  W*Chid)
    w3bd = jnp.kron(eye_w, w3f.astype(jnp.float32)).astype(jnp.bfloat16)   # (W*Chid, W*Cout)
    taps = jnp.tile(wdwf.reshape(9, Chid).astype(jnp.float32), (1, W))     # (9, W*Chid)
    b1t = jnp.tile(b1.reshape(1, Chid).astype(jnp.float32), (1, W))        # (1, W*Chid)
    b2t = jnp.tile(b2.reshape(1, Chid).astype(jnp.float32), (1, W))
    b3t = jnp.tile(b3.reshape(1, Cout).astype(jnp.float32), (1, W))        # (1, W*Cout)
    prepared = (w1bd, b1t, taps, b2t, w3bd, b3t)
    return tuple(jax.block_until_ready(p) for p in prepared)   # materialize once


def inverted_residual_lane_dense(x_dense, prepared, *, W, use_res_connect=True):
    """Fused block on a lane-dense (N, H, W*Cin) activation slab -> (N, H, W*Cout) f32.

    Callers chaining MobileNet blocks should stay in this layout to avoid per-block
    NCHW <-> lane-dense HBM round trips.
    """
    w1bd, b1t, taps, b2t, w3bd, b3t = prepared
    N, H, WC_in = x_dense.shape
    WC_hid = w1bd.shape[1]
    WC_out = w3bd.shape[1]
    assert w1bd.shape[0] == WC_in
    # Lane-density requirement for unmasked 128-lane loads/stores.
    assert WC_in % 128 == 0 and WC_hid % 128 == 0 and WC_out % 128 == 0, \
        "W*Cin, W*Chid, W*Cout must all be multiples of 128"
    Cin = WC_in // W
    Chid = WC_hid // W
    Cout = WC_out // W
    if use_res_connect:
        assert Cin == Cout

    # Single-TC chips (v5e/v6e): collapse the batch into one grid step (NB=N).
    # 2-TC v7x: keep one parallel grid step per batch item so both cores are busy.
    num_tc = _num_parallel_tensorcores()
    G = num_tc if (N >= num_tc and N % num_tc == 0) else 1
    NB = N // G

    kernel = functools.partial(_inverted_residual_kernel, W=W, Chid=Chid,
                               use_res_connect=use_res_connect)
    x_bf16 = x_dense.astype(jnp.bfloat16)

    def _specs(single_buffer_weights):
        def wspec(shape):
            idx = lambda n: (0,) * len(shape)                  # grid-invariant weight block
            if single_buffer_weights:
                return pl.BlockSpec(shape, idx, pipeline_mode=pl.Buffered(1))
            return pl.BlockSpec(shape, idx)
        in_specs = [
            pl.BlockSpec((NB, H, WC_in), lambda n: (n, 0, 0)),
            wspec((WC_in, WC_hid)),
            wspec((1, WC_hid)),
            wspec((9, WC_hid)),
            wspec((1, WC_hid)),
            wspec((WC_hid, WC_out)),
            wspec((1, WC_out)),
        ]
        out_specs = pl.BlockSpec((NB, H, WC_out), lambda n: (n, 0, 0))
        return in_specs, out_specs

    def _run(single_buffer_weights):
        in_specs, out_specs = _specs(single_buffer_weights)
        return pl.pallas_call(
            kernel,
            out_shape=jax.ShapeDtypeStruct((N, H, WC_out), jnp.float32),
            grid_spec=pltpu.PrefetchScalarGridSpec(
                num_scalar_prefetch=0,
                grid=(G,),
                in_specs=in_specs,
                out_specs=out_specs,
            ),
            compiler_params=pltpu.CompilerParams(dimension_semantics=("parallel",)),
        )(x_bf16, w1bd, b1t, taps, b2t, w3bd, b3t)

    try:
        # Grid-invariant weights single-buffered (halves their VMEM footprint).
        return _run(True)
    except Exception:
        # This Pallas version rejected pl.Buffered(1); default double-buffering is still correct.
        return _run(False)


def inverted_residual_forward(x_nchw, prepared, *, stride=1, use_res_connect=True):
    """PyTorch-layout wrapper: (N, Cin, H, W) f32 -> (N, Cout, H, W) f32."""
    # TODO(synk): these NCHW<->lane-dense transposes are per-call HBM round trips; chained
    # blocks should call inverted_residual_lane_dense directly and stay lane-dense.
    assert stride == 1, "stride=2 depthwise path not implemented"
    x = jnp.transpose(x_nchw, (0, 2, 3, 1))                    # -> NHWC
    N, H, W, Cin = x.shape
    x_dense = x.reshape(N, H, W * Cin)
    out_dense = inverted_residual_lane_dense(x_dense, prepared, W=W,
                                             use_res_connect=use_res_connect)
    Cout = out_dense.shape[2] // W
    out = out_dense.reshape(N, H, W, Cout)
    return jnp.transpose(out, (0, 3, 1, 2))                    # -> NCHW


# ----------------------------- parameters & reference -----------------------------

def init_raw_params(key, inp, oup, expand_ratio):
    """Raw PyTorch-layout parameters: conv weights + BatchNorm (gamma, beta, mean, var)."""
    hidden = int(inp * expand_ratio)
    ks = jax.random.split(key, 15)

    w1 = jax.random.normal(ks[0], (hidden, inp, 1, 1), jnp.float32) / np.sqrt(inp)
    bn1 = (1.0 + 0.1 * jax.random.normal(ks[1], (hidden,)),
           0.1 * jax.random.normal(ks[2], (hidden,)),
           0.1 * jax.random.normal(ks[3], (hidden,)),
           jnp.abs(jax.random.normal(ks[4], (hidden,))) + 0.5)

    wdw = jax.random.normal(ks[5], (hidden, 1, 3, 3), jnp.float32) / 3.0
    bn2 = (1.0 + 0.1 * jax.random.normal(ks[6], (hidden,)),
           0.1 * jax.random.normal(ks[7], (hidden,)),
           0.1 * jax.random.normal(ks[8], (hidden,)),
           jnp.abs(jax.random.normal(ks[9], (hidden,))) + 0.5)

    w3 = jax.random.normal(ks[10], (oup, hidden, 1, 1), jnp.float32) / np.sqrt(hidden)
    bn3 = (1.0 + 0.1 * jax.random.normal(ks[11], (oup,)),
           0.1 * jax.random.normal(ks[12], (oup,)),
           0.1 * jax.random.normal(ks[13], (oup,)),
           jnp.abs(jax.random.normal(ks[14], (oup,))) + 0.5)

    return (w1, bn1, wdw, bn2, w3, bn3)


def fold_params(raw, eps=1e-5):
    """One-time transform: fold BN scales into conv weights; keep only biases."""
    w1, (g1, be1, m1, v1), wdw, (g2, be2, m2, v2), w3, (g3, be3, m3, v3) = raw
    s1 = g1 / jnp.sqrt(v1 + eps); b1 = be1 - m1 * s1
    s2 = g2 / jnp.sqrt(v2 + eps); b2 = be2 - m2 * s2
    s3 = g3 / jnp.sqrt(v3 + eps); b3 = be3 - m3 * s3
    w1f = (w1[:, :, 0, 0] * s1[:, None]).T                          # (Cin, Chid)
    wdwf = jnp.transpose(wdw[:, 0] * s2[:, None, None], (1, 2, 0))  # (3, 3, Chid)
    w3f = (w3[:, :, 0, 0] * s3[:, None]).T                          # (Chid, Cout)
    return (w1f, b1, wdwf, b2, w3f, b3)


def _bn(x, g, b, m, v, eps=1e-5):
    return (x - m) / jnp.sqrt(v + eps) * g + b


def reference_forward(x_nchw, raw, *, use_res_connect=True):
    """Pure-JAX (non-Pallas) eval-mode reference with raw PyTorch-style params (all f32)."""
    w1, bn1, wdw, bn2, w3, bn3 = raw
    x = jnp.transpose(x_nchw, (0, 2, 3, 1))
    N, H, W, _ = x.shape
    h = jnp.einsum('nhwc,oc->nhwo', x, w1[:, :, 0, 0])
    h = jnp.clip(_bn(h, *bn1), 0.0, 6.0)
    hp = jnp.pad(h, ((0, 0), (1, 1), (1, 1), (0, 0)))
    acc = jnp.zeros_like(h)
    for di in range(3):
        for dj in range(3):
            acc = acc + hp[:, di:di + H, dj:dj + W, :] * wdw[:, 0, di, dj][None, None, None, :]
    h2 = jnp.clip(_bn(acc, *bn2), 0.0, 6.0)
    y = jnp.einsum('nhwc,oc->nhwo', h2, w3[:, :, 0, 0])
    y = _bn(y, *bn3)
    if use_res_connect:
        y = x + y                                              # DropPath identity at eval
    return jnp.transpose(y, (0, 3, 1, 2))


if __name__ == "__main__":
    # Module config: InvertedResidual(inp=8, oup=8, stride=1, expand_ratio=4)
    inp, oup, stride, expand_ratio = 8, 8, 1, 4
    N, H, W = 2, 16, 16
    use_res_connect = (stride == 1 and inp == oup)

    key = jax.random.PRNGKey(0)
    kx, kp = jax.random.split(key)
    x = jax.random.normal(kx, (N, inp, H, W), jnp.float32)     # NCHW like PyTorch
    raw_params = init_raw_params(kp, inp, oup, expand_ratio)
    folded_params = fold_params(raw_params)
    prepared = prepare_kernel_params(folded_params, W)         # one-time: kron/tile/bf16 cast

    out = inverted_residual_forward(x, prepared, stride=stride,
                                    use_res_connect=use_res_connect)
    out = jax.block_until_ready(out)

    ref = reference_forward(x, raw_params, use_res_connect=use_res_connect)
    assert out.shape == (N, oup, H, W)
    # Kernel runs with bf16 activations/MXU weights vs. an all-f32 reference; ~1e-2 scale
    # discrepancies are expected (an all-f32 kernel path matches to ~1e-5).
    np.testing.assert_allclose(np.asarray(out), np.asarray(ref), rtol=5e-2, atol=5e-2)
    print("KERNEL_OK")
</pallas_src>

<mosaic_0001>
module attributes {stable_mosaic.version = 11 : i64} {
  func.func @_inverted_residual_kernel(%arg0: i32, %arg1: memref<2x16x128xbf16, #tpu.memory_space<vmem>>, %arg2: memref<128x512xbf16, #tpu.memory_space<vmem>>, %arg3: memref<1x512xf32, #tpu.memory_space<vmem>>, %arg4: memref<9x512xf32, #tpu.memory_space<vmem>>, %arg5: memref<1x512xf32, #tpu.memory_space<vmem>>, %arg6: memref<512x128xbf16, #tpu.memory_space<vmem>>, %arg7: memref<1x128xf32, #tpu.memory_space<vmem>>, %arg8: memref<2x16x128xf32, #tpu.memory_space<vmem>>) attributes {dimension_semantics = [#tpu.dimension_semantics<parallel>], iteration_bounds = array<i64: 1>, scalar_prefetch = 0 : i64, scratch_operands = 0 : i64, tpu.core_type = #tpu.core_type<tc>, window_params = [{transform_indices = @transform_0, window_bounds = array<i64: 2, 16, 128>}, {pipeline_mode = #tpu.pipeline_mode<synchronous>, transform_indices = @transform_1, window_bounds = array<i64: 128, 512>}, {pipeline_mode = #tpu.pipeline_mode<synchronous>, transform_indices = @transform_2, window_bounds = array<i64: 1, 512>}, {pipeline_mode = #tpu.pipeline_mode<synchronous>, transform_indices = @transform_3, window_bounds = array<i64: 9, 512>}, {pipeline_mode = #tpu.pipeline_mode<synchronous>, transform_indices = @transform_4, window_bounds = array<i64: 1, 512>}, {pipeline_mode = #tpu.pipeline_mode<synchronous>, transform_indices = @transform_5, window_bounds = array<i64: 512, 128>}, {pipeline_mode = #tpu.pipeline_mode<synchronous>, transform_indices = @transform_6, window_bounds = array<i64: 1, 128>}, {transform_indices = @transform_7, window_bounds = array<i64: 2, 16, 128>}]} {
    %c0 = arith.constant 0 : index
    %c0_0 = arith.constant 0 : index
    %c0_1 = arith.constant 0 : index
    %0 = vector.load %arg1[%c0, %c0_0, %c0_1] : memref<2x16x128xbf16, #tpu.memory_space<vmem>>, vector<2x16x128xbf16>
    %1 = vector.shape_cast %0 : vector<2x16x128xbf16> to vector<32x128xbf16>
    %c0_2 = arith.constant 0 : index
    %c0_3 = arith.constant 0 : index
    %2 = vector.load %arg2[%c0_2, %c0_3] : memref<128x512xbf16, #tpu.memory_space<vmem>>, vector<128x512xbf16>
    %cst = arith.constant dense<0.000000e+00> : vector<32x512xf32>
    %3 = tpu.matmul %1, %2, %cst {dimension_numbers = #tpu.dot_dimension_numbers<[1], [0], [0], [1], [0, 0, 1, 1], [], []>} : vector<32x128xbf16>, vector<128x512xbf16>, vector<32x512xf32> -> vector<32x512xf32>
    %c0_4 = arith.constant 0 : index
    %c0_5 = arith.constant 0 : index
    %4 = vector.load %arg3[%c0_4, %c0_5] : memref<1x512xf32, #tpu.memory_space<vmem>>, vector<1x512xf32>
    %5 = vector.broadcast %4 : vector<1x512xf32> to vector<32x512xf32>
    %6 = arith.addf %3, %5 : vector<32x512xf32>
    %cst_6 = arith.constant 0.000000e+00 : f32
    %cst_7 = arith.constant 6.000000e+00 : f32
    %7 = vector.broadcast %cst_6 : f32 to vector<32x512xf32>
    %8 = arith.maximumf %7, %6 : vector<32x512xf32>
    %9 = vector.broadcast %cst_7 : f32 to vector<32x512xf32>
    %10 = arith.minimumf %9, %8 : vector<32x512xf32>
    %11 = vector.shape_cast %10 : vector<32x512xf32> to vector<2x16x512xf32>
    %c0_8 = arith.constant 0 : index
    %c0_9 = arith.constant 0 : index
    %12 = vector.load %arg4[%c0_8, %c0_9] : memref<9x512xf32, #tpu.memory_space<vmem>>, vector<9x512xf32>
    %cst_10 = arith.constant 0.000000e+00 : f32
    %13 = vector.broadcast %cst_10 : f32 to vector<2x1x512xf32>
    %cst_11 = arith.constant 0.000000e+00 : f32
    %14 = vector.broadcast %cst_11 : f32 to vector<2x16x32xf32>
    %15 = vector.extract_strided_slice %12 {offsets = [4, 0], sizes = [1, 512], strides = [1, 1]} : vector<9x512xf32> to vector<1x512xf32>
    %16 = vector.shape_cast %15 : vector<1x512xf32> to vector<512xf32>
    %17 = vector.shape_cast %16 : vector<512xf32> to vector<1x1x512xf32>
    %18 = vector.broadcast %17 : vector<1x1x512xf32> to vector<2x16x512xf32>
    %19 = arith.mulf %11, %18 : vector<2x16x512xf32>
    %20 = vector.extract_strided_slice %11 {offsets = [0, 0, 0], sizes = [2, 16, 480], strides = [1, 1, 1]} : vector<2x16x512xf32> to vector<2x16x480xf32>
    %21 = tpu.concatenate %14, %20 in 2 : vector<2x16x32xf32>, vector<2x16x480xf32> -> vector<2x16x512xf32>
    %22 = vector.extract_strided_slice %21 {offsets = [0, 0, 0], sizes = [2, 15, 512], strides = [1, 1, 1]} : vector<2x16x512xf32> to vector<2x15x512xf32>
    %23 = tpu.concatenate %13, %22 in 1 : vector<2x1x512xf32>, vector<2x15x512xf32> -> vector<2x16x512xf32>
    %24 = vector.extract_strided_slice %12 {offsets = [0, 0], sizes = [1, 512], strides = [1, 1]} : vector<9x512xf32> to vector<1x512xf32>
    %25 = vector.shape_cast %24 : vector<1x512xf32> to vector<512xf32>
    %26 = vector.shape_cast %25 : vector<512xf32> to vector<1x1x512xf32>
    %27 = vector.broadcast %26 : vector<1x1x512xf32> to vector<2x16x512xf32>
    %28 = arith.mulf %23, %27 : vector<2x16x512xf32>
    %29 = arith.addf %19, %28 : vector<2x16x512xf32>
    %30 = vector.extract_strided_slice %12 {offsets = [3, 0], sizes = [1, 512], strides = [1, 1]} : vector<9x512xf32> to vector<1x512xf32>
    %31 = vector.shape_cast %30 : vector<1x512xf32> to vector<512xf32>
    %32 = vector.shape_cast %31 : vector<512xf32> to vector<1x1x512xf32>
    %33 = vector.broadcast %32 : vector<1x1x512xf32> to vector<2x16x512xf32>
    %34 = arith.mulf %21, %33 : vector<2x16x512xf32>
    %35 = arith.addf %29, %34 : vector<2x16x512xf32>
    %36 = vector.extract_strided_slice %21 {offsets = [0, 1, 0], sizes = [2, 15, 512], strides = [1, 1, 1]} : vector<2x16x512xf32> to vector<2x15x512xf32>
    %37 = tpu.concatenate %36, %13 in 1 : vector<2x15x512xf32>, vector<2x1x512xf32> -> vector<2x16x512xf32>
    %38 = vector.extract_strided_slice %12 {offsets = [6, 0], sizes = [1, 512], strides = [1, 1]} : vector<9x512xf32> to vector<1x512xf32>
    %39 = vector.shape_cast %38 : vector<1x512xf32> to vector<512xf32>
    %40 = vector.shape_cast %39 : vector<512xf32> to vector<1x1x512xf32>
    %41 = vector.broadcast %40 : vector<1x1x512xf32> to vector<2x16x512xf32>
    %42 = arith.mulf %37, %41 : vector<2x16x512xf32>
    %43 = arith.addf %35, %42 : vector<2x16x512xf32>
    %44 = vector.extract_strided_slice %11 {offsets = [0, 0, 0], sizes = [2, 15, 512], strides = [1, 1, 1]} : vector<2x16x512xf32> to vector<2x15x512xf32>
    %45 = tpu.concatenate %13, %44 in 1 : vector<2x1x512xf32>, vector<2x15x512xf32> -> vector<2x16x512xf32>
    %46 = vector.extract_strided_slice %12 {offsets = [1, 0], sizes = [1, 512], strides = [1, 1]} : vector<9x512xf32> to vector<1x512xf32>
    %47 = vector.shape_cast %46 : vector<1x512xf32> to vector<512xf32>
    %48 = vector.shape_cast %47 : vector<512xf32> to vector<1x1x512xf32>
    %49 = vector.broadcast %48 : vector<1x1x512xf32> to vector<2x16x512xf32>
    %50 = arith.mulf %45, %49 : vector<2x16x512xf32>
    %51 = arith.addf %43, %50 : vector<2x16x512xf32>
    %52 = vector.extract_strided_slice %11 {offsets = [0, 1, 0], sizes = [2, 15, 512], strides = [1, 1, 1]} : vector<2x16x512xf32> to vector<2x15x512xf32>
    %53 = tpu.concatenate %52, %13 in 1 : vector<2x15x512xf32>, vector<2x1x512xf32> -> vector<2x16x512xf32>
    %54 = vector.extract_strided_slice %12 {offsets = [7, 0], sizes = [1, 512], strides = [1, 1]} : vector<9x512xf32> to vector<1x512xf32>
    %55 = vector.shape_cast %54 : vector<1x512xf32> to vector<512xf32>
    %56 = vector.shape_cast %55 : vector<512xf32> to vector<1x1x512xf32>
    %57 = vector.broadcast %56 : vector<1x1x512xf32> to vector<2x16x512xf32>
    %58 = arith.mulf %53, %57 : vector<2x16x512xf32>
    %59 = arith.addf %51, %58 : vector<2x16x512xf32>
    %60 = vector.extract_strided_slice %11 {offsets = [0, 0, 32], sizes = [2, 16, 480], strides = [1, 1, 1]} : vector<2x16x512xf32> to vector<2x16x480xf32>
    %61 = tpu.concatenate %60, %14 in 2 : vector<2x16x480xf32>, vector<2x16x32xf32> -> vector<2x16x512xf32>
    %62 = vector.extract_strided_slice %61 {offsets = [0, 0, 0], sizes = [2, 15, 512], strides = [1, 1, 1]} : vector<2x16x512xf32> to vector<2x15x512xf32>
    %63 = tpu.concatenate %13, %62 in 1 : vector<2x1x512xf32>, vector<2x15x512xf32> -> vector<2x16x512xf32>
    %64 = vector.extract_strided_slice %12 {offsets = [2, 0], sizes = [1, 512], strides = [1, 1]} : vector<9x512xf32> to vector<1x512xf32>
    %65 = vector.shape_cast %64 : vector<1x512xf32> to vector<512xf32>
    %66 = vector.shape_cast %65 : vector<512xf32> to vector<1x1x512xf32>
    %67 = vector.broadcast %66 : vector<1x1x512xf32> to vector<2x16x512xf32>
    %68 = arith.mulf %63, %67 : vector<2x16x512xf32>
    %69 = arith.addf %59, %68 : vector<2x16x512xf32>
    %70 = vector.extract_strided_slice %12 {offsets = [5, 0], sizes = [1, 512], strides = [1, 1]} : vector<9x512xf32> to vector<1x512xf32>
    %71 = vector.shape_cast %70 : vector<1x512xf32> to vector<512xf32>
    %72 = vector.shape_cast %71 : vector<512xf32> to vector<1x1x512xf32>
    %73 = vector.broadcast %72 : vector<1x1x512xf32> to vector<2x16x512xf32>
    %74 = arith.mulf %61, %73 : vector<2x16x512xf32>
    %75 = arith.addf %69, %74 : vector<2x16x512xf32>
    %76 = vector.extract_strided_slice %61 {offsets = [0, 1, 0], sizes = [2, 15, 512], strides = [1, 1, 1]} : vector<2x16x512xf32> to vector<2x15x512xf32>
    %77 = tpu.concatenate %76, %13 in 1 : vector<2x15x512xf32>, vector<2x1x512xf32> -> vector<2x16x512xf32>
    %78 = vector.extract_strided_slice %12 {offsets = [8, 0], sizes = [1, 512], strides = [1, 1]} : vector<9x512xf32> to vector<1x512xf32>
    %79 = vector.shape_cast %78 : vector<1x512xf32> to vector<512xf32>
    %80 = vector.shape_cast %79 : vector<512xf32> to vector<1x1x512xf32>
    %81 = vector.broadcast %80 : vector<1x1x512xf32> to vector<2x16x512xf32>
    %82 = arith.mulf %77, %81 : vector<2x16x512xf32>
    %83 = arith.addf %75, %82 : vector<2x16x512xf32>
    %c0_12 = arith.constant 0 : index
    %c0_13 = arith.constant 0 : index
    %84 = vector.load %arg5[%c0_12, %c0_13] : memref<1x512xf32, #tpu.memory_space<vmem>>, vector<1x512xf32>
    %85 = vector.shape_cast %84 : vector<1x512xf32> to vector<1x1x512xf32>
    %86 = vector.broadcast %85 : vector<1x1x512xf32> to vector<2x16x512xf32>
    %87 = arith.addf %83, %86 : vector<2x16x512xf32>
    %cst_14 = arith.constant 0.000000e+00 : f32
    %cst_15 = arith.constant 6.000000e+00 : f32
    %88 = vector.broadcast %cst_14 : f32 to vector<2x16x512xf32>
    %89 = arith.maximumf %88, %87 : vector<2x16x512xf32>
    %90 = vector.broadcast %cst_15 : f32 to vector<2x16x512xf32>
    %91 = arith.minimumf %90, %89 : vector<2x16x512xf32>
    %92 = vector.shape_cast %91 : vector<2x16x512xf32> to vector<32x512xf32>
    %93 = arith.truncf %92 : vector<32x512xf32> to vector<32x512xbf16>
    %c0_16 = arith.constant 0 : index
    %c0_17 = arith.constant 0 : index
    %94 = vector.load %arg6[%c0_16, %c0_17] : memref<512x128xbf16, #tpu.memory_space<vmem>>, vector<512x128xbf16>
    %cst_18 = arith.constant dense<0.000000e+00> : vector<32x128xf32>
    %95 = tpu.matmul %93, %94, %cst_18 {dimension_numbers = #tpu.dot_dimension_numbers<[1], [0], [0], [1], [0, 0, 1, 1], [], []>} : vector<32x512xbf16>, vector<512x128xbf16>, vector<32x128xf32> -> vector<32x128xf32>
    %c0_19 = arith.constant 0 : index
    %c0_20 = arith.constant 0 : index
    %96 = vector.load %arg7[%c0_19, %c0_20] : memref<1x128xf32, #tpu.memory_space<vmem>>, vector<1x128xf32>
    %97 = vector.broadcast %96 : vector<1x128xf32> to vector<32x128xf32>
    %98 = arith.addf %95, %97 : vector<32x128xf32>
    %99 = vector.shape_cast %98 : vector<32x128xf32> to vector<2x16x128xf32>
    %100 = arith.extf %0 : vector<2x16x128xbf16> to vector<2x16x128xf32>
    %101 = arith.addf %99, %100 : vector<2x16x128xf32>
    %c0_21 = arith.constant 0 : index
    %c0_22 = arith.constant 0 : index
    %c0_23 = arith.constant 0 : index
    %102 = vector.load %arg8[%c0_21, %c0_22, %c0_23] : memref<2x16x128xf32, #tpu.memory_space<vmem>>, vector<2x16x128xf32>
    tpu.vector_store %arg8[%c0_21, %c0_22, %c0_23], %101 {strides = array<i32>} : memref<2x16x128xf32, #tpu.memory_space<vmem>>, vector<2x16x128xf32>,
    return
  }
  func.func @transform_0(%arg0: i32) -> (i32, i32, i32) {
    %c0_i32 = arith.constant 0 : i32
    %c0_i32_0 = arith.constant 0 : i32
    %c0_i32_1 = arith.constant 0 : i32
    return %arg0, %c0_i32, %c0_i32_0 : i32, i32, i32
  }
  func.func @transform_1(%arg0: i32) -> (i32, i32) {
    %c0_i32 = arith.constant 0 : i32
    %c0_i32_0 = arith.constant 0 : i32
    %c0_i32_1 = arith.constant 0 : i32
    return %c0_i32, %c0_i32_0 : i32, i32
  }
  func.func @transform_2(%arg0: i32) -> (i32, i32) {
    %c0_i32 = arith.constant 0 : i32
    %c0_i32_0 = arith.constant 0 : i32
    %c0_i32_1 = arith.constant 0 : i32
    return %c0_i32, %c0_i32_0 : i32, i32
  }
  func.func @transform_3(%arg0: i32) -> (i32, i32) {
    %c0_i32 = arith.constant 0 : i32
    %c0_i32_0 = arith.constant 0 : i32
    %c0_i32_1 = arith.constant 0 : i32
    return %c0_i32, %c0_i32_0 : i32, i32
  }
  func.func @transform_4(%arg0: i32) -> (i32, i32) {
    %c0_i32 = arith.constant 0 : i32
    %c0_i32_0 = arith.constant 0 : i32
    %c0_i32_1 = arith.constant 0 : i32
    return %c0_i32, %c0_i32_0 : i32, i32
  }
  func.func @transform_5(%arg0: i32) -> (i32, i32) {
    %c0_i32 = arith.constant 0 : i32
    %c0_i32_0 = arith.constant 0 : i32
    %c0_i32_1 = arith.constant 0 : i32
    return %c0_i32, %c0_i32_0 : i32, i32
  }
  func.func @transform_6(%arg0: i32) -> (i32, i32) {
    %c0_i32 = arith.constant 0 : i32
    %c0_i32_0 = arith.constant 0 : i32
    %c0_i32_1 = arith.constant 0 : i32
    return %c0_i32, %c0_i32_0 : i32, i32
  }
  func.func @transform_7(%arg0: i32) -> (i32, i32, i32) {
    %c0_i32 = arith.constant 0 : i32
    %c0_i32_0 = arith.constant 0 : i32
    %c0_i32_1 = arith.constant 0 : i32
    return %arg0, %c0_i32, %c0_i32_0 : i32, i32, i32
  }
}

module attributes {stable_mosaic.version = 11 : i64} {
  func.func @_inverted_residual_kernel(%arg0: i32, %arg1: memref<2x16x128xbf16, #tpu.memory_space<vmem>>, %arg2: memref<128x512xbf16, #tpu.memory_space<vmem>>, %arg3: memref<1x512xf32, #tpu.memory_space<vmem>>, %arg4: memref<9x512xf32, #tpu.memory_space<vmem>>, %arg5: memref<1x512xf32, #tpu.memory_space<vmem>>, %arg6: memref<512x128xbf16, #tpu.memory_space<vmem>>, %arg7: memref<1x128xf32, #tpu.memory_space<vmem>>, %arg8: memref<2x16x128xf32, #tpu.memory_space<vmem>>) attributes {dimension_semantics = [#tpu.dimension_semantics<parallel>], iteration_bounds = array<i64: 1>, scalar_prefetch = 0 : i64, scratch_operands = 0 : i64, tpu.core_type = #tpu.core_type<tc>, window_params = [{transform_indices = @transform_0, window_bounds = array<i64: 2, 16, 128>}, {pipeline_mode = #tpu.pipeline_mode<synchronous>, transform_indices = @transform_1, window_bounds = array<i64: 128, 512>}, {pipeline_mode = #tpu.pipeline_mode<synchronous>, transform_indices = @transform_2, window_bounds = array<i64: 1, 512>}, {pipeline_mode = #tpu.pipeline_mode<synchronous>, transform_indices = @transform_3, window_bounds = array<i64: 9, 512>}, {pipeline_mode = #tpu.pipeline_mode<synchronous>, transform_indices = @transform_4, window_bounds = array<i64: 1, 512>}, {pipeline_mode = #tpu.pipeline_mode<synchronous>, transform_indices = @transform_5, window_bounds = array<i64: 512, 128>}, {pipeline_mode = #tpu.pipeline_mode<synchronous>, transform_indices = @transform_6, window_bounds = array<i64: 1, 128>}, {transform_indices = @transform_7, window_bounds = array<i64: 2, 16, 128>}]} {
    %c0 = arith.constant 0 : index
    %c0_0 = arith.constant 0 : index
    %c0_1 = arith.constant 0 : index
    %0 = vector.load %arg1[%c0, %c0_0, %c0_1] : memref<2x16x128xbf16, #tpu.memory_space<vmem>>, vector<2x16x128xbf16>
    %1 = vector.shape_cast %0 : vector<2x16x128xbf16> to vector<32x128xbf16>
    %c0_2 = arith.constant 0 : index
    %c0_3 = arith.constant 0 : index
    %2 = vector.load %arg2[%c0_2, %c0_3] : memref<128x512xbf16, #tpu.memory_space<vmem>>, vector<128x512xbf16>
    %cst = arith.constant dense<0.000000e+00> : vector<32x512xf32>
    %3 = tpu.matmul %1, %2, %cst {dimension_numbers = #tpu.dot_dimension_numbers<[1], [0], [0], [1], [0, 0, 1, 1], [], []>} : vector<32x128xbf16>, vector<128x512xbf16>, vector<32x512xf32> -> vector<32x512xf32>
    %c0_4 = arith.constant 0 : index
    %c0_5 = arith.constant 0 : index
    %4 = vector.load %arg3[%c0_4, %c0_5] : memref<1x512xf32, #tpu.memory_space<vmem>>, vector<1x512xf32>
    %5 = vector.broadcast %4 : vector<1x512xf32> to vector<32x512xf32>
    %6 = arith.addf %3, %5 : vector<32x512xf32>
    %cst_6 = arith.constant 0.000000e+00 : f32
    %cst_7 = arith.constant 6.000000e+00 : f32
    %7 = vector.broadcast %cst_6 : f32 to vector<32x512xf32>
    %8 = arith.maximumf %7, %6 : vector<32x512xf32>
    %9 = vector.broadcast %cst_7 : f32 to vector<32x512xf32>
    %10 = arith.minimumf %9, %8 : vector<32x512xf32>
    %11 = vector.shape_cast %10 : vector<32x512xf32> to vector<2x16x512xf32>
    %c0_8 = arith.constant 0 : index
    %c0_9 = arith.constant 0 : index
    %12 = vector.load %arg4[%c0_8, %c0_9] : memref<9x512xf32, #tpu.memory_space<vmem>>, vector<9x512xf32>
    %cst_10 = arith.constant 0.000000e+00 : f32
    %13 = vector.broadcast %cst_10 : f32 to vector<2x1x512xf32>
    %cst_11 = arith.constant 0.000000e+00 : f32
    %14 = vector.broadcast %cst_11 : f32 to vector<2x16x32xf32>
    %15 = vector.extract_strided_slice %12 {offsets = [4, 0], sizes = [1, 512], strides = [1, 1]} : vector<9x512xf32> to vector<1x512xf32>
    %16 = vector.shape_cast %15 : vector<1x512xf32> to vector<512xf32>
    %17 = vector.shape_cast %16 : vector<512xf32> to vector<1x1x512xf32>
    %18 = vector.broadcast %17 : vector<1x1x512xf32> to vector<2x16x512xf32>
    %19 = arith.mulf %11, %18 : vector<2x16x512xf32>
    %20 = vector.extract_strided_slice %11 {offsets = [0, 0, 0], sizes = [2, 16, 480], strides = [1, 1, 1]} : vector<2x16x512xf32> to vector<2x16x480xf32>
    %21 = tpu.concatenate %14, %20 in 2 : vector<2x16x32xf32>, vector<2x16x480xf32> -> vector<2x16x512xf32>
    %22 = vector.extract_strided_slice %21 {offsets = [0, 0, 0], sizes = [2, 15, 512], strides = [1, 1, 1]} : vector<2x16x512xf32> to vector<2x15x512xf32>
    %23 = tpu.concatenate %13, %22 in 1 : vector<2x1x512xf32>, vector<2x15x512xf32> -> vector<2x16x512xf32>
    %24 = vector.extract_strided_slice %12 {offsets = [0, 0], sizes = [1, 512], strides = [1, 1]} : vector<9x512xf32> to vector<1x512xf32>
    %25 = vector.shape_cast %24 : vector<1x512xf32> to vector<512xf32>
    %26 = vector.shape_cast %25 : vector<512xf32> to vector<1x1x512xf32>
    %27 = vector.broadcast %26 : vector<1x1x512xf32> to vector<2x16x512xf32>
    %28 = arith.mulf %23, %27 : vector<2x16x512xf32>
    %29 = arith.addf %19, %28 : vector<2x16x512xf32>
    %30 = vector.extract_strided_slice %12 {offsets = [3, 0], sizes = [1, 512], strides = [1, 1]} : vector<9x512xf32> to vector<1x512xf32>
    %31 = vector.shape_cast %30 : vector<1x512xf32> to vector<512xf32>
    %32 = vector.shape_cast %31 : vector<512xf32> to vector<1x1x512xf32>
    %33 = vector.broadcast %32 : vector<1x1x512xf32> to vector<2x16x512xf32>
    %34 = arith.mulf %21, %33 : vector<2x16x512xf32>
    %35 = arith.addf %29, %34 : vector<2x16x512xf32>
    %36 = vector.extract_strided_slice %21 {offsets = [0, 1, 0], sizes = [2, 15, 512], strides = [1, 1, 1]} : vector<2x16x512xf32> to vector<2x15x512xf32>
    %37 = tpu.concatenate %36, %13 in 1 : vector<2x15x512xf32>, vector<2x1x512xf32> -> vector<2x16x512xf32>
    %38 = vector.extract_strided_slice %12 {offsets = [6, 0], sizes = [1, 512], strides = [1, 1]} : vector<9x512xf32> to vector<1x512xf32>
    %39 = vector.shape_cast %38 : vector<1x512xf32> to vector<512xf32>
    %40 = vector.shape_cast %39 : vector<512xf32> to vector<1x1x512xf32>
    %41 = vector.broadcast %40 : vector<1x1x512xf32> to vector<2x16x512xf32>
    %42 = arith.mulf %37, %41 : vector<2x16x512xf32>
    %43 = arith.addf %35, %42 : vector<2x16x512xf32>
    %44 = vector.extract_strided_slice %11 {offsets = [0, 0, 0], sizes = [2, 15, 512], strides = [1, 1, 1]} : vector<2x16x512xf32> to vector<2x15x512xf32>
    %45 = tpu.concatenate %13, %44 in 1 : vector<2x1x512xf32>, vector<2x15x512xf32> -> vector<2x16x512xf32>
    %46 = vector.extract_strided_slice %12 {offsets = [1, 0], sizes = [1, 512], strides = [1, 1]} : vector<9x512xf32> to vector<1x512xf32>
    %47 = vector.shape_cast %46 : vector<1x512xf32> to vector<512xf32>
    %48 = vector.shape_cast %47 : vector<512xf32> to vector<1x1x512xf32>
    %49 = vector.broadcast %48 : vector<1x1x512xf32> to vector<2x16x512xf32>
    %50 = arith.mulf %45, %49 : vector<2x16x512xf32>
    %51 = arith.addf %43, %50 : vector<2x16x512xf32>
    %52 = vector.extract_strided_slice %11 {offsets = [0, 1, 0], sizes = [2, 15, 512], strides = [1, 1, 1]} : vector<2x16x512xf32> to vector<2x15x512xf32>
    %53 = tpu.concatenate %52, %13 in 1 : vector<2x15x512xf32>, vector<2x1x512xf32> -> vector<2x16x512xf32>
    %54 = vector.extract_strided_slice %12 {offsets = [7, 0], sizes = [1, 512], strides = [1, 1]} : vector<9x512xf32> to vector<1x512xf32>
    %55 = vector.shape_cast %54 : vector<1x512xf32> to vector<512xf32>
    %56 = vector.shape_cast %55 : vector<512xf32> to vector<1x1x512xf32>
    %57 = vector.broadcast %56 : vector<1x1x512xf32> to vector<2x16x512xf32>
    %58 = arith.mulf %53, %57 : vector<2x16x512xf32>
    %59 = arith.addf %51, %58 : vector<2x16x512xf32>
    %60 = vector.extract_strided_slice %11 {offsets = [0, 0, 32], sizes = [2, 16, 480], strides = [1, 1, 1]} : vector<2x16x512xf32> to vector<2x16x480xf32>
    %61 = tpu.concatenate %60, %14 in 2 : vector<2x16x480xf32>, vector<2x16x32xf32> -> vector<2x16x512xf32>
    %62 = vector.extract_strided_slice %61 {offsets = [0, 0, 0], sizes = [2, 15, 512], strides = [1, 1, 1]} : vector<2x16x512xf32> to vector<2x15x512xf32>
    %63 = tpu.concatenate %13, %62 in 1 : vector<2x1x512xf32>, vector<2x15x512xf32> -> vector<2x16x512xf32>
    %64 = vector.extract_strided_slice %12 {offsets = [2, 0], sizes = [1, 512], strides = [1, 1]} : vector<9x512xf32> to vector<1x512xf32>
    %65 = vector.shape_cast %64 : vector<1x512xf32> to vector<512xf32>
    %66 = vector.shape_cast %65 : vector<512xf32> to vector<1x1x512xf32>
    %67 = vector.broadcast %66 : vector<1x1x512xf32> to vector<2x16x512xf32>
    %68 = arith.mulf %63, %67 : vector<2x16x512xf32>
    %69 = arith.addf %59, %68 : vector<2x16x512xf32>
    %70 = vector.extract_strided_slice %12 {offsets = [5, 0], sizes = [1, 512], strides = [1, 1]} : vector<9x512xf32> to vector<1x512xf32>
    %71 = vector.shape_cast %70 : vector<1x512xf32> to vector<512xf32>
    %72 = vector.shape_cast %71 : vector<512xf32> to vector<1x1x512xf32>
    %73 = vector.broadcast %72 : vector<1x1x512xf32> to vector<2x16x512xf32>
    %74 = arith.mulf %61, %73 : vector<2x16x512xf32>
    %75 = arith.addf %69, %74 : vector<2x16x512xf32>
    %76 = vector.extract_strided_slice %61 {offsets = [0, 1, 0], sizes = [2, 15, 512], strides = [1, 1, 1]} : vector<2x16x512xf32> to vector<2x15x512xf32>
    %77 = tpu.concatenate %76, %13 in 1 : vector<2x15x512xf32>, vector<2x1x512xf32> -> vector<2x16x512xf32>
    %78 = vector.extract_strided_slice %12 {offsets = [8, 0], sizes = [1, 512], strides = [1, 1]} : vector<9x512xf32> to vector<1x512xf32>
    %79 = vector.shape_cast %78 : vector<1x512xf32> to vector<512xf32>
    %80 = vector.shape_cast %79 : vector<512xf32> to vector<1x1x512xf32>
    %81 = vector.broadcast %80 : vector<1x1x512xf32> to vector<2x16x512xf32>
    %82 = arith.mulf %77, %81 : vector<2x16x512xf32>
    %83 = arith.addf %75, %82 : vector<2x16x512xf32>
    %c0_12 = arith.constant 0 : index
    %c0_13 = arith.constant 0 : index
    %84 = vector.load %arg5[%c0_12, %c0_13] : memref<1x512xf32, #tpu.memory_space<vmem>>, vector<1x512xf32>
    %85 = vector.shape_cast %84 : vector<1x512xf32> to vector<1x1x512xf32>
    %86 = vector.broadcast %85 : vector<1x1x512xf32> to vector<2x16x512xf32>
    %87 = arith.addf %83, %86 : vector<2x16x512xf32>
    %cst_14 = arith.constant 0.000000e+00 : f32
    %cst_15 = arith.constant 6.000000e+00 : f32
    %88 = vector.broadcast %cst_14 : f32 to vector<2x16x512xf32>
    %89 = arith.maximumf %88, %87 : vector<2x16x512xf32>
    %90 = vector.broadcast %cst_15 : f32 to vector<2x16x512xf32>
    %91 = arith.minimumf %90, %89 : vector<2x16x512xf32>
    %92 = vector.shape_cast %91 : vector<2x16x512xf32> to vector<32x512xf32>
    %93 = arith.truncf %92 : vector<32x512xf32> to vector<32x512xbf16>
    %c0_16 = arith.constant 0 : index
    %c0_17 = arith.constant 0 : index
    %94 = vector.load %arg6[%c0_16, %c0_17] : memref<512x128xbf16, #tpu.memory_space<vmem>>, vector<512x128xbf16>
    %cst_18 = arith.constant dense<0.000000e+00> : vector<32x128xf32>
    %95 = tpu.matmul %93, %94, %cst_18 {dimension_numbers = #tpu.dot_dimension_numbers<[1], [0], [0], [1], [0, 0, 1, 1], [], []>} : vector<32x512xbf16>, vector<512x128xbf16>, vector<32x128xf32> -> vector<32x128xf32>
    %c0_19 = arith.constant 0 : index
    %c0_20 = arith.constant 0 : index
    %96 = vector.load %arg7[%c0_19, %c0_20] : memref<1x128xf32, #tpu.memory_space<vmem>>, vector<1x128xf32>
    %97 = vector.broadcast %96 : vector<1x128xf32> to vector<32x128xf32>
    %98 = arith.addf %95, %97 : vector<32x128xf32>
    %99 = vector.shape_cast %98 : vector<32x128xf32> to vector<2x16x128xf32>
    %100 = arith.extf %0 : vector<2x16x128xbf16> to vector<2x16x128xf32>
    %101 = arith.addf %99, %100 : vector<2x16x128xf32>
    %c0_21 = arith.constant 0 : index
    %c0_22 = arith.constant 0 : index
    %c0_23 = arith.constant 0 : index
    %102 = vector.load %arg8[%c0_21, %c0_22, %c0_23] : memref<2x16x128xf32, #tpu.memory_space<vmem>>, vector<2x16x128xf32>
    tpu.vector_store %arg8[%c0_21, %c0_22, %c0_23], %101 {strides = array<i32>} : memref<2x16x128xf32, #tpu.memory_space<vmem>>, vector<2x16x128xf32>,
    return
  }
  func.func @transform_0(%arg0: i32) -> (i32, i32, i32) {
    %c0_i32 = arith.constant 0 : i32
    %c0_i32_0 = arith.constant 0 : i32
    %c0_i32_1 = arith.constant 0 : i32
    return %arg0, %c0_i32, %c0_i32_0 : i32, i32, i32
  }
  func.func @transform_1(%arg0: i32) -> (i32, i32) {
    %c0_i32 = arith.constant 0 : i32
    %c0_i32_0 = arith.constant 0 : i32
    %c0_i32_1 = arith.constant 0 : i32
    return %c0_i32, %c0_i32_0 : i32, i32
  }
  func.func @transform_2(%arg0: i32) -> (i32, i32) {
    %c0_i32 = arith.constant 0 : i32
    %c0_i32_0 = arith.constant 0 : i32
    %c0_i32_1 = arith.constant 0 : i32
    return %c0_i32, %c0_i32_0 : i32, i32
  }
  func.func @transform_3(%arg0: i32) -> (i32, i32) {
    %c0_i32 = arith.constant 0 : i32
    %c0_i32_0 = arith.constant 0 : i32
    %c0_i32_1 = arith.constant 0 : i32
    return %c0_i32, %c0_i32_0 : i32, i32
  }
  func.func @transform_4(%arg0: i32) -> (i32, i32) {
    %c0_i32 = arith.constant 0 : i32
    %c0_i32_0 = arith.constant 0 : i32
    %c0_i32_1 = arith.constant 0 : i32
    return %c0_i32, %c0_i32_0 : i32, i32
  }
  func.func @transform_5(%arg0: i32) -> (i32, i32) {
    %c0_i32 = arith.constant 0 : i32
    %c0_i32_0 = arith.constant 0 : i32
    %c0_i32_1 = arith.constant 0 : i32
    return %c0_i32, %c0_i32_0 : i32, i32
  }
  func.func @transform_6(%arg0: i32) -> (i32, i32) {
    %c0_i32 = arith.constant 0 : i32
    %c0_i32_0 = arith.constant 0 : i32
    %c0_i32_1 = arith.constant 0 : i32
    return %c0_i32, %c0_i32_0 : i32, i32
  }
  func.func @transform_7(%arg0: i32) -> (i32, i32, i32) {
    %c0_i32 = arith.constant 0 : i32
    %c0_i32_0 = arith.constant 0 : i32
    %c0_i32_1 = arith.constant 0 : i32
    return %arg0, %c0_i32, %c0_i32_0 : i32, i32, i32
  }
}

</mosaic_0001>

<llo_original>
// kernel: tpu_custom_call.1
$region0: #{tpu_custom_call.1}
  #allocation0 [shape = 'u32[]', space=smem, size = 0x4, offset = 0x4, fixed_abs, tag = 'smem constant byte address 0x4 - core index']
  #allocation1 [shape = 'u32[144,128]{1,0:T(1,128)}', space=vmem, size = 0x12000, scoped, tag = 'internal scratch']
  %s0 = inlined_call_operand.hbm [shape: bf16[2,16,128], index: 0, kind: input, shape index: {}]
  %s1 = inlined_call_operand.hbm [shape: bf16[128,512], index: 1, kind: input, shape index: {}]
  %s2 = inlined_call_operand.hbm [shape: f32[1,512], index: 2, kind: input, shape index: {}]
  %s3 = inlined_call_operand.hbm [shape: f32[9,512], index: 3, kind: input, shape index: {}]
  %s4 = inlined_call_operand.vmem [shape: f32[1,512], index: 4, kind: input, shape index: {}]
  %s5 = inlined_call_operand.hbm [shape: bf16[512,128], index: 5, kind: input, shape index: {}]
  %s6 = inlined_call_operand.vmem [shape: f32[1,128], index: 6, kind: input, shape index: {}]
  %s7 = inlined_call_operand.hbm [shape: f32[2,16,128], index: 7, kind: output, shape index: {}]
  %s8 = sld [smem:[#allocation0]]
  $region58: #{tpu_custom_call.1} parent=0
    _
  %s10 = ssub.s32 1, %s8
  %s11 = scalar_select 0, %s10, %s8
  $region1: #{tpu_custom_call.1} parent=0
    #allocation2 [shape = 'u8[8192]{0}', space=vmem, size = 0x2000, scoped, tag = 'input window, operand 0, single buffered']
    #allocation3 [shape = 's32[1]{0}', space=sflag, size = 0x4, scoped, tag = 'scoped memory for tpu_custom_call.1']
    #allocation4 [shape = 's32[1]{0}', space=sflag, size = 0x4, scoped, tag = 'scoped memory for tpu_custom_call.1']
    #allocation5 [shape = 'u8[131072]{0}', space=vmem, size = 0x20000, scoped, tag = 'input window, operand 1, single buffered']
    #allocation6 [shape = 's32[1]{0}', space=sflag, size = 0x4, scoped, tag = 'scoped memory for tpu_custom_call.1']
    #allocation7 [shape = 'u8[2048]{0}', space=vmem, size = 0x800, scoped, tag = 'input window, operand 2, single buffered']
    #allocation8 [shape = 'u8[32768]{0}', space=vmem, size = 0x8000, scoped, tag = 'input window, operand 3, single buffered']
    #allocation9 [shape = 's32[1]{0}', space=sflag, size = 0x4, scoped, tag = 'scoped memory for tpu_custom_call.1']
    #allocation10 [shape = 'u8[131072]{0}', space=vmem, size = 0x20000, scoped, tag = 'input window, operand 5, single buffered']
    #allocation11 [shape = 'u8[16384]{0}', space=vmem, size = 0x4000, scoped, tag = 'output window, operand 0, single buffered']
    %12 = vsyncpa [#allocation3], 0
    %13 = vsyncpa [#allocation6], 0
    %14 = vsyncpa [#allocation9], 0
    %15 = vsyncpa [#allocation4], 0
    // Predicated region
    $region2: #{tpu_custom_call.1} parent=1 // pred_check
      _
    $region3: #{tpu_custom_call.1} parent=1 // pred_check_branch
      %17 = sbr.rel (0) target = $region5
    $region4: #{tpu_custom_call.1} parent=1 // pred_region
      %s19 = ssub.s32 256, 256
      %20 = vsyncadd [#allocation3], %s19
      %s21 = sshll.u32 [#allocation2], 4
      %s22 = int_to_ptr.vmem [resolvable:$true] %s21
      %27 = dma.hbm_to_vmem [thread:$0]  %s0, 256, %s22, [#allocation3], 64, 64, 4
    $region5: #{tpu_custom_call.1} parent=1 // pred_fallthru
      _
    // Predicated region
    $region6: #{tpu_custom_call.1} parent=1 // pred_check
      _
    $region7: #{tpu_custom_call.1} parent=1 // pred_check_branch
      %29 = sbr.rel (0) target = $region9
    $region8: #{tpu_custom_call.1} parent=1 // pred_region
      %s31 = ssub.s32 4096, 4096
      %32 = vsyncadd [#allocation6], %s31
      %s33 = sshll.u32 [#allocation5], 4
      %s34 = int_to_ptr.vmem [resolvable:$true] %s33
      %39 = dma.hbm_to_vmem [thread:$0]  %s1, 4096, %s34, [#allocation6], 256, 256, 16
    $region9: #{tpu_custom_call.1} parent=1 // pred_fallthru
      _
    // Predicated region
    $region10: #{tpu_custom_call.1} parent=1 // pred_check
      _
    $region11: #{tpu_custom_call.1} parent=1 // pred_check_branch
      %41 = sbr.rel (0) target = $region13
    $region12: #{tpu_custom_call.1} parent=1 // pred_region
      %s43 = ssub.s32 64, 64
      %44 = vsyncadd [#allocation6], %s43
      %s46 = sshll.u32 [#allocation7], 4
      %s47 = int_to_ptr.vmem [resolvable:$true] %s46
      %49 = dma.hbm_to_vmem [thread:$0]  %s2, 64, %s47, [#allocation6]
    $region13: #{tpu_custom_call.1} parent=1 // pred_fallthru
      _
    // Predicated region
    $region14: #{tpu_custom_call.1} parent=1 // pred_check
      _
    $region15: #{tpu_custom_call.1} parent=1 // pred_check_branch
      %51 = sbr.rel (0) target = $region17
    $region16: #{tpu_custom_call.1} parent=1 // pred_region
      %s53 = ssub.s32 1024, 1024
      %54 = vsyncadd [#allocation9], %s53
      %s55 = sshll.u32 [#allocation8], 4
      %s56 = int_to_ptr.vmem [resolvable:$true] %s55
      %61 = dma.hbm_to_vmem [thread:$0]  %s3, 1024, %s56, [#allocation9], 512, 512, 32
    $region17: #{tpu_custom_call.1} parent=1 // pred_fallthru
      _
    // Predicated region
    $region18: #{tpu_custom_call.1} parent=1 // pred_check
      _
    $region19: #{tpu_custom_call.1} parent=1 // pred_check_branch
      %63 = sbr.rel (0) target = $region21
    $region20: #{tpu_custom_call.1} parent=1 // pred_region
      _
    $region21: #{tpu_custom_call.1} parent=1 // pred_fallthru
      _
    // Predicated region
    $region22: #{tpu_custom_call.1} parent=1 // pred_check
      _
    $region23: #{tpu_custom_call.1} parent=1 // pred_check_branch
      %65 = sbr.rel (0) target = $region25
    $region24: #{tpu_custom_call.1} parent=1 // pred_region
      %s67 = ssub.s32 4096, 4096
      %68 = vsyncadd [#allocation9], %s67
      %s69 = sshll.u32 [#allocation10], 4
      %s70 = int_to_ptr.vmem [resolvable:$true] %s69
      %75 = dma.hbm_to_vmem [thread:$0]  %s5, 4096, %s70, [#allocation9], 64, 64, 4
    $region25: #{tpu_custom_call.1} parent=1 // pred_fallthru
      _
    // Predicated region
    $region26: #{tpu_custom_call.1} parent=1 // pred_check
      _
    $region27: #{tpu_custom_call.1} parent=1 // pred_check_branch
      %77 = sbr.rel (0) target = $region29
    $region28: #{tpu_custom_call.1} parent=1 // pred_region
      _
    $region29: #{tpu_custom_call.1} parent=1 // pred_fallthru
      _
    // Predicated region
    $region30: #{tpu_custom_call.1} parent=1 // pred_check
      _
    $region31: #{tpu_custom_call.1} parent=1 // pred_check_branch
      %79 = sbr.rel (0) target = $region33
    $region32: #{tpu_custom_call.1} parent=1 // pred_region
      %80 = dma.done [#allocation3], 256
    $region33: #{tpu_custom_call.1} parent=1 // pred_fallthru
      _
    // Predicated region
    $region34: #{tpu_custom_call.1} parent=1 // pred_check
      _
    $region35: #{tpu_custom_call.1} parent=1 // pred_check_branch
      %82 = sbr.rel (0) target = $region37
    $region36: #{tpu_custom_call.1} parent=1 // pred_region
      %83 = dma.done [#allocation6], 4096
    $region37: #{tpu_custom_call.1} parent=1 // pred_fallthru
      _
    // Predicated region
    $region38: #{tpu_custom_call.1} parent=1 // pred_check
      _
    $region39: #{tpu_custom_call.1} parent=1 // pred_check_branch
      %85 = sbr.rel (0) target = $region41
    $region40: #{tpu_custom_call.1} parent=1 // pred_region
      %86 = dma.done [#allocation6], 64
    $region41: #{tpu_custom_call.1} parent=1 // pred_fallthru
      _
    // Predicated region
    $region42: #{tpu_custom_call.1} parent=1 // pred_check
      _
    $region43: #{tpu_custom_call.1} parent=1 // pred_check_branch
      %88 = sbr.rel (0) target = $region45
    $region44: #{tpu_custom_call.1} parent=1 // pred_region
      %89 = dma.done [#allocation9], 1024
    $region45: #{tpu_custom_call.1} parent=1 // pred_fallthru
      _
    // Predicated region
    $region46: #{tpu_custom_call.1} parent=1 // pred_check
      _
    $region47: #{tpu_custom_call.1} parent=1 // pred_check_branch
      %91 = sbr.rel (0) target = $region49
    $region48: #{tpu_custom_call.1} parent=1 // pred_region
      %92 = dma.done [#allocation9], 4096
    $region49: #{tpu_custom_call.1} parent=1 // pred_fallthru
      _
    %v94 = vld [vmem:[#allocation2] sm:$0xf]
    %v95 = vld [vmem:[#allocation2 + $0x4] sm:$0xf]
    %v96 = vld [vmem:[#allocation2 + $0x8] sm:$0xf]
    %v97 = vld [vmem:[#allocation2 + $0xc] sm:$0xf]
    %v98 = vld [vmem:[#allocation5] sm:$0xff]
    %v99 = vld [vmem:[#allocation5 + $0x8] sm:$0xff]
    %v100 = vld [vmem:[#allocation5 + $0x10] sm:$0xff]
    %v101 = vld [vmem:[#allocation5 + $0x18] sm:$0xff]
    %v102 = vld [vmem:[#allocation5 + $0x20] sm:$0xff]
    %v103 = vld [vmem:[#allocation5 + $0x28] sm:$0xff]
    %v104 = vld [vmem:[#allocation5 + $0x30] sm:$0xff]
    %v105 = vld [vmem:[#allocation5 + $0x38] sm:$0xff]
    %v106 = vld [vmem:[#allocation5 + $0x40] sm:$0xff]
    %v107 = vld [vmem:[#allocation5 + $0x48] sm:$0xff]
    %v108 = vld [vmem:[#allocation5 + $0x50] sm:$0xff]
    %v109 = vld [vmem:[#allocation5 + $0x58] sm:$0xff]
    %v110 = vld [vmem:[#allocation5 + $0x60] sm:$0xff]
    %v111 = vld [vmem:[#allocation5 + $0x68] sm:$0xff]
    %v112 = vld [vmem:[#allocation5 + $0x70] sm:$0xff]
    %v113 = vld [vmem:[#allocation5 + $0x78] sm:$0xff]
    %v114 = vld [vmem:[#allocation5 + $0x80] sm:$0xff]
    %v115 = vld [vmem:[#allocation5 + $0x88] sm:$0xff]
    %v116 = vld [vmem:[#allocation5 + $0x90] sm:$0xff]
    %v117 = vld [vmem:[#allocation5 + $0x98] sm:$0xff]
    %v118 = vld [vmem:[#allocation5 + $0xa0] sm:$0xff]
    %v119 = vld [vmem:[#allocation5 + $0xa8] sm:$0xff]
    %v120 = vld [vmem:[#allocation5 + $0xb0] sm:$0xff]
    %v121 = vld [vmem:[#allocation5 + $0xb8] sm:$0xff]
    %v122 = vld [vmem:[#allocation5 + $0xc0] sm:$0xff]
    %v123 = vld [vmem:[#allocation5 + $0xc8] sm:$0xff]
    %v124 = vld [vmem:[#allocation5 + $0xd0] sm:$0xff]
    %v125 = vld [vmem:[#allocation5 + $0xd8] sm:$0xff]
    %v126 = vld [vmem:[#allocation5 + $0xe0] sm:$0xff]
    %v127 = vld [vmem:[#allocation5 + $0xe8] sm:$0xff]
    %v128 = vld [vmem:[#allocation5 + $0xf0] sm:$0xff]
    %v129 = vld [vmem:[#allocation5 + $0xf8] sm:$0xff]
    %v130 = vld [vmem:[#allocation7] sm:$0xf]
    %v132 = vlaneseq
    %v133 = vshrl.u32 %v132, 7
    %v134 = vsub.s32 0, %v133
    %v135 = vrot.slane %v130, %v134
    %v136 = vlaneseq
    %v137 = vshrl.u32 %v136, 7
    %v138 = vsub.s32 1, %v137
    %v139 = vrot.slane %v130, %v138
    %v140 = vlaneseq
    %v141 = vshrl.u32 %v140, 7
    %v142 = vsub.s32 2, %v141
    %v143 = vrot.slane %v130, %v142
    %v144 = vlaneseq
    %v145 = vshrl.u32 %v144, 7
    %v146 = vsub.s32 3, %v145
    %v147 = vrot.slane %v130, %v146
    %v156 = vunpack.c.l.b16 %v94
    %v157 = vunpack.c.l.b16 %v95
    %v158 = vunpack.c.l.b16 %v96
    %v159 = vunpack.c.l.b16 %v97
    %v160 = vpack.c.b16 %v157, %v156
    %v161 = vpack.c.b16 %v159, %v158
    %v196 = vunpack.c.l.b16 %v98
    %v197 = vunpack.c.h.b16 %v98
    %v198 = vunpack.c.l.b16 %v99
    %v199 = vunpack.c.h.b16 %v99
    %v200 = vunpack.c.l.b16 %v100
    %v201 = vunpack.c.h.b16 %v100
    %v202 = vunpack.c.l.b16 %v101
    %v203 = vunpack.c.h.b16 %v101
    %v204 = vunpack.c.l.b16 %v102
    %v205 = vunpack.c.h.b16 %v102
    %v206 = vunpack.c.l.b16 %v103
    %v207 = vunpack.c.h.b16 %v103
    %v208 = vunpack.c.l.b16 %v104
    %v209 = vunpack.c.h.b16 %v104
    %v210 = vunpack.c.l.b16 %v105
    %v211 = vunpack.c.h.b16 %v105
    %v212 = vunpack.c.l.b16 %v106
    %v213 = vunpack.c.h.b16 %v106
    %v214 = vunpack.c.l.b16 %v107
    %v215 = vunpack.c.h.b16 %v107
    %v216 = vunpack.c.l.b16 %v108
    %v217 = vunpack.c.h.b16 %v108
    %v218 = vunpack.c.l.b16 %v109
    %v219 = vunpack.c.h.b16 %v109
    %v220 = vunpack.c.l.b16 %v110
    %v221 = vunpack.c.h.b16 %v110
    %v222 = vunpack.c.l.b16 %v111
    %v223 = vunpack.c.h.b16 %v111
    %v224 = vunpack.c.l.b16 %v112
    %v225 = vunpack.c.h.b16 %v112
    %v226 = vunpack.c.l.b16 %v113
    %v227 = vunpack.c.h.b16 %v113
    %v228 = vunpack.c.l.b16 %v114
    %v229 = vunpack.c.h.b16 %v114
    %v230 = vunpack.c.l.b16 %v115
    %v231 = vunpack.c.h.b16 %v115
    %v232 = vunpack.c.l.b16 %v116
    %v233 = vunpack.c.h.b16 %v116
    %v234 = vunpack.c.l.b16 %v117
    %v235 = vunpack.c.h.b16 %v117
    %v236 = vunpack.c.l.b16 %v118
    %v237 = vunpack.c.h.b16 %v118
    %v238 = vunpack.c.l.b16 %v119
    %v239 = vunpack.c.h.b16 %v119
    %v240 = vunpack.c.l.b16 %v120
    %v241 = vunpack.c.h.b16 %v120
    %v242 = vunpack.c.l.b16 %v121
    %v243 = vunpack.c.h.b16 %v121
    %v244 = vunpack.c.l.b16 %v122
    %v245 = vunpack.c.h.b16 %v122
    %v246 = vunpack.c.l.b16 %v123
    %v247 = vunpack.c.h.b16 %v123
    %v248 = vunpack.c.l.b16 %v124
    %v249 = vunpack.c.h.b16 %v124
    %v250 = vunpack.c.l.b16 %v125
    %v251 = vunpack.c.h.b16 %v125
    %v252 = vunpack.c.l.b16 %v126
    %v253 = vunpack.c.h.b16 %v126
    %v254 = vunpack.c.l.b16 %v127
    %v255 = vunpack.c.h.b16 %v127
    %v256 = vunpack.c.l.b16 %v128
    %v257 = vunpack.c.h.b16 %v128
    %v258 = vunpack.c.l.b16 %v129
    %v259 = vunpack.c.h.b16 %v129
    %v260 = vpack.c.b16 %v200, %v196
    %v261 = vpack.c.b16 %v201, %v197
    %v262 = vpack.c.b16 %v202, %v198
    %v263 = vpack.c.b16 %v203, %v199
    %v264 = vpack.c.b16 %v208, %v204
    %v265 = vpack.c.b16 %v209, %v205
    %v266 = vpack.c.b16 %v210, %v206
    %v267 = vpack.c.b16 %v211, %v207
    %v268 = vpack.c.b16 %v216, %v212
    %v269 = vpack.c.b16 %v217, %v213
    %v270 = vpack.c.b16 %v218, %v214
    %v271 = vpack.c.b16 %v219, %v215
    %v272 = vpack.c.b16 %v224, %v220
    %v273 = vpack.c.b16 %v225, %v221
    %v274 = vpack.c.b16 %v226, %v222
    %v275 = vpack.c.b16 %v227, %v223
    %v276 = vpack.c.b16 %v232, %v228
    %v277 = vpack.c.b16 %v233, %v229
    %v278 = vpack.c.b16 %v234, %v230
    %v279 = vpack.c.b16 %v235, %v231
    %v280 = vpack.c.b16 %v240, %v236
    %v281 = vpack.c.b16 %v241, %v237
    %v282 = vpack.c.b16 %v242, %v238
    %v283 = vpack.c.b16 %v243, %v239
    %v284 = vpack.c.b16 %v248, %v244
    %v285 = vpack.c.b16 %v249, %v245
    %v286 = vpack.c.b16 %v250, %v246
    %v287 = vpack.c.b16 %v251, %v247
    %v288 = vpack.c.b16 %v256, %v252
    %v289 = vpack.c.b16 %v257, %v253
    %v290 = vpack.c.b16 %v258, %v254
    %v291 = vpack.c.b16 %v259, %v255
    %324 = vmatprep.subr.bf16.mxu0 %v289
    %325 = vmatpush1.bf16.msra.mxu0 %v288
    %326 = vmatprep.subr.bf16.mxu0 %v285
    %327 = vmatpush1.bf16.msra.mxu0 %v284
    %328 = vmatprep.subr.bf16.mxu0 %v281
    %329 = vmatpush1.bf16.msra.mxu0 %v280
    %330 = vmatprep.subr.bf16.mxu0 %v277
    %331 = vmatpush1.bf16.msra.mxu0 %v276
    %332 = vmatprep.subr.bf16.mxu0 %v273
    %333 = vmatpush1.bf16.msra.mxu0 %v272
    %334 = vmatprep.subr.bf16.mxu0 %v269
    %335 = vmatpush1.bf16.msra.mxu0 %v268
    %336 = vmatprep.subr.bf16.mxu0 %v265
    %337 = vmatpush1.bf16.msra.mxu0 %v264
    %338 = vmatprep.subr.bf16.mxu0 %v261
    %339 = vmatpush1.bf16.msra.mxu0 %v260
    %340 = vmatprep.subr.bf16.mxu0 0
    %341 = vmatpush2.bf16.msra.mxu0 0
    %342 = vmatprep.subr.bf16.mxu0 0
    %343 = vmatpush2.bf16.msra.mxu0 0
    %344 = vmatprep.subr.bf16.mxu0 0
    %345 = vmatpush2.bf16.msra.mxu0 0
    %346 = vmatprep.subr.bf16.mxu0 0
    %347 = vmatpush2.bf16.msra.mxu0 0
    %348 = vmatprep.subr.bf16.mxu0 0
    %349 = vmatpush2.bf16.msra.mxu0 0
    %350 = vmatprep.subr.bf16.mxu0 0
    %351 = vmatpush2.bf16.msra.mxu0 0
    %352 = vmatprep.subr.bf16.mxu0 0
    %353 = vmatpush2.bf16.msra.mxu0 0
    %354 = vmatprep.subr.bf16.mxu0 0
    %355 = vmatpush2.bf16.msra.mxu0 0
    %356 = vmatprep.mubr.bf16.mxu0 0
    %357 = vmatmul.mubr.bf16.gmra.mxu0 %v160
    %v358 = vpop.f32.mrf.mxu0
    %v359 = vadd.f32 %v135, %v358
    %v360 = vpop.f32.mrf.mxu0
    %v361 = vadd.f32 %v139, %v360
    %v362 = vpop.f32.mrf.mxu0
    %v363 = vadd.f32 %v135, %v362
    %v364 = vpop.f32.mrf.mxu0
    %v365 = vadd.f32 %v139, %v364
    %366 = vmatprep.mubr.bf16.mxu0 0
    %367 = vmatmul.mubr.bf16.gmra.mxu0 %v161
    %v368 = vpop.f32.mrf.mxu0
    %v369 = vadd.f32 %v135, %v368
    %v370 = vpop.f32.mrf.mxu0
    %v371 = vadd.f32 %v139, %v370
    %v372 = vpop.f32.mrf.mxu0
    %v373 = vadd.f32 %v135, %v372
    %v374 = vpop.f32.mrf.mxu0
    %v375 = vadd.f32 %v139, %v374
    %376 = vdwg.mxu0
    %377 = vmatprep.subr.bf16.mxu0 %v291
    %378 = vmatpush1.bf16.msra.mxu0 %v290
    %379 = vmatprep.subr.bf16.mxu0 %v287
    %380 = vmatpush1.bf16.msra.mxu0 %v286
    %381 = vmatprep.subr.bf16.mxu0 %v283
    %382 = vmatpush1.bf16.msra.mxu0 %v282
    %383 = vmatprep.subr.bf16.mxu0 %v279
    %384 = vmatpush1.bf16.msra.mxu0 %v278
    %385 = vmatprep.subr.bf16.mxu0 %v275
    %386 = vmatpush1.bf16.msra.mxu0 %v274
    %387 = vmatprep.subr.bf16.mxu0 %v271
    %388 = vmatpush1.bf16.msra.mxu0 %v270
    %389 = vmatprep.subr.bf16.mxu0 %v267
    %390 = vmatpush1.bf16.msra.mxu0 %v266
    %391 = vmatprep.subr.bf16.mxu0 %v263
    %392 = vmatpush1.bf16.msra.mxu0 %v262
    %393 = vmatprep.subr.bf16.mxu0 0
    %394 = vmatpush2.bf16.msra.mxu0 0
    %395 = vmatprep.subr.bf16.mxu0 0
    %396 = vmatpush2.bf16.msra.mxu0 0
    %397 = vmatprep.subr.bf16.mxu0 0
    %398 = vmatpush2.bf16.msra.mxu0 0
    %399 = vmatprep.subr.bf16.mxu0 0
    %400 = vmatpush2.bf16.msra.mxu0 0
    %401 = vmatprep.subr.bf16.mxu0 0
    %402 = vmatpush2.bf16.msra.mxu0 0
    %403 = vmatprep.subr.bf16.mxu0 0
    %404 = vmatpush2.bf16.msra.mxu0 0
    %405 = vmatprep.subr.bf16.mxu0 0
    %406 = vmatpush2.bf16.msra.mxu0 0
    %407 = vmatprep.subr.bf16.mxu0 0
    %408 = vmatpush2.bf16.msra.mxu0 0
    %409 = vmatprep.mubr.bf16.mxu0 0
    %410 = vmatmul.mubr.bf16.gmra.mxu0 %v160
    %v411 = vpop.f32.mrf.mxu0
    %v412 = vadd.f32 %v143, %v411
    %v413 = vpop.f32.mrf.mxu0
    %v414 = vadd.f32 %v147, %v413
    %v415 = vpop.f32.mrf.mxu0
    %v416 = vadd.f32 %v143, %v415
    %v417 = vpop.f32.mrf.mxu0
    %v418 = vadd.f32 %v147, %v417
    %419 = vmatprep.mubr.bf16.mxu0 0
    %420 = vmatmul.mubr.bf16.gmra.mxu0 %v161
    %v421 = vpop.f32.mrf.mxu0
    %v422 = vadd.f32 %v143, %v421
    %v423 = vpop.f32.mrf.mxu0
    %v424 = vadd.f32 %v147, %v423
    %v425 = vpop.f32.mrf.mxu0
    %v426 = vadd.f32 %v143, %v425
    %v427 = vpop.f32.mrf.mxu0
    %v428 = vadd.f32 %v147, %v427
    %429 = vdwg.mxu0
    %v430 = vmax.f32 %v359, 0.0
    %v431 = vmax.f32 %v361, 0.0
    %v432 = vmax.f32 %v412, 0.0
    %v433 = vmax.f32 %v414, 0.0
    %v434 = vmax.f32 %v363, 0.0
    %v435 = vmax.f32 %v365, 0.0
    %v436 = vmax.f32 %v416, 0.0
    %v437 = vmax.f32 %v418, 0.0
    %v438 = vmax.f32 %v369, 0.0
    %v439 = vmax.f32 %v371, 0.0
    %v440 = vmax.f32 %v422, 0.0
    %v441 = vmax.f32 %v424, 0.0
    %v442 = vmax.f32 %v373, 0.0
    %v443 = vmax.f32 %v375, 0.0
    %v444 = vmax.f32 %v426, 0.0
    %v445 = vmax.f32 %v428, 0.0
    %v446 = vmin.f32 %v430, 6.0
    %v447 = vmin.f32 %v431, 6.0
    %v448 = vmin.f32 %v432, 6.0
    %v449 = vmin.f32 %v433, 6.0
    %v450 = vmin.f32 %v434, 6.0
    %v451 = vmin.f32 %v435, 6.0
    %v452 = vmin.f32 %v436, 6.0
    %v453 = vmin.f32 %v437, 6.0
    %v454 = vmin.f32 %v438, 6.0
    %v455 = vmin.f32 %v439, 6.0
    %v456 = vmin.f32 %v440, 6.0
    %v457 = vmin.f32 %v441, 6.0
    %v458 = vmin.f32 %v442, 6.0
    %v459 = vmin.f32 %v443, 6.0
    %v460 = vmin.f32 %v444, 6.0
    %v461 = vmin.f32 %v445, 6.0
    %v462 = vld [vmem:[#allocation8] sm:$0xff]
    %v463 = vld [vmem:[#allocation8 + $0x8] sm:$0xff]
    %v464 = vld [vmem:[#allocation8 + $0x10] sm:$0xff]
    %v465 = vld [vmem:[#allocation8 + $0x18] sm:$0xff]
    %v466 = vld [vmem:[#allocation8 + $0x20] sm:$0x1]
    %v467 = vld [vmem:[#allocation8 + $0x28] sm:$0x1]
    %v468 = vld [vmem:[#allocation8 + $0x30] sm:$0x1]
    %v469 = vld [vmem:[#allocation8 + $0x38] sm:$0x1]
    %v470 = vlaneseq
    %v471 = vshrl.u32 %v470, 7
    %v472 = vsub.s32 4, %v471
    %v473 = vrot.slane %v462, %v472
    %v474 = vlaneseq
    %v475 = vshrl.u32 %v474, 7
    %v476 = vsub.s32 4, %v475
    %v477 = vrot.slane %v463, %v476
    %v478 = vlaneseq
    %v479 = vshrl.u32 %v478, 7
    %v480 = vsub.s32 4, %v479
    %v481 = vrot.slane %v464, %v480
    %v482 = vlaneseq
    %v483 = vshrl.u32 %v482, 7
    %v484 = vsub.s32 4, %v483
    %v485 = vrot.slane %v465, %v484
    %v486 = vmul.f32 %v446, %v473
    %v487 = vmul.f32 %v447, %v477
    %v488 = vmul.f32 %v448, %v481
    %v489 = vmul.f32 %v449, %v485
    %v490 = vmul.f32 %v450, %v473
    %v491 = vmul.f32 %v451, %v477
    %v492 = vmul.f32 %v452, %v481
    %v493 = vmul.f32 %v453, %v485
    %v494 = vmul.f32 %v454, %v473
    %v495 = vmul.f32 %v455, %v477
    %v496 = vmul.f32 %v456, %v481
    %v497 = vmul.f32 %v457, %v485
    %v498 = vmul.f32 %v458, %v473
    %v499 = vmul.f32 %v459, %v477
    %v500 = vmul.f32 %v460, %v481
    %v501 = vmul.f32 %v461, %v485
    %518 = vrot.lane.b32.xlu0 %v446, 32
    %v519 = vpop.permute.xlu0 %518
    %520 = vrot.lane.b32.xlu0 %v447, 32
    %v521 = vpop.permute.xlu0 %520
    %522 = vrot.lane.b32.xlu0 %v448, 32
    %v523 = vpop.permute.xlu0 %522
    %524 = vrot.lane.b32.xlu0 %v449, 32
    %v525 = vpop.permute.xlu0 %524
    %526 = vrot.lane.b32.xlu0 %v450, 32
    %v527 = vpop.permute.xlu0 %526
    %528 = vrot.lane.b32.xlu0 %v451, 32
    %v529 = vpop.permute.xlu0 %528
    %530 = vrot.lane.b32.xlu0 %v452, 32
    %v531 = vpop.permute.xlu0 %530
    %532 = vrot.lane.b32.xlu0 %v453, 32
    %v533 = vpop.permute.xlu0 %532
    %534 = vrot.lane.b32.xlu0 %v454, 32
    %v535 = vpop.permute.xlu0 %534
    %536 = vrot.lane.b32.xlu0 %v455, 32
    %v537 = vpop.permute.xlu0 %536
    %538 = vrot.lane.b32.xlu0 %v456, 32
    %v539 = vpop.permute.xlu0 %538
    %540 = vrot.lane.b32.xlu0 %v457, 32
    %v541 = vpop.permute.xlu0 %540
    %542 = vrot.lane.b32.xlu0 %v458, 32
    %v543 = vpop.permute.xlu0 %542
    %544 = vrot.lane.b32.xlu0 %v459, 32
    %v545 = vpop.permute.xlu0 %544
    %546 = vrot.lane.b32.xlu0 %v460, 32
    %v547 = vpop.permute.xlu0 %546
    %548 = vrot.lane.b32.xlu0 %v461, 32
    %v549 = vpop.permute.xlu0 %548
    %vm550 = vcmask 261120
    %v551 = vsel %vm550, %v519, %v521
    %v552 = vsel %vm550, %v521, %v523
    %v553 = vsel %vm550, %v523, %v525
    %v554 = vsel %vm550, %v527, %v529
    %v555 = vsel %vm550, %v529, %v531
    %v556 = vsel %vm550, %v531, %v533
    %v557 = vsel %vm550, %v535, %v537
    %v558 = vsel %vm550, %v537, %v539
    %v559 = vsel %vm550, %v539, %v541
    %v560 = vsel %vm550, %v543, %v545
    %v561 = vsel %vm550, %v545, %v547
    %v562 = vsel %vm550, %v547, %v549
    %v579 = vsel %vm550, 0.0, %v519
    %v580 = vsel %vm550, 0.0, %v527
    %v581 = vsel %vm550, 0.0, %v535
    %v582 = vsel %vm550, 0.0, %v543
    %vm587 = vcmask 1040384
    %v588 = vrot.slane %v579, 7
    %v589 = vrot.slane %v551, 7
    %v590 = vrot.slane %v552, 7
    %v591 = vrot.slane %v553, 7
    %v592 = vrot.slane %v580, 7
    %v593 = vsel %vm587, %v588, %v592
    %v594 = vrot.slane %v554, 7
    %v595 = vsel %vm587, %v589, %v594
    %v596 = vrot.slane %v555, 7
    %v597 = vsel %vm587, %v590, %v596
    %v598 = vrot.slane %v556, 7
    %v599 = vsel %vm587, %v591, %v598
    %v600 = vrot.slane %v581, 7
    %v601 = vrot.slane %v557, 7
    %v602 = vrot.slane %v558, 7
    %v603 = vrot.slane %v559, 7
    %v604 = vrot.slane %v582, 7
    %v605 = vsel %vm587, %v600, %v604
    %v606 = vrot.slane %v560, 7
    %v607 = vsel %vm587, %v601, %v606
    %v608 = vrot.slane %v561, 7
    %v609 = vsel %vm587, %v602, %v608
    %v610 = vrot.slane %v562, 7
    %v611 = vsel %vm587, %v603, %v610
    %v628 = vsel %vm587, 0.0, %v588
    %v629 = vsel %vm587, 0.0, %v589
    %v630 = vsel %vm587, 0.0, %v590
    %v631 = vsel %vm587, 0.0, %v591
    %v632 = vsel %vm587, 0.0, %v600
    %v633 = vsel %vm587, 0.0, %v601
    %v634 = vsel %vm587, 0.0, %v602
    %v635 = vsel %vm587, 0.0, %v603
    %v636 = vlaneseq
    %v637 = vshrl.u32 %v636, 7
    %v638 = vsub.s32 0, %v637
    %v639 = vrot.slane %v462, %v638
    %v640 = vlaneseq
    %v641 = vshrl.u32 %v640, 7
    %v642 = vsub.s32 0, %v641
    %v643 = vrot.slane %v463, %v642
    %v644 = vlaneseq
    %v645 = vshrl.u32 %v644, 7
    %v646 = vsub.s32 0, %v645
    %v647 = vrot.slane %v464, %v646
    %v648 = vlaneseq
    %v649 = vshrl.u32 %v648, 7
    %v650 = vsub.s32 0, %v649
    %v651 = vrot.slane %v465, %v650
    %v652 = vmul.f32 %v628, %v639
    %v653 = vmul.f32 %v629, %v643
    %v654 = vmul.f32 %v630, %v647
    %v655 = vmul.f32 %v631, %v651
    %v656 = vmul.f32 %v593, %v639
    %v657 = vmul.f32 %v595, %v643
    %v658 = vmul.f32 %v597, %v647
    %v659 = vmul.f32 %v599, %v651
    %v660 = vmul.f32 %v632, %v639
    %v661 = vmul.f32 %v633, %v643
    %v662 = vmul.f32 %v634, %v647
    %v663 = vmul.f32 %v635, %v651
    %v664 = vmul.f32 %v605, %v639
    %v665 = vmul.f32 %v607, %v643
    %v666 = vmul.f32 %v609, %v647
    %v667 = vmul.f32 %v611, %v651
    %v668 = vadd.f32 %v486, %v652
    %v669 = vadd.f32 %v487, %v653
    %v670 = vadd.f32 %v488, %v654
    %v671 = vadd.f32 %v489, %v655
    %v672 = vadd.f32 %v490, %v656
    %v673 = vadd.f32 %v491, %v657
    %v674 = vadd.f32 %v492, %v658
    %v675 = vadd.f32 %v493, %v659
    %v676 = vadd.f32 %v494, %v660
    %v677 = vadd.f32 %v495, %v661
    %v678 = vadd.f32 %v496, %v662
    %v679 = vadd.f32 %v497, %v663
    %v680 = vadd.f32 %v498, %v664
    %v681 = vadd.f32 %v499, %v665
    %v682 = vadd.f32 %v500, %v666
    %v683 = vadd.f32 %v501, %v667
    %v684 = vlaneseq
    %v685 = vshrl.u32 %v684, 7
    %v686 = vsub.s32 3, %v685
    %v687 = vrot.slane %v462, %v686
    %v688 = vlaneseq
    %v689 = vshrl.u32 %v688, 7
    %v690 = vsub.s32 3, %v689
    %v691 = vrot.slane %v463, %v690
    %v692 = vlaneseq
    %v693 = vshrl.u32 %v692, 7
    %v694 = vsub.s32 3, %v693
    %v695 = vrot.slane %v464, %v694
    %v696 = vlaneseq
    %v697 = vshrl.u32 %v696, 7
    %v698 = vsub.s32 3, %v697
    %v699 = vrot.slane %v465, %v698
    %v700 = vmul.f32 %v579, %v687
    %v701 = vmul.f32 %v551, %v691
    %v702 = vmul.f32 %v552, %v695
    %v703 = vmul.f32 %v553, %v699
    %v704 = vmul.f32 %v580, %v687
    %v705 = vmul.f32 %v554, %v691
    %v706 = vmul.f32 %v555, %v695
    %v707 = vmul.f32 %v556, %v699
    %v708 = vmul.f32 %v581, %v687
    %v709 = vmul.f32 %v557, %v691
    %v710 = vmul.f32 %v558, %v695
    %v711 = vmul.f32 %v559, %v699
    %v712 = vmul.f32 %v582, %v687
    %v713 = vmul.f32 %v560, %v691
    %v714 = vmul.f32 %v561, %v695
    %v715 = vmul.f32 %v562, %v699
    %v716 = vadd.f32 %v668, %v700
    %v717 = vadd.f32 %v669, %v701
    %v718 = vadd.f32 %v670, %v702
    %v719 = vadd.f32 %v671, %v703
    %v720 = vadd.f32 %v672, %v704
    %v721 = vadd.f32 %v673, %v705
    %v722 = vadd.f32 %v674, %v706
    %v723 = vadd.f32 %v675, %v707
    %v724 = vadd.f32 %v676, %v708
    %v725 = vadd.f32 %v677, %v709
    %v726 = vadd.f32 %v678, %v710
    %v727 = vadd.f32 %v679, %v711
    %v728 = vadd.f32 %v680, %v712
    %v729 = vadd.f32 %v681, %v713
    %v730 = vadd.f32 %v682, %v714
    %v731 = vadd.f32 %v683, %v715
    %vm732 = vcmask 1046528
    %v733 = vrot.slane %v579, 1
    %v734 = vrot.slane %v580, 1
    %v735 = vsel %vm732, %v733, %v734
    %v736 = vrot.slane %v551, 1
    %v737 = vrot.slane %v554, 1
    %v738 = vsel %vm732, %v736, %v737
    %v739 = vrot.slane %v552, 1
    %v740 = vrot.slane %v555, 1
    %v741 = vsel %vm732, %v739, %v740
    %v742 = vrot.slane %v553, 1
    %v743 = vrot.slane %v556, 1
    %v744 = vsel %vm732, %v742, %v743
    %v745 = vrot.slane %v581, 1
    %v746 = vrot.slane %v582, 1
    %v747 = vsel %vm732, %v745, %v746
    %v748 = vrot.slane %v557, 1
    %v749 = vrot.slane %v560, 1
    %v750 = vsel %vm732, %v748, %v749
    %v751 = vrot.slane %v558, 1
    %v752 = vrot.slane %v561, 1
    %v753 = vsel %vm732, %v751, %v752
    %v754 = vrot.slane %v559, 1
    %v755 = vrot.slane %v562, 1
    %v756 = vsel %vm732, %v754, %v755
    %v773 = vsel %vm732, %v734, 0.0
    %v774 = vsel %vm732, %v737, 0.0
    %v775 = vsel %vm732, %v740, 0.0
    %v776 = vsel %vm732, %v743, 0.0
    %v777 = vsel %vm732, %v746, 0.0
    %v778 = vsel %vm732, %v749, 0.0
    %v779 = vsel %vm732, %v752, 0.0
    %v780 = vsel %vm732, %v755, 0.0
    %v781 = vlaneseq
    %v782 = vshrl.u32 %v781, 7
    %v783 = vsub.s32 6, %v782
    %v784 = vrot.slane %v462, %v783
    %v785 = vlaneseq
    %v786 = vshrl.u32 %v785, 7
    %v787 = vsub.s32 6, %v786
    %v788 = vrot.slane %v463, %v787
    %v789 = vlaneseq
    %v790 = vshrl.u32 %v789, 7
    %v791 = vsub.s32 6, %v790
    %v792 = vrot.slane %v464, %v791
    %v793 = vlaneseq
    %v794 = vshrl.u32 %v793, 7
    %v795 = vsub.s32 6, %v794
    %v796 = vrot.slane %v465, %v795
    %v797 = vmul.f32 %v735, %v784
    %v798 = vmul.f32 %v738, %v788
    %v799 = vmul.f32 %v741, %v792
    %v800 = vmul.f32 %v744, %v796
    %v801 = vmul.f32 %v773, %v784
    %v802 = vmul.f32 %v774, %v788
    %v803 = vmul.f32 %v775, %v792
    %v804 = vmul.f32 %v776, %v796
    %v805 = vmul.f32 %v747, %v784
    %v806 = vmul.f32 %v750, %v788
    %v807 = vmul.f32 %v753, %v792
    %v808 = vmul.f32 %v756, %v796
    %v809 = vmul.f32 %v777, %v784
    %v810 = vmul.f32 %v778, %v788
    %v811 = vmul.f32 %v779, %v792
    %v812 = vmul.f32 %v780, %v796
    %v813 = vadd.f32 %v716, %v797
    %v814 = vadd.f32 %v717, %v798
    %v815 = vadd.f32 %v718, %v799
    %v816 = vadd.f32 %v719, %v800
    %v817 = vadd.f32 %v720, %v801
    %v818 = vadd.f32 %v721, %v802
    %v819 = vadd.f32 %v722, %v803
    %v820 = vadd.f32 %v723, %v804
    %v821 = vadd.f32 %v724, %v805
    %v822 = vadd.f32 %v725, %v806
    %v823 = vadd.f32 %v726, %v807
    %v824 = vadd.f32 %v727, %v808
    %v825 = vadd.f32 %v728, %v809
    %v826 = vadd.f32 %v729, %v810
    %v827 = vadd.f32 %v730, %v811
    %v828 = vadd.f32 %v731, %v812
    %v829 = vrot.slane %v446, 7
    %v830 = vrot.slane %v447, 7
    %v831 = vrot.slane %v448, 7
    %v832 = vrot.slane %v449, 7
    %v833 = vrot.slane %v450, 7
    %v834 = vsel %vm587, %v829, %v833
    %v835 = vrot.slane %v451, 7
    %v836 = vsel %vm587, %v830, %v835
    %v837 = vrot.slane %v452, 7
    %v838 = vsel %vm587, %v831, %v837
    %v839 = vrot.slane %v453, 7
    %v840 = vsel %vm587, %v832, %v839
    %v841 = vrot.slane %v454, 7
    %v842 = vrot.slane %v455, 7
    %v843 = vrot.slane %v456, 7
    %v844 = vrot.slane %v457, 7
    %v845 = vrot.slane %v458, 7
    %v846 = vsel %vm587, %v841, %v845
    %v847 = vrot.slane %v459, 7
    %v848 = vsel %vm587, %v842, %v847
    %v849 = vrot.slane %v460, 7
    %v850 = vsel %vm587, %v843, %v849
    %v851 = vrot.slane %v461, 7
    %v852 = vsel %vm587, %v844, %v851
    %v869 = vsel %vm587, 0.0, %v829
    %v870 = vsel %vm587, 0.0, %v830
    %v871 = vsel %vm587, 0.0, %v831
    %v872 = vsel %vm587, 0.0, %v832
    %v873 = vsel %vm587, 0.0, %v841
    %v874 = vsel %vm587, 0.0, %v842
    %v875 = vsel %vm587, 0.0, %v843
    %v876 = vsel %vm587, 0.0, %v844
    %v877 = vlaneseq
    %v878 = vshrl.u32 %v877, 7
    %v879 = vsub.s32 1, %v878
    %v880 = vrot.slane %v462, %v879
    %v881 = vlaneseq
    %v882 = vshrl.u32 %v881, 7
    %v883 = vsub.s32 1, %v882
    %v884 = vrot.slane %v463, %v883
    %v885 = vlaneseq
    %v886 = vshrl.u32 %v885, 7
    %v887 = vsub.s32 1, %v886
    %v888 = vrot.slane %v464, %v887
    %v889 = vlaneseq
    %v890 = vshrl.u32 %v889, 7
    %v891 = vsub.s32 1, %v890
    %v892 = vrot.slane %v465, %v891
    %v893 = vmul.f32 %v869, %v880
    %v894 = vmul.f32 %v870, %v884
    %v895 = vmul.f32 %v871, %v888
    %v896 = vmul.f32 %v872, %v892
    %v897 = vmul.f32 %v834, %v880
    %v898 = vmul.f32 %v836, %v884
    %v899 = vmul.f32 %v838, %v888
    %v900 = vmul.f32 %v840, %v892
    %v901 = vmul.f32 %v873, %v880
    %v902 = vmul.f32 %v874, %v884
    %v903 = vmul.f32 %v875, %v888
    %v904 = vmul.f32 %v876, %v892
    %v905 = vmul.f32 %v846, %v880
    %v906 = vmul.f32 %v848, %v884
    %v907 = vmul.f32 %v850, %v888
    %v908 = vmul.f32 %v852, %v892
    %v909 = vadd.f32 %v813, %v893
    %v910 = vadd.f32 %v814, %v894
    %v911 = vadd.f32 %v815, %v895
    %v912 = vadd.f32 %v816, %v896
    %v913 = vadd.f32 %v817, %v897
    %v914 = vadd.f32 %v818, %v898
    %v915 = vadd.f32 %v819, %v899
    %v916 = vadd.f32 %v820, %v900
    %v917 = vadd.f32 %v821, %v901
    %v918 = vadd.f32 %v822, %v902
    %v919 = vadd.f32 %v823, %v903
    %v920 = vadd.f32 %v824, %v904
    %v921 = vadd.f32 %v825, %v905
    %v922 = vadd.f32 %v826, %v906
    %v923 = vadd.f32 %v827, %v907
    %v924 = vadd.f32 %v828, %v908
    %v925 = vrot.slane %v446, 1
    %v926 = vrot.slane %v450, 1
    %v927 = vsel %vm732, %v925, %v926
    %v928 = vrot.slane %v447, 1
    %v929 = vrot.slane %v451, 1
    %v930 = vsel %vm732, %v928, %v929
    %v931 = vrot.slane %v448, 1
    %v932 = vrot.slane %v452, 1
    %v933 = vsel %vm732, %v931, %v932
    %v934 = vrot.slane %v449, 1
    %v935 = vrot.slane %v453, 1
    %v936 = vsel %vm732, %v934, %v935
    %v937 = vrot.slane %v454, 1
    %v938 = vrot.slane %v458, 1
    %v939 = vsel %vm732, %v937, %v938
    %v940 = vrot.slane %v455, 1
    %v941 = vrot.slane %v459, 1
    %v942 = vsel %vm732, %v940, %v941
    %v943 = vrot.slane %v456, 1
    %v944 = vrot.slane %v460, 1
    %v945 = vsel %vm732, %v943, %v944
    %v946 = vrot.slane %v457, 1
    %v947 = vrot.slane %v461, 1
    %v948 = vsel %vm732, %v946, %v947
    %v965 = vsel %vm732, %v926, 0.0
    %v966 = vsel %vm732, %v929, 0.0
    %v967 = vsel %vm732, %v932, 0.0
    %v968 = vsel %vm732, %v935, 0.0
    %v969 = vsel %vm732, %v938, 0.0
    %v970 = vsel %vm732, %v941, 0.0
    %v971 = vsel %vm732, %v944, 0.0
    %v972 = vsel %vm732, %v947, 0.0
    %v973 = vlaneseq
    %v974 = vshrl.u32 %v973, 7
    %v975 = vsub.s32 7, %v974
    %v976 = vrot.slane %v462, %v975
    %v977 = vlaneseq
    %v978 = vshrl.u32 %v977, 7
    %v979 = vsub.s32 7, %v978
    %v980 = vrot.slane %v463, %v979
    %v981 = vlaneseq
    %v982 = vshrl.u32 %v981, 7
    %v983 = vsub.s32 7, %v982
    %v984 = vrot.slane %v464, %v983
    %v985 = vlaneseq
    %v986 = vshrl.u32 %v985, 7
    %v987 = vsub.s32 7, %v986
    %v988 = vrot.slane %v465, %v987
    %v989 = vmul.f32 %v927, %v976
    %v990 = vmul.f32 %v930, %v980
    %v991 = vmul.f32 %v933, %v984
    %v992 = vmul.f32 %v936, %v988
    %v993 = vmul.f32 %v965, %v976
    %v994 = vmul.f32 %v966, %v980
    %v995 = vmul.f32 %v967, %v984
    %v996 = vmul.f32 %v968, %v988
    %v997 = vmul.f32 %v939, %v976
    %v998 = vmul.f32 %v942, %v980
    %v999 = vmul.f32 %v945, %v984
    %v1000 = vmul.f32 %v948, %v988
    %v1001 = vmul.f32 %v969, %v976
    %v1002 = vmul.f32 %v970, %v980
    %v1003 = vmul.f32 %v971, %v984
    %v1004 = vmul.f32 %v972, %v988
    %v1005 = vadd.f32 %v909, %v989
    %v1006 = vadd.f32 %v910, %v990
    %v1007 = vadd.f32 %v911, %v991
    %v1008 = vadd.f32 %v912, %v992
    %v1009 = vadd.f32 %v913, %v993
    %v1010 = vadd.f32 %v914, %v994
    %v1011 = vadd.f32 %v915, %v995
    %v1012 = vadd.f32 %v916, %v996
    %v1013 = vadd.f32 %v917, %v997
    %v1014 = vadd.f32 %v918, %v998
    %v1015 = vadd.f32 %v919, %v999
    %v1016 = vadd.f32 %v920, %v1000
    %v1017 = vadd.f32 %v921, %v1001
    %v1018 = vadd.f32 %v922, %v1002
    %v1019 = vadd.f32 %v923, %v1003
    %v1020 = vadd.f32 %v924, %v1004
    %1021 = vrot.lane.b32.xlu0 %v446, 96
    %v1022 = vpop.permute.xlu0 %1021
    %1023 = vrot.lane.b32.xlu0 %v447, 96
    %v1024 = vpop.permute.xlu0 %1023
    %1025 = vrot.lane.b32.xlu0 %v448, 96
    %v1026 = vpop.permute.xlu0 %1025
    %1027 = vrot.lane.b32.xlu0 %v449, 96
    %v1028 = vpop.permute.xlu0 %1027
    %1029 = vrot.lane.b32.xlu0 %v450, 96
    %v1030 = vpop.permute.xlu0 %1029
    %1031 = vrot.lane.b32.xlu0 %v451, 96
    %v1032 = vpop.permute.xlu0 %1031
    %1033 = vrot.lane.b32.xlu0 %v452, 96
    %v1034 = vpop.permute.xlu0 %1033
    %1035 = vrot.lane.b32.xlu0 %v453, 96
    %v1036 = vpop.permute.xlu0 %1035
    %1037 = vrot.lane.b32.xlu0 %v454, 96
    %v1038 = vpop.permute.xlu0 %1037
    %1039 = vrot.lane.b32.xlu0 %v455, 96
    %v1040 = vpop.permute.xlu0 %1039
    %1041 = vrot.lane.b32.xlu0 %v456, 96
    %v1042 = vpop.permute.xlu0 %1041
    %1043 = vrot.lane.b32.xlu0 %v457, 96
    %v1044 = vpop.permute.xlu0 %1043
    %1045 = vrot.lane.b32.xlu0 %v458, 96
    %v1046 = vpop.permute.xlu0 %1045
    %1047 = vrot.lane.b32.xlu0 %v459, 96
    %v1048 = vpop.permute.xlu0 %1047
    %1049 = vrot.lane.b32.xlu0 %v460, 96
    %v1050 = vpop.permute.xlu0 %1049
    %1051 = vrot.lane.b32.xlu0 %v461, 96
    %v1052 = vpop.permute.xlu0 %1051
    %vm1053 = vcmask 785408
    %v1054 = vsel %vm1053, %v1022, %v1024
    %v1055 = vsel %vm1053, %v1024, %v1026
    %v1056 = vsel %vm1053, %v1026, %v1028
    %v1057 = vsel %vm1053, %v1030, %v1032
    %v1058 = vsel %vm1053, %v1032, %v1034
    %v1059 = vsel %vm1053, %v1034, %v1036
    %v1060 = vsel %vm1053, %v1038, %v1040
    %v1061 = vsel %vm1053, %v1040, %v1042
    %v1062 = vsel %vm1053, %v1042, %v1044
    %v1063 = vsel %vm1053, %v1046, %v1048
    %v1064 = vsel %vm1053, %v1048, %v1050
    %v1065 = vsel %vm1053, %v1050, %v1052
    %v1082 = vsel %vm1053, %v1028, 0.0
    %v1083 = vsel %vm1053, %v1036, 0.0
    %v1084 = vsel %vm1053, %v1044, 0.0
    %v1085 = vsel %vm1053, %v1052, 0.0
    %v1090 = vrot.slane %v1054, 7
    %v1091 = vrot.slane %v1055, 7
    %v1092 = vrot.slane %v1056, 7
    %v1093 = vrot.slane %v1082, 7
    %v1094 = vrot.slane %v1057, 7
    %v1095 = vsel %vm587, %v1090, %v1094
    %v1096 = vrot.slane %v1058, 7
    %v1097 = vsel %vm587, %v1091, %v1096
    %v1098 = vrot.slane %v1059, 7
    %v1099 = vsel %vm587, %v1092, %v1098
    %v1100 = vrot.slane %v1083, 7
    %v1101 = vsel %vm587, %v1093, %v1100
    %v1102 = vrot.slane %v1060, 7
    %v1103 = vrot.slane %v1061, 7
    %v1104 = vrot.slane %v1062, 7
    %v1105 = vrot.slane %v1084, 7
    %v1106 = vrot.slane %v1063, 7
    %v1107 = vsel %vm587, %v1102, %v1106
    %v1108 = vrot.slane %v1064, 7
    %v1109 = vsel %vm587, %v1103, %v1108
    %v1110 = vrot.slane %v1065, 7
    %v1111 = vsel %vm587, %v1104, %v1110
    %v1112 = vrot.slane %v1085, 7
    %v1113 = vsel %vm587, %v1105, %v1112
    %v1130 = vsel %vm587, 0.0, %v1090
    %v1131 = vsel %vm587, 0.0, %v1091
    %v1132 = vsel %vm587, 0.0, %v1092
    %v1133 = vsel %vm587, 0.0, %v1093
    %v1134 = vsel %vm587, 0.0, %v1102
    %v1135 = vsel %vm587, 0.0, %v1103
    %v1136 = vsel %vm587, 0.0, %v1104
    %v1137 = vsel %vm587, 0.0, %v1105
    %v1138 = vlaneseq
    %v1139 = vshrl.u32 %v1138, 7
    %v1140 = vsub.s32 2, %v1139
    %v1141 = vrot.slane %v462, %v1140
    %v1142 = vlaneseq
    %v1143 = vshrl.u32 %v1142, 7
    %v1144 = vsub.s32 2, %v1143
    %v1145 = vrot.slane %v463, %v1144
    %v1146 = vlaneseq
    %v1147 = vshrl.u32 %v1146, 7
    %v1148 = vsub.s32 2, %v1147
    %v1149 = vrot.slane %v464, %v1148
    %v1150 = vlaneseq
    %v1151 = vshrl.u32 %v1150, 7
    %v1152 = vsub.s32 2, %v1151
    %v1153 = vrot.slane %v465, %v1152
    %v1154 = vmul.f32 %v1130, %v1141
    %v1155 = vmul.f32 %v1131, %v1145
    %v1156 = vmul.f32 %v1132, %v1149
    %v1157 = vmul.f32 %v1133, %v1153
    %v1158 = vmul.f32 %v1095, %v1141
    %v1159 = vmul.f32 %v1097, %v1145
    %v1160 = vmul.f32 %v1099, %v1149
    %v1161 = vmul.f32 %v1101, %v1153
    %v1162 = vmul.f32 %v1134, %v1141
    %v1163 = vmul.f32 %v1135, %v1145
    %v1164 = vmul.f32 %v1136, %v1149
    %v1165 = vmul.f32 %v1137, %v1153
    %v1166 = vmul.f32 %v1107, %v1141
    %v1167 = vmul.f32 %v1109, %v1145
    %v1168 = vmul.f32 %v1111, %v1149
    %v1169 = vmul.f32 %v1113, %v1153
    %v1170 = vadd.f32 %v1005, %v1154
    %v1171 = vadd.f32 %v1006, %v1155
    %v1172 = vadd.f32 %v1007, %v1156
    %v1173 = vadd.f32 %v1008, %v1157
    %v1174 = vadd.f32 %v1009, %v1158
    %v1175 = vadd.f32 %v1010, %v1159
    %v1176 = vadd.f32 %v1011, %v1160
    %v1177 = vadd.f32 %v1012, %v1161
    %v1178 = vadd.f32 %v1013, %v1162
    %v1179 = vadd.f32 %v1014, %v1163
    %v1180 = vadd.f32 %v1015, %v1164
    %v1181 = vadd.f32 %v1016, %v1165
    %v1182 = vadd.f32 %v1017, %v1166
    %v1183 = vadd.f32 %v1018, %v1167
    %v1184 = vadd.f32 %v1019, %v1168
    %v1185 = vadd.f32 %v1020, %v1169
    %v1186 = vlaneseq
    %v1187 = vshrl.u32 %v1186, 7
    %v1188 = vsub.s32 5, %v1187
    %v1189 = vrot.slane %v462, %v1188
    %v1190 = vlaneseq
    %v1191 = vshrl.u32 %v1190, 7
    %v1192 = vsub.s32 5, %v1191
    %v1193 = vrot.slane %v463, %v1192
    %v1194 = vlaneseq
    %v1195 = vshrl.u32 %v1194, 7
    %v1196 = vsub.s32 5, %v1195
    %v1197 = vrot.slane %v464, %v1196
    %v1198 = vlaneseq
    %v1199 = vshrl.u32 %v1198, 7
    %v1200 = vsub.s32 5, %v1199
    %v1201 = vrot.slane %v465, %v1200
    %v1202 = vmul.f32 %v1054, %v1189
    %v1203 = vmul.f32 %v1055, %v1193
    %v1204 = vmul.f32 %v1056, %v1197
    %v1205 = vmul.f32 %v1082, %v1201
    %v1206 = vmul.f32 %v1057, %v1189
    %v1207 = vmul.f32 %v1058, %v1193
    %v1208 = vmul.f32 %v1059, %v1197
    %v1209 = vmul.f32 %v1083, %v1201
    %v1210 = vmul.f32 %v1060, %v1189
    %v1211 = vmul.f32 %v1061, %v1193
    %v1212 = vmul.f32 %v1062, %v1197
    %v1213 = vmul.f32 %v1084, %v1201
    %v1214 = vmul.f32 %v1063, %v1189
    %v1215 = vmul.f32 %v1064, %v1193
    %v1216 = vmul.f32 %v1065, %v1197
    %v1217 = vmul.f32 %v1085, %v1201
    %v1218 = vadd.f32 %v1170, %v1202
    %v1219 = vadd.f32 %v1171, %v1203
    %v1220 = vadd.f32 %v1172, %v1204
    %v1221 = vadd.f32 %v1173, %v1205
    %v1222 = vadd.f32 %v1174, %v1206
    %v1223 = vadd.f32 %v1175, %v1207
    %v1224 = vadd.f32 %v1176, %v1208
    %v1225 = vadd.f32 %v1177, %v1209
    %v1226 = vadd.f32 %v1178, %v1210
    %v1227 = vadd.f32 %v1179, %v1211
    %v1228 = vadd.f32 %v1180, %v1212
    %v1229 = vadd.f32 %v1181, %v1213
    %v1230 = vadd.f32 %v1182, %v1214
    %v1231 = vadd.f32 %v1183, %v1215
    %v1232 = vadd.f32 %v1184, %v1216
    %v1233 = vadd.f32 %v1185, %v1217
    %v1234 = vrot.slane %v1054, 1
    %v1235 = vrot.slane %v1057, 1
    %v1236 = vsel %vm732, %v1234, %v1235
    %v1237 = vrot.slane %v1055, 1
    %v1238 = vrot.slane %v1058, 1
    %v1239 = vsel %vm732, %v1237, %v1238
    %v1240 = vrot.slane %v1056, 1
    %v1241 = vrot.slane %v1059, 1
    %v1242 = vsel %vm732, %v1240, %v1241
    %v1243 = vrot.slane %v1082, 1
    %v1244 = vrot.slane %v1083, 1
    %v1245 = vsel %vm732, %v1243, %v1244
    %v1246 = vrot.slane %v1060, 1
    %v1247 = vrot.slane %v1063, 1
    %v1248 = vsel %vm732, %v1246, %v1247
    %v1249 = vrot.slane %v1061, 1
    %v1250 = vrot.slane %v1064, 1
    %v1251 = vsel %vm732, %v1249, %v1250
    %v1252 = vrot.slane %v1062, 1
    %v1253 = vrot.slane %v1065, 1
    %v1254 = vsel %vm732, %v1252, %v1253
    %v1255 = vrot.slane %v1084, 1
    %v1256 = vrot.slane %v1085, 1
    %v1257 = vsel %vm732, %v1255, %v1256
    %v1274 = vsel %vm732, %v1235, 0.0
    %v1275 = vsel %vm732, %v1238, 0.0
    %v1276 = vsel %vm732, %v1241, 0.0
    %v1277 = vsel %vm732, %v1244, 0.0
    %v1278 = vsel %vm732, %v1247, 0.0
    %v1279 = vsel %vm732, %v1250, 0.0
    %v1280 = vsel %vm732, %v1253, 0.0
    %v1281 = vsel %vm732, %v1256, 0.0
    %v1282 = vlaneseq
    %v1283 = vshrl.u32 %v1282, 7
    %v1284 = vsub.s32 0, %v1283
    %v1285 = vrot.slane %v466, %v1284
    %v1286 = vlaneseq
    %v1287 = vshrl.u32 %v1286, 7
    %v1288 = vsub.s32 0, %v1287
    %v1289 = vrot.slane %v467, %v1288
    %v1290 = vlaneseq
    %v1291 = vshrl.u32 %v1290, 7
    %v1292 = vsub.s32 0, %v1291
    %v1293 = vrot.slane %v468, %v1292
    %v1294 = vlaneseq
    %v1295 = vshrl.u32 %v1294, 7
    %v1296 = vsub.s32 0, %v1295
    %v1297 = vrot.slane %v469, %v1296
    %v1298 = vmul.f32 %v1236, %v1285
    %v1299 = vmul.f32 %v1239, %v1289
    %v1300 = vmul.f32 %v1242, %v1293
    %v1301 = vmul.f32 %v1245, %v1297
    %v1302 = vmul.f32 %v1274, %v1285
    %v1303 = vmul.f32 %v1275, %v1289
    %v1304 = vmul.f32 %v1276, %v1293
    %v1305 = vmul.f32 %v1277, %v1297
    %v1306 = vmul.f32 %v1248, %v1285
    %v1307 = vmul.f32 %v1251, %v1289
    %v1308 = vmul.f32 %v1254, %v1293
    %v1309 = vmul.f32 %v1257, %v1297
    %v1310 = vmul.f32 %v1278, %v1285
    %v1311 = vmul.f32 %v1279, %v1289
    %v1312 = vmul.f32 %v1280, %v1293
    %v1313 = vmul.f32 %v1281, %v1297
    %v1314 = vadd.f32 %v1218, %v1298
    %v1315 = vadd.f32 %v1219, %v1299
    %v1316 = vadd.f32 %v1220, %v1300
    %v1317 = vadd.f32 %v1221, %v1301
    %v1318 = vadd.f32 %v1222, %v1302
    %v1319 = vadd.f32 %v1223, %v1303
    %v1320 = vadd.f32 %v1224, %v1304
    %v1321 = vadd.f32 %v1225, %v1305
    %v1322 = vadd.f32 %v1226, %v1306
    %v1323 = vadd.f32 %v1227, %v1307
    %v1324 = vadd.f32 %v1228, %v1308
    %v1325 = vadd.f32 %v1229, %v1309
    %v1326 = vadd.f32 %v1230, %v1310
    %v1327 = vadd.f32 %v1231, %v1311
    %v1328 = vadd.f32 %v1232, %v1312
    %v1329 = vadd.f32 %v1233, %v1313
    %v1330 = vld [vmem:[%s4] sm:$0xf]
    %v1332 = vlaneseq
    %v1333 = vshrl.u32 %v1332, 7
    %v1334 = vsub.s32 0, %v1333
    %v1335 = vrot.slane %v1330, %v1334
    %v1336 = vlaneseq
    %v1337 = vshrl.u32 %v1336, 7
    %v1338 = vsub.s32 1, %v1337
    %v1339 = vrot.slane %v1330, %v1338
    %v1340 = vlaneseq
    %v1341 = vshrl.u32 %v1340, 7
    %v1342 = vsub.s32 2, %v1341
    %v1343 = vrot.slane %v1330, %v1342
    %v1344 = vlaneseq
    %v1345 = vshrl.u32 %v1344, 7
    %v1346 = vsub.s32 3, %v1345
    %v1347 = vrot.slane %v1330, %v1346
    %v1352 = vadd.f32 %v1314, %v1335
    %v1353 = vadd.f32 %v1315, %v1339
    %v1354 = vadd.f32 %v1316, %v1343
    %v1355 = vadd.f32 %v1317, %v1347
    %v1356 = vadd.f32 %v1318, %v1335
    %v1357 = vadd.f32 %v1319, %v1339
    %v1358 = vadd.f32 %v1320, %v1343
    %v1359 = vadd.f32 %v1321, %v1347
    %v1360 = vadd.f32 %v1322, %v1335
    %v1361 = vadd.f32 %v1323, %v1339
    %v1362 = vadd.f32 %v1324, %v1343
    %v1363 = vadd.f32 %v1325, %v1347
    %v1364 = vadd.f32 %v1326, %v1335
    %v1365 = vadd.f32 %v1327, %v1339
    %v1366 = vadd.f32 %v1328, %v1343
    %v1367 = vadd.f32 %v1329, %v1347
    %v1368 = vmax.f32 %v1352, 0.0
    %v1369 = vmax.f32 %v1353, 0.0
    %v1370 = vmax.f32 %v1354, 0.0
    %v1371 = vmax.f32 %v1355, 0.0
    %v1372 = vmax.f32 %v1356, 0.0
    %v1373 = vmax.f32 %v1357, 0.0
    %v1374 = vmax.f32 %v1358, 0.0
    %v1375 = vmax.f32 %v1359, 0.0
    %v1376 = vmax.f32 %v1360, 0.0
    %v1377 = vmax.f32 %v1361, 0.0
    %v1378 = vmax.f32 %v1362, 0.0
    %v1379 = vmax.f32 %v1363, 0.0
    %v1380 = vmax.f32 %v1364, 0.0
    %v1381 = vmax.f32 %v1365, 0.0
    %v1382 = vmax.f32 %v1366, 0.0
    %v1383 = vmax.f32 %v1367, 0.0
    %v1384 = vmin.f32 %v1368, 6.0
    %v1385 = vmin.f32 %v1369, 6.0
    %v1386 = vmin.f32 %v1370, 6.0
    %v1387 = vmin.f32 %v1371, 6.0
    %v1388 = vmin.f32 %v1372, 6.0
    %v1389 = vmin.f32 %v1373, 6.0
    %v1390 = vmin.f32 %v1374, 6.0
    %v1391 = vmin.f32 %v1375, 6.0
    %v1392 = vmin.f32 %v1376, 6.0
    %v1393 = vmin.f32 %v1377, 6.0
    %v1394 = vmin.f32 %v1378, 6.0
    %v1395 = vmin.f32 %v1379, 6.0
    %v1396 = vmin.f32 %v1380, 6.0
    %v1397 = vmin.f32 %v1381, 6.0
    %v1398 = vmin.f32 %v1382, 6.0
    %v1399 = vmin.f32 %v1383, 6.0
    %v1400 = vpack.c.bf16 %v1388, %v1384
    %v1401 = vpack.c.bf16 %v1389, %v1385
    %v1402 = vpack.c.bf16 %v1390, %v1386
    %v1403 = vpack.c.bf16 %v1391, %v1387
    %v1404 = vpack.c.bf16 %v1396, %v1392
    %v1405 = vpack.c.bf16 %v1397, %v1393
    %v1406 = vpack.c.bf16 %v1398, %v1394
    %v1407 = vpack.c.bf16 %v1399, %v1395
    %v1408 = vld [vmem:[#allocation10] sm:$0xf]
    %v1409 = vld [vmem:[#allocation10 + $0x4] sm:$0xf]
    %v1410 = vld [vmem:[#allocation10 + $0x8] sm:$0xf]
    %v1411 = vld [vmem:[#allocation10 + $0xc] sm:$0xf]
    %v1412 = vld [vmem:[#allocation10 + $0x10] sm:$0xf]
    %v1413 = vld [vmem:[#allocation10 + $0x14] sm:$0xf]
    %v1414 = vld [vmem:[#allocation10 + $0x18] sm:$0xf]
    %v1415 = vld [vmem:[#allocation10 + $0x1c] sm:$0xf]
    %v1416 = vld [vmem:[#allocation10 + $0x20] sm:$0xf]
    %v1417 = vld [vmem:[#allocation10 + $0x24] sm:$0xf]
    %v1418 = vld [vmem:[#allocation10 + $0x28] sm:$0xf]
    %v1419 = vld [vmem:[#allocation10 + $0x2c] sm:$0xf]
    %v1420 = vld [vmem:[#allocation10 + $0x30] sm:$0xf]
    %v1421 = vld [vmem:[#allocation10 + $0x34] sm:$0xf]
    %v1422 = vld [vmem:[#allocation10 + $0x38] sm:$0xf]
    %v1423 = vld [vmem:[#allocation10 + $0x3c] sm:$0xf]
    %v1424 = vld [vmem:[#allocation10 + $0x40] sm:$0xf]
    %v1425 = vld [vmem:[#allocation10 + $0x44] sm:$0xf]
    %v1426 = vld [vmem:[#allocation10 + $0x48] sm:$0xf]
    %v1427 = vld [vmem:[#allocation10 + $0x4c] sm:$0xf]
    %v1428 = vld [vmem:[#allocation10 + $0x50] sm:$0xf]
    %v1429 = vld [vmem:[#allocation10 + $0x54] sm:$0xf]
    %v1430 = vld [vmem:[#allocation10 + $0x58] sm:$0xf]
    %v1431 = vld [vmem:[#allocation10 + $0x5c] sm:$0xf]
    %v1432 = vld [vmem:[#allocation10 + $0x60] sm:$0xf]
    %v1433 = vld [vmem:[#allocation10 + $0x64] sm:$0xf]
    %v1434 = vld [vmem:[#allocation10 + $0x68] sm:$0xf]
    %v1435 = vld [vmem:[#allocation10 + $0x6c] sm:$0xf]
    %v1436 = vld [vmem:[#allocation10 + $0x70] sm:$0xf]
    %v1437 = vld [vmem:[#allocation10 + $0x74] sm:$0xf]
    %v1438 = vld [vmem:[#allocation10 + $0x78] sm:$0xf]
    %v1439 = vld [vmem:[#allocation10 + $0x7c] sm:$0xf]
    %v1440 = vld [vmem:[#allocation10 + $0x80] sm:$0xf]
    %v1441 = vld [vmem:[#allocation10 + $0x84] sm:$0xf]
    %v1442 = vld [vmem:[#allocation10 + $0x88] sm:$0xf]
    %v1443 = vld [vmem:[#allocation10 + $0x8c] sm:$0xf]
    %v1444 = vld [vmem:[#allocation10 + $0x90] sm:$0xf]
    %v1445 = vld [vmem:[#allocation10 + $0x94] sm:$0xf]
    %v1446 = vld [vmem:[#allocation10 + $0x98] sm:$0xf]
    %v1447 = vld [vmem:[#allocation10 + $0x9c] sm:$0xf]
    %v1448 = vld [vmem:[#allocation10 + $0xa0] sm:$0xf]
    %v1449 = vld [vmem:[#allocation10 + $0xa4] sm:$0xf]
    %v1450 = vld [vmem:[#allocation10 + $0xa8] sm:$0xf]
    %v1451 = vld [vmem:[#allocation10 + $0xac] sm:$0xf]
    %v1452 = vld [vmem:[#allocation10 + $0xb0] sm:$0xf]
    %v1453 = vld [vmem:[#allocation10 + $0xb4] sm:$0xf]
    %v1454 = vld [vmem:[#allocation10 + $0xb8] sm:$0xf]
    %v1455 = vld [vmem:[#allocation10 + $0xbc] sm:$0xf]
    %v1456 = vld [vmem:[#allocation10 + $0xc0] sm:$0xf]
    %v1457 = vld [vmem:[#allocation10 + $0xc4] sm:$0xf]
    %v1458 = vld [vmem:[#allocation10 + $0xc8] sm:$0xf]
    %v1459 = vld [vmem:[#allocation10 + $0xcc] sm:$0xf]
    %v1460 = vld [vmem:[#allocation10 + $0xd0] sm:$0xf]
    %v1461 = vld [vmem:[#allocation10 + $0xd4] sm:$0xf]
    %v1462 = vld [vmem:[#allocation10 + $0xd8] sm:$0xf]
    %v1463 = vld [vmem:[#allocation10 + $0xdc] sm:$0xf]
    %v1464 = vld [vmem:[#allocation10 + $0xe0] sm:$0xf]
    %v1465 = vld [vmem:[#allocation10 + $0xe4] sm:$0xf]
    %v1466 = vld [vmem:[#allocation10 + $0xe8] sm:$0xf]
    %v1467 = vld [vmem:[#allocation10 + $0xec] sm:$0xf]
    %v1468 = vld [vmem:[#allocation10 + $0xf0] sm:$0xf]
    %v1469 = vld [vmem:[#allocation10 + $0xf4] sm:$0xf]
    %v1470 = vld [vmem:[#allocation10 + $0xf8] sm:$0xf]
    %v1471 = vld [vmem:[#allocation10 + $0xfc] sm:$0xf]
    %v1472 = vld [vmem:[%s6] sm:$0x1]
    %v1474 = vlaneseq
    %v1475 = vshrl.u32 %v1474, 7
    %v1476 = vsub.s32 0, %v1475
    %v1477 = vrot.slane %v1472, %v1476
    %v1543 = vunpack.c.l.b16 %v1408
    %v1544 = vunpack.c.l.b16 %v1409
    %v1545 = vunpack.c.l.b16 %v1410
    %v1546 = vunpack.c.l.b16 %v1411
    %v1547 = vunpack.c.l.b16 %v1412
    %v1548 = vunpack.c.l.b16 %v1413
    %v1549 = vunpack.c.l.b16 %v1414
    %v1550 = vunpack.c.l.b16 %v1415
    %v1551 = vunpack.c.l.b16 %v1416
    %v1552 = vunpack.c.l.b16 %v1417
    %v1553 = vunpack.c.l.b16 %v1418
    %v1554 = vunpack.c.l.b16 %v1419
    %v1555 = vunpack.c.l.b16 %v1420
    %v1556 = vunpack.c.l.b16 %v1421
    %v1557 = vunpack.c.l.b16 %v1422
    %v1558 = vunpack.c.l.b16 %v1423
    %v1559 = vunpack.c.l.b16 %v1424
    %v1560 = vunpack.c.l.b16 %v1425
    %v1561 = vunpack.c.l.b16 %v1426
    %v1562 = vunpack.c.l.b16 %v1427
    %v1563 = vunpack.c.l.b16 %v1428
    %v1564 = vunpack.c.l.b16 %v1429
    %v1565 = vunpack.c.l.b16 %v1430
    %v1566 = vunpack.c.l.b16 %v1431
    %v1567 = vunpack.c.l.b16 %v1432
    %v1568 = vunpack.c.l.b16 %v1433
    %v1569 = vunpack.c.l.b16 %v1434
    %v1570 = vunpack.c.l.b16 %v1435
    %v1571 = vunpack.c.l.b16 %v1436
    %v1572 = vunpack.c.l.b16 %v1437
    %v1573 = vunpack.c.l.b16 %v1438
    %v1574 = vunpack.c.l.b16 %v1439
    %v1575 = vunpack.c.l.b16 %v1440
    %v1576 = vunpack.c.l.b16 %v1441
    %v1577 = vunpack.c.l.b16 %v1442
    %v1578 = vunpack.c.l.b16 %v1443
    %v1579 = vunpack.c.l.b16 %v1444
    %v1580 = vunpack.c.l.b16 %v1445
    %v1581 = vunpack.c.l.b16 %v1446
    %v1582 = vunpack.c.l.b16 %v1447
    %v1583 = vunpack.c.l.b16 %v1448
    %v1584 = vunpack.c.l.b16 %v1449
    %v1585 = vunpack.c.l.b16 %v1450
    %v1586 = vunpack.c.l.b16 %v1451
    %v1587 = vunpack.c.l.b16 %v1452
    %v1588 = vunpack.c.l.b16 %v1453
    %v1589 = vunpack.c.l.b16 %v1454
    %v1590 = vunpack.c.l.b16 %v1455
    %v1591 = vunpack.c.l.b16 %v1456
    %v1592 = vunpack.c.l.b16 %v1457
    %v1593 = vunpack.c.l.b16 %v1458
    %v1594 = vunpack.c.l.b16 %v1459
    %v1595 = vunpack.c.l.b16 %v1460
    %v1596 = vunpack.c.l.b16 %v1461
    %v1597 = vunpack.c.l.b16 %v1462
    %v1598 = vunpack.c.l.b16 %v1463
    %v1599 = vunpack.c.l.b16 %v1464
    %v1600 = vunpack.c.l.b16 %v1465
    %v1601 = vunpack.c.l.b16 %v1466
    %v1602 = vunpack.c.l.b16 %v1467
    %v1603 = vunpack.c.l.b16 %v1468
    %v1604 = vunpack.c.l.b16 %v1469
    %v1605 = vunpack.c.l.b16 %v1470
    %v1606 = vunpack.c.l.b16 %v1471
    %v1607 = vpack.c.b16 %v1544, %v1543
    %v1608 = vpack.c.b16 %v1546, %v1545
    %v1609 = vpack.c.b16 %v1548, %v1547
    %v1610 = vpack.c.b16 %v1550, %v1549
    %v1611 = vpack.c.b16 %v1552, %v1551
    %v1612 = vpack.c.b16 %v1554, %v1553
    %v1613 = vpack.c.b16 %v1556, %v1555
    %v1614 = vpack.c.b16 %v1558, %v1557
    %v1615 = vpack.c.b16 %v1560, %v1559
    %v1616 = vpack.c.b16 %v1562, %v1561
    %v1617 = vpack.c.b16 %v1564, %v1563
    %v1618 = vpack.c.b16 %v1566, %v1565
    %v1619 = vpack.c.b16 %v1568, %v1567
    %v1620 = vpack.c.b16 %v1570, %v1569
    %v1621 = vpack.c.b16 %v1572, %v1571
    %v1622 = vpack.c.b16 %v1574, %v1573
    %v1623 = vpack.c.b16 %v1576, %v1575
    %v1624 = vpack.c.b16 %v1578, %v1577
    %v1625 = vpack.c.b16 %v1580, %v1579
    %v1626 = vpack.c.b16 %v1582, %v1581
    %v1627 = vpack.c.b16 %v1584, %v1583
    %v1628 = vpack.c.b16 %v1586, %v1585
    %v1629 = vpack.c.b16 %v1588, %v1587
    %v1630 = vpack.c.b16 %v1590, %v1589
    %v1631 = vpack.c.b16 %v1592, %v1591
    %v1632 = vpack.c.b16 %v1594, %v1593
    %v1633 = vpack.c.b16 %v1596, %v1595
    %v1634 = vpack.c.b16 %v1598, %v1597
    %v1635 = vpack.c.b16 %v1600, %v1599
    %v1636 = vpack.c.b16 %v1602, %v1601
    %v1637 = vpack.c.b16 %v1604, %v1603
    %v1638 = vpack.c.b16 %v1606, %v1605
    %1671 = vmatprep.subr.bf16.mxu0 0
    %1672 = vmatpush1.bf16.msra.mxu0 %v1614
    %1673 = vmatprep.subr.bf16.mxu0 0
    %1674 = vmatpush1.bf16.msra.mxu0 %v1613
    %1675 = vmatprep.subr.bf16.mxu0 0
    %1676 = vmatpush1.bf16.msra.mxu0 %v1612
    %1677 = vmatprep.subr.bf16.mxu0 0
    %1678 = vmatpush1.bf16.msra.mxu0 %v1611
    %1679 = vmatprep.subr.bf16.mxu0 0
    %1680 = vmatpush1.bf16.msra.mxu0 %v1610
    %1681 = vmatprep.subr.bf16.mxu0 0
    %1682 = vmatpush1.bf16.msra.mxu0 %v1609
    %1683 = vmatprep.subr.bf16.mxu0 0
    %1684 = vmatpush1.bf16.msra.mxu0 %v1608
    %1685 = vmatprep.subr.bf16.mxu0 0
    %1686 = vmatpush1.bf16.msra.mxu0 %v1607
    %1687 = vmatprep.subr.bf16.mxu0 0
    %1688 = vmatpush2.bf16.msra.mxu0 %v1622
    %1689 = vmatprep.subr.bf16.mxu0 0
    %1690 = vmatpush2.bf16.msra.mxu0 %v1621
    %1691 = vmatprep.subr.bf16.mxu0 0
    %1692 = vmatpush2.bf16.msra.mxu0 %v1620
    %1693 = vmatprep.subr.bf16.mxu0 0
    %1694 = vmatpush2.bf16.msra.mxu0 %v1619
    %1695 = vmatprep.subr.bf16.mxu0 0
    %1696 = vmatpush2.bf16.msra.mxu0 %v1618
    %1697 = vmatprep.subr.bf16.mxu0 0
    %1698 = vmatpush2.bf16.msra.mxu0 %v1617
    %1699 = vmatprep.subr.bf16.mxu0 0
    %1700 = vmatpush2.bf16.msra.mxu0 %v1616
    %1701 = vmatprep.subr.bf16.mxu0 0
    %1702 = vmatpush2.bf16.msra.mxu0 %v1615
    %1703 = vmatprep.mubr.bf16.mxu0 %v1401
    %1704 = vmatmul.mubr.bf16.gmra.mxu0 %v1400
    %v1705 = vpop.f32.mrf.mxu0
    %v1706 = vadd.f32 %v1477, %v1705
    %v1707 = vpop.f32.mrf.mxu0
    %v1708 = vpop.f32.mrf.mxu0
    %v1709 = vadd.f32 %v1477, %v1708
    %v1710 = vpop.f32.mrf.mxu0
    %1711 = vmatprep.mubr.bf16.mxu0 %v1405
    %1712 = vmatmul.mubr.bf16.gmra.mxu0 %v1404
    %v1713 = vpop.f32.mrf.mxu0
    %v1714 = vadd.f32 %v1477, %v1713
    %v1715 = vpop.f32.mrf.mxu0
    %v1716 = vpop.f32.mrf.mxu0
    %v1717 = vadd.f32 %v1477, %v1716
    %v1718 = vpop.f32.mrf.mxu0
    %1719 = vdwg.mxu0
    %1720 = vmatprep.subr.bf16.mxu0 0
    %1721 = vmatpush1.bf16.msra.mxu0 %v1630
    %1722 = vmatprep.subr.bf16.mxu0 0
    %1723 = vmatpush1.bf16.msra.mxu0 %v1629
    %1724 = vmatprep.subr.bf16.mxu0 0
    %1725 = vmatpush1.bf16.msra.mxu0 %v1628
    %1726 = vmatprep.subr.bf16.mxu0 0
    %1727 = vmatpush1.bf16.msra.mxu0 %v1627
    %1728 = vmatprep.subr.bf16.mxu0 0
    %1729 = vmatpush1.bf16.msra.mxu0 %v1626
    %1730 = vmatprep.subr.bf16.mxu0 0
    %1731 = vmatpush1.bf16.msra.mxu0 %v1625
    %1732 = vmatprep.subr.bf16.mxu0 0
    %1733 = vmatpush1.bf16.msra.mxu0 %v1624
    %1734 = vmatprep.subr.bf16.mxu0 0
    %1735 = vmatpush1.bf16.msra.mxu0 %v1623
    %1736 = vmatprep.subr.bf16.mxu0 0
    %1737 = vmatpush2.bf16.msra.mxu0 %v1638
    %1738 = vmatprep.subr.bf16.mxu0 0
    %1739 = vmatpush2.bf16.msra.mxu0 %v1637
    %1740 = vmatprep.subr.bf16.mxu0 0
    %1741 = vmatpush2.bf16.msra.mxu0 %v1636
    %1742 = vmatprep.subr.bf16.mxu0 0
    %1743 = vmatpush2.bf16.msra.mxu0 %v1635
    %1744 = vmatprep.subr.bf16.mxu0 0
    %1745 = vmatpush2.bf16.msra.mxu0 %v1634
    %1746 = vmatprep.subr.bf16.mxu0 0
    %1747 = vmatpush2.bf16.msra.mxu0 %v1633
    %1748 = vmatprep.subr.bf16.mxu0 0
    %1749 = vmatpush2.bf16.msra.mxu0 %v1632
    %1750 = vmatprep.subr.bf16.mxu0 0
    %1751 = vmatpush2.bf16.msra.mxu0 %v1631
    %1752 = vmatprep.mubr.bf16.mxu0 %v1403
    %1753 = vmatmul.mubr.bf16.gmra.mxu0 %v1402
    %v1754 = vpop.f32.mrf.mxu0
    %v1755 = vadd.f32 %v1706, %v1754
    %v1756 = vpop.f32.mrf.mxu0
    %v1757 = vpop.f32.mrf.mxu0
    %v1758 = vadd.f32 %v1709, %v1757
    %v1759 = vpop.f32.mrf.mxu0
    %1760 = vmatprep.mubr.bf16.mxu0 %v1407
    %1761 = vmatmul.mubr.bf16.gmra.mxu0 %v1406
    %v1762 = vpop.f32.mrf.mxu0
    %v1763 = vadd.f32 %v1714, %v1762
    %v1764 = vpop.f32.mrf.mxu0
    %v1765 = vpop.f32.mrf.mxu0
    %v1766 = vadd.f32 %v1717, %v1765
    %v1767 = vpop.f32.mrf.mxu0
    %1768 = vdwg.mxu0
    %v1769 = vunpack.c.l.bf16 %v94
    %v1770 = vunpack.c.l.bf16 %v95
    %v1771 = vunpack.c.l.bf16 %v96
    %v1772 = vunpack.c.l.bf16 %v97
    %v1773 = vadd.f32 %v1755, %v1769
    %v1774 = vadd.f32 %v1758, %v1770
    %v1775 = vadd.f32 %v1763, %v1771
    %v1776 = vadd.f32 %v1766, %v1772
    %1777 = vst [vmem:[#allocation11] sm:$0xff] %v1773
    %1778 = vst [vmem:[#allocation11 + $0x8] sm:$0xff] %v1774
    %1779 = vst [vmem:[#allocation11 + $0x10] sm:$0xff] %v1775
    %1780 = vst [vmem:[#allocation11 + $0x18] sm:$0xff] %v1776
    // Predicated region
    $region50: #{tpu_custom_call.1} parent=1 // pred_check
      _
    $region51: #{tpu_custom_call.1} parent=1 // pred_check_branch
      %1782 = sbr.rel (0) target = $region53
    $region52: #{tpu_custom_call.1} parent=1 // pred_region
      %s1784 = ssub.s32 512, 512
      %1785 = vsyncadd [#allocation4], %s1784
      %s1786 = sshll.u32 [#allocation11], 4
      %s1787 = int_to_ptr.vmem [resolvable:$true] %s1786
      %1792 = dma.vmem_to_hbm [thread:$0]  %s1787, 512, %s7, [#allocation4], 128, 128, 8
    $region53: #{tpu_custom_call.1} parent=1 // pred_fallthru
      _
    // Predicated region
    $region54: #{tpu_custom_call.1} parent=1 // pred_check
      _
    $region55: #{tpu_custom_call.1} parent=1 // pred_check_branch
      %1794 = sbr.rel (0) target = $region57
    $region56: #{tpu_custom_call.1} parent=1 // pred_region
      %1795 = dma.done [#allocation4], 512
    $region57: #{tpu_custom_call.1} parent=1 // pred_fallthru
      _
    %1796 = vsyncpa [#allocation3], 1
    %1797 = vsyncpa [#allocation6], 1
    %1798 = vsyncpa [#allocation9], 1
    %1799 = vsyncpa [#allocation4], 1

// kernel: tpu_custom_call.1
$region0: #{tpu_custom_call.1}
  #allocation0 [shape = 'u32[]', space=smem, size = 0x4, offset = 0x4, fixed_abs, tag = 'smem constant byte address 0x4 - core index']
  #allocation1 [shape = 'u32[144,128]{1,0:T(1,128)}', space=vmem, size = 0x12000, scoped, tag = 'internal scratch']
  %s0 = inlined_call_operand.hbm [shape: bf16[2,16,128], index: 0, kind: input, shape index: {}]
  %s1 = inlined_call_operand.hbm [shape: bf16[128,512], index: 1, kind: input, shape index: {}]
  %s2 = inlined_call_operand.hbm [shape: f32[1,512], index: 2, kind: input, shape index: {}]
  %s3 = inlined_call_operand.hbm [shape: f32[9,512], index: 3, kind: input, shape index: {}]
  %s4 = inlined_call_operand.vmem [shape: f32[1,512], index: 4, kind: input, shape index: {}]
  %s5 = inlined_call_operand.hbm [shape: bf16[512,128], index: 5, kind: input, shape index: {}]
  %s6 = inlined_call_operand.vmem [shape: f32[1,128], index: 6, kind: input, shape index: {}]
  %s7 = inlined_call_operand.hbm [shape: f32[2,16,128], index: 7, kind: output, shape index: {}]
  %s8 = sld [smem:[#allocation0]]
  $region58: #{tpu_custom_call.1} parent=0
    _
  %s10 = ssub.s32 1, %s8
  %s11 = scalar_select 0, %s10, %s8
  $region1: #{tpu_custom_call.1} parent=0
    #allocation2 [shape = 'u8[8192]{0}', space=vmem, size = 0x2000, scoped, tag = 'input window, operand 0, single buffered']
    #allocation3 [shape = 's32[1]{0}', space=sflag, size = 0x4, scoped, tag = 'scoped memory for tpu_custom_call.1']
    #allocation4 [shape = 's32[1]{0}', space=sflag, size = 0x4, scoped, tag = 'scoped memory for tpu_custom_call.1']
    #allocation5 [shape = 'u8[131072]{0}', space=vmem, size = 0x20000, scoped, tag = 'input window, operand 1, single buffered']
    #allocation6 [shape = 's32[1]{0}', space=sflag, size = 0x4, scoped, tag = 'scoped memory for tpu_custom_call.1']
    #allocation7 [shape = 'u8[2048]{0}', space=vmem, size = 0x800, scoped, tag = 'input window, operand 2, single buffered']
    #allocation8 [shape = 'u8[32768]{0}', space=vmem, size = 0x8000, scoped, tag = 'input window, operand 3, single buffered']
    #allocation9 [shape = 's32[1]{0}', space=sflag, size = 0x4, scoped, tag = 'scoped memory for tpu_custom_call.1']
    #allocation10 [shape = 'u8[131072]{0}', space=vmem, size = 0x20000, scoped, tag = 'input window, operand 5, single buffered']
    #allocation11 [shape = 'u8[16384]{0}', space=vmem, size = 0x4000, scoped, tag = 'output window, operand 0, single buffered']
    %12 = vsyncpa [#allocation3], 0
    %13 = vsyncpa [#allocation6], 0
    %14 = vsyncpa [#allocation9], 0
    %15 = vsyncpa [#allocation4], 0
    // Predicated region
    $region2: #{tpu_custom_call.1} parent=1 // pred_check
      _
    $region3: #{tpu_custom_call.1} parent=1 // pred_check_branch
      %17 = sbr.rel (0) target = $region5
    $region4: #{tpu_custom_call.1} parent=1 // pred_region
      %s19 = ssub.s32 256, 256
      %20 = vsyncadd [#allocation3], %s19
      %s21 = sshll.u32 [#allocation2], 4
      %s22 = int_to_ptr.vmem [resolvable:$true] %s21
      %27 = dma.hbm_to_vmem [thread:$0]  %s0, 256, %s22, [#allocation3], 64, 64, 4
    $region5: #{tpu_custom_call.1} parent=1 // pred_fallthru
      _
    // Predicated region
    $region6: #{tpu_custom_call.1} parent=1 // pred_check
      _
    $region7: #{tpu_custom_call.1} parent=1 // pred_check_branch
      %29 = sbr.rel (0) target = $region9
    $region8: #{tpu_custom_call.1} parent=1 // pred_region
      %s31 = ssub.s32 4096, 4096
      %32 = vsyncadd [#allocation6], %s31
      %s33 = sshll.u32 [#allocation5], 4
      %s34 = int_to_ptr.vmem [resolvable:$true] %s33
      %39 = dma.hbm_to_vmem [thread:$0]  %s1, 4096, %s34, [#allocation6], 256, 256, 16
    $region9: #{tpu_custom_call.1} parent=1 // pred_fallthru
      _
    // Predicated region
    $region10: #{tpu_custom_call.1} parent=1 // pred_check
      _
    $region11: #{tpu_custom_call.1} parent=1 // pred_check_branch
      %41 = sbr.rel (0) target = $region13
    $region12: #{tpu_custom_call.1} parent=1 // pred_region
      %s43 = ssub.s32 64, 64
      %44 = vsyncadd [#allocation6], %s43
      %s46 = sshll.u32 [#allocation7], 4
      %s47 = int_to_ptr.vmem [resolvable:$true] %s46
      %49 = dma.hbm_to_vmem [thread:$0]  %s2, 64, %s47, [#allocation6]
    $region13: #{tpu_custom_call.1} parent=1 // pred_fallthru
      _
    // Predicated region
    $region14: #{tpu_custom_call.1} parent=1 // pred_check
      _
    $region15: #{tpu_custom_call.1} parent=1 // pred_check_branch
      %51 = sbr.rel (0) target = $region17
    $region16: #{tpu_custom_call.1} parent=1 // pred_region
      %s53 = ssub.s32 1024, 1024
      %54 = vsyncadd [#allocation9], %s53
      %s55 = sshll.u32 [#allocation8], 4
      %s56 = int_to_ptr.vmem [resolvable:$true] %s55
      %61 = dma.hbm_to_vmem [thread:$0]  %s3, 1024, %s56, [#allocation9], 512, 512, 32
    $region17: #{tpu_custom_call.1} parent=1 // pred_fallthru
      _
    // Predicated region
    $region18: #{tpu_custom_call.1} parent=1 // pred_check
      _
    $region19: #{tpu_custom_call.1} parent=1 // pred_check_branch
      %63 = sbr.rel (0) target = $region21
    $region20: #{tpu_custom_call.1} parent=1 // pred_region
      _
    $region21: #{tpu_custom_call.1} parent=1 // pred_fallthru
      _
    // Predicated region
    $region22: #{tpu_custom_call.1} parent=1 // pred_check
      _
    $region23: #{tpu_custom_call.1} parent=1 // pred_check_branch
      %65 = sbr.rel (0) target = $region25
    $region24: #{tpu_custom_call.1} parent=1 // pred_region
      %s67 = ssub.s32 4096, 4096
      %68 = vsyncadd [#allocation9], %s67
      %s69 = sshll.u32 [#allocation10], 4
      %s70 = int_to_ptr.vmem [resolvable:$true] %s69
      %75 = dma.hbm_to_vmem [thread:$0]  %s5, 4096, %s70, [#allocation9], 64, 64, 4
    $region25: #{tpu_custom_call.1} parent=1 // pred_fallthru
      _
    // Predicated region
    $region26: #{tpu_custom_call.1} parent=1 // pred_check
      _
    $region27: #{tpu_custom_call.1} parent=1 // pred_check_branch
      %77 = sbr.rel (0) target = $region29
    $region28: #{tpu_custom_call.1} parent=1 // pred_region
      _
    $region29: #{tpu_custom_call.1} parent=1 // pred_fallthru
      _
    // Predicated region
    $region30: #{tpu_custom_call.1} parent=1 // pred_check
      _
    $region31: #{tpu_custom_call.1} parent=1 // pred_check_branch
      %79 = sbr.rel (0) target = $region33
    $region32: #{tpu_custom_call.1} parent=1 // pred_region
      %80 = dma.done [#allocation3], 256
    $region33: #{tpu_custom_call.1} parent=1 // pred_fallthru
      _
    // Predicated region
    $region34: #{tpu_custom_call.1} parent=1 // pred_check
      _
    $region35: #{tpu_custom_call.1} parent=1 // pred_check_branch
      %82 = sbr.rel (0) target = $region37
    $region36: #{tpu_custom_call.1} parent=1 // pred_region
      %83 = dma.done [#allocation6], 4096
    $region37: #{tpu_custom_call.1} parent=1 // pred_fallthru
      _
    // Predicated region
    $region38: #{tpu_custom_call.1} parent=1 // pred_check
      _
    $region39: #{tpu_custom_call.1} parent=1 // pred_check_branch
      %85 = sbr.rel (0) target = $region41
    $region40: #{tpu_custom_call.1} parent=1 // pred_region
      %86 = dma.done [#allocation6], 64
    $region41: #{tpu_custom_call.1} parent=1 // pred_fallthru
      _
    // Predicated region
    $region42: #{tpu_custom_call.1} parent=1 // pred_check
      _
    $region43: #{tpu_custom_call.1} parent=1 // pred_check_branch
      %88 = sbr.rel (0) target = $region45
    $region44: #{tpu_custom_call.1} parent=1 // pred_region
      %89 = dma.done [#allocation9], 1024
    $region45: #{tpu_custom_call.1} parent=1 // pred_fallthru
      _
    // Predicated region
    $region46: #{tpu_custom_call.1} parent=1 // pred_check
      _
    $region47: #{tpu_custom_call.1} parent=1 // pred_check_branch
      %91 = sbr.rel (0) target = $region49
    $region48: #{tpu_custom_call.1} parent=1 // pred_region
      %92 = dma.done [#allocation9], 4096
    $region49: #{tpu_custom_call.1} parent=1 // pred_fallthru
      _
    %v94 = vld [vmem:[#allocation2] sm:$0xf]
    %v95 = vld [vmem:[#allocation2 + $0x4] sm:$0xf]
    %v96 = vld [vmem:[#allocation2 + $0x8] sm:$0xf]
    %v97 = vld [vmem:[#allocation2 + $0xc] sm:$0xf]
    %v98 = vld [vmem:[#allocation5] sm:$0xff]
    %v99 = vld [vmem:[#allocation5 + $0x8] sm:$0xff]
    %v100 = vld [vmem:[#allocation5 + $0x10] sm:$0xff]
    %v101 = vld [vmem:[#allocation5 + $0x18] sm:$0xff]
    %v102 = vld [vmem:[#allocation5 + $0x20] sm:$0xff]
    %v103 = vld [vmem:[#allocation5 + $0x28] sm:$0xff]
    %v104 = vld [vmem:[#allocation5 + $0x30] sm:$0xff]
    %v105 = vld [vmem:[#allocation5 + $0x38] sm:$0xff]
    %v106 = vld [vmem:[#allocation5 + $0x40] sm:$0xff]
    %v107 = vld [vmem:[#allocation5 + $0x48] sm:$0xff]
    %v108 = vld [vmem:[#allocation5 + $0x50] sm:$0xff]
    %v109 = vld [vmem:[#allocation5 + $0x58] sm:$0xff]
    %v110 = vld [vmem:[#allocation5 + $0x60] sm:$0xff]
    %v111 = vld [vmem:[#allocation5 + $0x68] sm:$0xff]
    %v112 = vld [vmem:[#allocation5 + $0x70] sm:$0xff]
    %v113 = vld [vmem:[#allocation5 + $0x78] sm:$0xff]
    %v114 = vld [vmem:[#allocation5 + $0x80] sm:$0xff]
    %v115 = vld [vmem:[#allocation5 + $0x88] sm:$0xff]
    %v116 = vld [vmem:[#allocation5 + $0x90] sm:$0xff]
    %v117 = vld [vmem:[#allocation5 + $0x98] sm:$0xff]
    %v118 = vld [vmem:[#allocation5 + $0xa0] sm:$0xff]
    %v119 = vld [vmem:[#allocation5 + $0xa8] sm:$0xff]
    %v120 = vld [vmem:[#allocation5 + $0xb0] sm:$0xff]
    %v121 = vld [vmem:[#allocation5 + $0xb8] sm:$0xff]
    %v122 = vld [vmem:[#allocation5 + $0xc0] sm:$0xff]
    %v123 = vld [vmem:[#allocation5 + $0xc8] sm:$0xff]
    %v124 = vld [vmem:[#allocation5 + $0xd0] sm:$0xff]
    %v125 = vld [vmem:[#allocation5 + $0xd8] sm:$0xff]
    %v126 = vld [vmem:[#allocation5 + $0xe0] sm:$0xff]
    %v127 = vld [vmem:[#allocation5 + $0xe8] sm:$0xff]
    %v128 = vld [vmem:[#allocation5 + $0xf0] sm:$0xff]
    %v129 = vld [vmem:[#allocation5 + $0xf8] sm:$0xff]
    %v130 = vld [vmem:[#allocation7] sm:$0xf]
    %v132 = vlaneseq
    %v133 = vshrl.u32 %v132, 7
    %v134 = vsub.s32 0, %v133
    %v135 = vrot.slane %v130, %v134
    %v136 = vlaneseq
    %v137 = vshrl.u32 %v136, 7
    %v138 = vsub.s32 1, %v137
    %v139 = vrot.slane %v130, %v138
    %v140 = vlaneseq
    %v141 = vshrl.u32 %v140, 7
    %v142 = vsub.s32 2, %v141
    %v143 = vrot.slane %v130, %v142
    %v144 = vlaneseq
    %v145 = vshrl.u32 %v144, 7
    %v146 = vsub.s32 3, %v145
    %v147 = vrot.slane %v130, %v146
    %v156 = vunpack.c.l.b16 %v94
    %v157 = vunpack.c.l.b16 %v95
    %v158 = vunpack.c.l.b16 %v96
    %v159 = vunpack.c.l.b16 %v97
    %v160 = vpack.c.b16 %v157, %v156
    %v161 = vpack.c.b16 %v159, %v158
    %v196 = vunpack.c.l.b16 %v98
    %v197 = vunpack.c.h.b16 %v98
    %v198 = vunpack.c.l.b16 %v99
    %v199 = vunpack.c.h.b16 %v99
    %v200 = vunpack.c.l.b16 %v100
    %v201 = vunpack.c.h.b16 %v100
    %v202 = vunpack.c.l.b16 %v101
    %v203 = vunpack.c.h.b16 %v101
    %v204 = vunpack.c.l.b16 %v102
    %v205 = vunpack.c.h.b16 %v102
    %v206 = vunpack.c.l.b16 %v103
    %v207 = vunpack.c.h.b16 %v103
    %v208 = vunpack.c.l.b16 %v104
    %v209 = vunpack.c.h.b16 %v104
    %v210 = vunpack.c.l.b16 %v105
    %v211 = vunpack.c.h.b16 %v105
    %v212 = vunpack.c.l.b16 %v106
    %v213 = vunpack.c.h.b16 %v106
    %v214 = vunpack.c.l.b16 %v107
    %v215 = vunpack.c.h.b16 %v107
    %v216 = vunpack.c.l.b16 %v108
    %v217 = vunpack.c.h.b16 %v108
    %v218 = vunpack.c.l.b16 %v109
    %v219 = vunpack.c.h.b16 %v109
    %v220 = vunpack.c.l.b16 %v110
    %v221 = vunpack.c.h.b16 %v110
    %v222 = vunpack.c.l.b16 %v111
    %v223 = vunpack.c.h.b16 %v111
    %v224 = vunpack.c.l.b16 %v112
    %v225 = vunpack.c.h.b16 %v112
    %v226 = vunpack.c.l.b16 %v113
    %v227 = vunpack.c.h.b16 %v113
    %v228 = vunpack.c.l.b16 %v114
    %v229 = vunpack.c.h.b16 %v114
    %v230 = vunpack.c.l.b16 %v115
    %v231 = vunpack.c.h.b16 %v115
    %v232 = vunpack.c.l.b16 %v116
    %v233 = vunpack.c.h.b16 %v116
    %v234 = vunpack.c.l.b16 %v117
    %v235 = vunpack.c.h.b16 %v117
    %v236 = vunpack.c.l.b16 %v118
    %v237 = vunpack.c.h.b16 %v118
    %v238 = vunpack.c.l.b16 %v119
    %v239 = vunpack.c.h.b16 %v119
    %v240 = vunpack.c.l.b16 %v120
    %v241 = vunpack.c.h.b16 %v120
    %v242 = vunpack.c.l.b16 %v121
    %v243 = vunpack.c.h.b16 %v121
    %v244 = vunpack.c.l.b16 %v122
    %v245 = vunpack.c.h.b16 %v122
    %v246 = vunpack.c.l.b16 %v123
    %v247 = vunpack.c.h.b16 %v123
    %v248 = vunpack.c.l.b16 %v124
    %v249 = vunpack.c.h.b16 %v124
    %v250 = vunpack.c.l.b16 %v125
    %v251 = vunpack.c.h.b16 %v125
    %v252 = vunpack.c.l.b16 %v126
    %v253 = vunpack.c.h.b16 %v126
    %v254 = vunpack.c.l.b16 %v127
    %v255 = vunpack.c.h.b16 %v127
    %v256 = vunpack.c.l.b16 %v128
    %v257 = vunpack.c.h.b16 %v128
    %v258 = vunpack.c.l.b16 %v129
    %v259 = vunpack.c.h.b16 %v129
    %v260 = vpack.c.b16 %v200, %v196
    %v261 = vpack.c.b16 %v201, %v197
    %v262 = vpack.c.b16 %v202, %v198
    %v263 = vpack.c.b16 %v203, %v199
    %v264 = vpack.c.b16 %v208, %v204
    %v265 = vpack.c.b16 %v209, %v205
    %v266 = vpack.c.b16 %v210, %v206
    %v267 = vpack.c.b16 %v211, %v207
    %v268 = vpack.c.b16 %v216, %v212
    %v269 = vpack.c.b16 %v217, %v213
    %v270 = vpack.c.b16 %v218, %v214
    %v271 = vpack.c.b16 %v219, %v215
    %v272 = vpack.c.b16 %v224, %v220
    %v273 = vpack.c.b16 %v225, %v221
    %v274 = vpack.c.b16 %v226, %v222
    %v275 = vpack.c.b16 %v227, %v223
    %v276 = vpack.c.b16 %v232, %v228
    %v277 = vpack.c.b16 %v233, %v229
    %v278 = vpack.c.b16 %v234, %v230
    %v279 = vpack.c.b16 %v235, %v231
    %v280 = vpack.c.b16 %v240, %v236
    %v281 = vpack.c.b16 %v241, %v237
    %v282 = vpack.c.b16 %v242, %v238
    %v283 = vpack.c.b16 %v243, %v239
    %v284 = vpack.c.b16 %v248, %v244
    %v285 = vpack.c.b16 %v249, %v245
    %v286 = vpack.c.b16 %v250, %v246
    %v287 = vpack.c.b16 %v251, %v247
    %v288 = vpack.c.b16 %v256, %v252
    %v289 = vpack.c.b16 %v257, %v253
    %v290 = vpack.c.b16 %v258, %v254
    %v291 = vpack.c.b16 %v259, %v255
    %324 = vmatprep.subr.bf16.mxu0 %v289
    %325 = vmatpush1.bf16.msra.mxu0 %v288
    %326 = vmatprep.subr.bf16.mxu0 %v285
    %327 = vmatpush1.bf16.msra.mxu0 %v284
    %328 = vmatprep.subr.bf16.mxu0 %v281
    %329 = vmatpush1.bf16.msra.mxu0 %v280
    %330 = vmatprep.subr.bf16.mxu0 %v277
    %331 = vmatpush1.bf16.msra.mxu0 %v276
    %332 = vmatprep.subr.bf16.mxu0 %v273
    %333 = vmatpush1.bf16.msra.mxu0 %v272
    %334 = vmatprep.subr.bf16.mxu0 %v269
    %335 = vmatpush1.bf16.msra.mxu0 %v268
    %336 = vmatprep.subr.bf16.mxu0 %v265
    %337 = vmatpush1.bf16.msra.mxu0 %v264
    %338 = vmatprep.subr.bf16.mxu0 %v261
    %339 = vmatpush1.bf16.msra.mxu0 %v260
    %340 = vmatprep.subr.bf16.mxu0 0
    %341 = vmatpush2.bf16.msra.mxu0 0
    %342 = vmatprep.subr.bf16.mxu0 0
    %343 = vmatpush2.bf16.msra.mxu0 0
    %344 = vmatprep.subr.bf16.mxu0 0
    %345 = vmatpush2.bf16.msra.mxu0 0
    %346 = vmatprep.subr.bf16.mxu0 0
    %347 = vmatpush2.bf16.msra.mxu0 0
    %348 = vmatprep.subr.bf16.mxu0 0
    %349 = vmatpush2.bf16.msra.mxu0 0
    %350 = vmatprep.subr.bf16.mxu0 0
    %351 = vmatpush2.bf16.msra.mxu0 0
    %352 = vmatprep.subr.bf16.mxu0 0
    %353 = vmatpush2.bf16.msra.mxu0 0
    %354 = vmatprep.subr.bf16.mxu0 0
    %355 = vmatpush2.bf16.msra.mxu0 0
    %356 = vmatprep.mubr.bf16.mxu0 0
    %357 = vmatmul.mubr.bf16.gmra.mxu0 %v160
    %v358 = vpop.f32.mrf.mxu0
    %v359 = vadd.f32 %v135, %v358
    %v360 = vpop.f32.mrf.mxu0
    %v361 = vadd.f32 %v139, %v360
    %v362 = vpop.f32.mrf.mxu0
    %v363 = vadd.f32 %v135, %v362
    %v364 = vpop.f32.mrf.mxu0
    %v365 = vadd.f32 %v139, %v364
    %366 = vmatprep.mubr.bf16.mxu0 0
    %367 = vmatmul.mubr.bf16.gmra.mxu0 %v161
    %v368 = vpop.f32.mrf.mxu0
    %v369 = vadd.f32 %v135, %v368
    %v370 = vpop.f32.mrf.mxu0
    %v371 = vadd.f32 %v139, %v370
    %v372 = vpop.f32.mrf.mxu0
    %v373 = vadd.f32 %v135, %v372
    %v374 = vpop.f32.mrf.mxu0
    %v375 = vadd.f32 %v139, %v374
    %376 = vdwg.mxu0
    %377 = vmatprep.subr.bf16.mxu0 %v291
    %378 = vmatpush1.bf16.msra.mxu0 %v290
    %379 = vmatprep.subr.bf16.mxu0 %v287
    %380 = vmatpush1.bf16.msra.mxu0 %v286
    %381 = vmatprep.subr.bf16.mxu0 %v283
    %382 = vmatpush1.bf16.msra.mxu0 %v282
    %383 = vmatprep.subr.bf16.mxu0 %v279
    %384 = vmatpush1.bf16.msra.mxu0 %v278
    %385 = vmatprep.subr.bf16.mxu0 %v275
    %386 = vmatpush1.bf16.msra.mxu0 %v274
    %387 = vmatprep.subr.bf16.mxu0 %v271
    %388 = vmatpush1.bf16.msra.mxu0 %v270
    %389 = vmatprep.subr.bf16.mxu0 %v267
    %390 = vmatpush1.bf16.msra.mxu0 %v266
    %391 = vmatprep.subr.bf16.mxu0 %v263
    %392 = vmatpush1.bf16.msra.mxu0 %v262
    %393 = vmatprep.subr.bf16.mxu0 0
    %394 = vmatpush2.bf16.msra.mxu0 0
    %395 = vmatprep.subr.bf16.mxu0 0
    %396 = vmatpush2.bf16.msra.mxu0 0
    %397 = vmatprep.subr.bf16.mxu0 0
    %398 = vmatpush2.bf16.msra.mxu0 0
    %399 = vmatprep.subr.bf16.mxu0 0
    %400 = vmatpush2.bf16.msra.mxu0 0
    %401 = vmatprep.subr.bf16.mxu0 0
    %402 = vmatpush2.bf16.msra.mxu0 0
    %403 = vmatprep.subr.bf16.mxu0 0
    %404 = vmatpush2.bf16.msra.mxu0 0
    %405 = vmatprep.subr.bf16.mxu0 0
    %406 = vmatpush2.bf16.msra.mxu0 0
    %407 = vmatprep.subr.bf16.mxu0 0
    %408 = vmatpush2.bf16.msra.mxu0 0
    %409 = vmatprep.mubr.bf16.mxu0 0
    %410 = vmatmul.mubr.bf16.gmra.mxu0 %v160
    %v411 = vpop.f32.mrf.mxu0
    %v412 = vadd.f32 %v143, %v411
    %v413 = vpop.f32.mrf.mxu0
    %v414 = vadd.f32 %v147, %v413
    %v415 = vpop.f32.mrf.mxu0
    %v416 = vadd.f32 %v143, %v415
    %v417 = vpop.f32.mrf.mxu0
    %v418 = vadd.f32 %v147, %v417
    %419 = vmatprep.mubr.bf16.mxu0 0
    %420 = vmatmul.mubr.bf16.gmra.mxu0 %v161
    %v421 = vpop.f32.mrf.mxu0
    %v422 = vadd.f32 %v143, %v421
    %v423 = vpop.f32.mrf.mxu0
    %v424 = vadd.f32 %v147, %v423
    %v425 = vpop.f32.mrf.mxu0
    %v426 = vadd.f32 %v143, %v425
    %v427 = vpop.f32.mrf.mxu0
    %v428 = vadd.f32 %v147, %v427
    %429 = vdwg.mxu0
    %v430 = vmax.f32 %v359, 0.0
    %v431 = vmax.f32 %v361, 0.0
    %v432 = vmax.f32 %v412, 0.0
    %v433 = vmax.f32 %v414, 0.0
    %v434 = vmax.f32 %v363, 0.0
    %v435 = vmax.f32 %v365, 0.0
    %v436 = vmax.f32 %v416, 0.0
    %v437 = vmax.f32 %v418, 0.0
    %v438 = vmax.f32 %v369, 0.0
    %v439 = vmax.f32 %v371, 0.0
    %v440 = vmax.f32 %v422, 0.0
    %v441 = vmax.f32 %v424, 0.0
    %v442 = vmax.f32 %v373, 0.0
    %v443 = vmax.f32 %v375, 0.0
    %v444 = vmax.f32 %v426, 0.0
    %v445 = vmax.f32 %v428, 0.0
    %v446 = vmin.f32 %v430, 6.0
    %v447 = vmin.f32 %v431, 6.0
    %v448 = vmin.f32 %v432, 6.0
    %v449 = vmin.f32 %v433, 6.0
    %v450 = vmin.f32 %v434, 6.0
    %v451 = vmin.f32 %v435, 6.0
    %v452 = vmin.f32 %v436, 6.0
    %v453 = vmin.f32 %v437, 6.0
    %v454 = vmin.f32 %v438, 6.0
    %v455 = vmin.f32 %v439, 6.0
    %v456 = vmin.f32 %v440, 6.0
    %v457 = vmin.f32 %v441, 6.0
    %v458 = vmin.f32 %v442, 6.0
    %v459 = vmin.f32 %v443, 6.0
    %v460 = vmin.f32 %v444, 6.0
    %v461 = vmin.f32 %v445, 6.0
    %v462 = vld [vmem:[#allocation8] sm:$0xff]
    %v463 = vld [vmem:[#allocation8 + $0x8] sm:$0xff]
    %v464 = vld [vmem:[#allocation8 + $0x10] sm:$0xff]
    %v465 = vld [vmem:[#allocation8 + $0x18] sm:$0xff]
    %v466 = vld [vmem:[#allocation8 + $0x20] sm:$0x1]
    %v467 = vld [vmem:[#allocation8 + $0x28] sm:$0x1]
    %v468 = vld [vmem:[#allocation8 + $0x30] sm:$0x1]
    %v469 = vld [vmem:[#allocation8 + $0x38] sm:$0x1]
    %v470 = vlaneseq
    %v471 = vshrl.u32 %v470, 7
    %v472 = vsub.s32 4, %v471
    %v473 = vrot.slane %v462, %v472
    %v474 = vlaneseq
    %v475 = vshrl.u32 %v474, 7
    %v476 = vsub.s32 4, %v475
    %v477 = vrot.slane %v463, %v476
    %v478 = vlaneseq
    %v479 = vshrl.u32 %v478, 7
    %v480 = vsub.s32 4, %v479
    %v481 = vrot.slane %v464, %v480
    %v482 = vlaneseq
    %v483 = vshrl.u32 %v482, 7
    %v484 = vsub.s32 4, %v483
    %v485 = vrot.slane %v465, %v484
    %v486 = vmul.f32 %v446, %v473
    %v487 = vmul.f32 %v447, %v477
    %v488 = vmul.f32 %v448, %v481
    %v489 = vmul.f32 %v449, %v485
    %v490 = vmul.f32 %v450, %v473
    %v491 = vmul.f32 %v451, %v477
    %v492 = vmul.f32 %v452, %v481
    %v493 = vmul.f32 %v453, %v485
    %v494 = vmul.f32 %v454, %v473
    %v495 = vmul.f32 %v455, %v477
    %v496 = vmul.f32 %v456, %v481
    %v497 = vmul.f32 %v457, %v485
    %v498 = vmul.f32 %v458, %v473
    %v499 = vmul.f32 %v459, %v477
    %v500 = vmul.f32 %v460, %v481
    %v501 = vmul.f32 %v461, %v485
    %518 = vrot.lane.b32.xlu0 %v446, 32
    %v519 = vpop.permute.xlu0 %518
    %520 = vrot.lane.b32.xlu0 %v447, 32
    %v521 = vpop.permute.xlu0 %520
    %522 = vrot.lane.b32.xlu0 %v448, 32
    %v523 = vpop.permute.xlu0 %522
    %524 = vrot.lane.b32.xlu0 %v449, 32
    %v525 = vpop.permute.xlu0 %524
    %526 = vrot.lane.b32.xlu0 %v450, 32
    %v527 = vpop.permute.xlu0 %526
    %528 = vrot.lane.b32.xlu0 %v451, 32
    %v529 = vpop.permute.xlu0 %528
    %530 = vrot.lane.b32.xlu0 %v452, 32
    %v531 = vpop.permute.xlu0 %530
    %532 = vrot.lane.b32.xlu0 %v453, 32
    %v533 = vpop.permute.xlu0 %532
    %534 = vrot.lane.b32.xlu0 %v454, 32
    %v535 = vpop.permute.xlu0 %534
    %536 = vrot.lane.b32.xlu0 %v455, 32
    %v537 = vpop.permute.xlu0 %536
    %538 = vrot.lane.b32.xlu0 %v456, 32
    %v539 = vpop.permute.xlu0 %538
    %540 = vrot.lane.b32.xlu0 %v457, 32
    %v541 = vpop.permute.xlu0 %540
    %542 = vrot.lane.b32.xlu0 %v458, 32
    %v543 = vpop.permute.xlu0 %542
    %544 = vrot.lane.b32.xlu0 %v459, 32
    %v545 = vpop.permute.xlu0 %544
    %546 = vrot.lane.b32.xlu0 %v460, 32
    %v547 = vpop.permute.xlu0 %546
    %548 = vrot.lane.b32.xlu0 %v461, 32
    %v549 = vpop.permute.xlu0 %548
    %vm550 = vcmask 261120
    %v551 = vsel %vm550, %v519, %v521
    %v552 = vsel %vm550, %v521, %v523
    %v553 = vsel %vm550, %v523, %v525
    %v554 = vsel %vm550, %v527, %v529
    %v555 = vsel %vm550, %v529, %v531
    %v556 = vsel %vm550, %v531, %v533
    %v557 = vsel %vm550, %v535, %v537
    %v558 = vsel %vm550, %v537, %v539
    %v559 = vsel %vm550, %v539, %v541
    %v560 = vsel %vm550, %v543, %v545
    %v561 = vsel %vm550, %v545, %v547
    %v562 = vsel %vm550, %v547, %v549
    %v579 = vsel %vm550, 0.0, %v519
    %v580 = vsel %vm550, 0.0, %v527
    %v581 = vsel %vm550, 0.0, %v535
    %v582 = vsel %vm550, 0.0, %v543
    %vm587 = vcmask 1040384
    %v588 = vrot.slane %v579, 7
    %v589 = vrot.slane %v551, 7
    %v590 = vrot.slane %v552, 7
    %v591 = vrot.slane %v553, 7
    %v592 = vrot.slane %v580, 7
    %v593 = vsel %vm587, %v588, %v592
    %v594 = vrot.slane %v554, 7
    %v595 = vsel %vm587, %v589, %v594
    %v596 = vrot.slane %v555, 7
    %v597 = vsel %vm587, %v590, %v596
    %v598 = vrot.slane %v556, 7
    %v599 = vsel %vm587, %v591, %v598
    %v600 = vrot.slane %v581, 7
    %v601 = vrot.slane %v557, 7
    %v602 = vrot.slane %v558, 7
    %v603 = vrot.slane %v559, 7
    %v604 = vrot.slane %v582, 7
    %v605 = vsel %vm587, %v600, %v604
    %v606 = vrot.slane %v560, 7
    %v607 = vsel %vm587, %v601, %v606
    %v608 = vrot.slane %v561, 7
    %v609 = vsel %vm587, %v602, %v608
    %v610 = vrot.slane %v562, 7
    %v611 = vsel %vm587, %v603, %v610
    %v628 = vsel %vm587, 0.0, %v588
    %v629 = vsel %vm587, 0.0, %v589
    %v630 = vsel %vm587, 0.0, %v590
    %v631 = vsel %vm587, 0.0, %v591
    %v632 = vsel %vm587, 0.0, %v600
    %v633 = vsel %vm587, 0.0, %v601
    %v634 = vsel %vm587, 0.0, %v602
    %v635 = vsel %vm587, 0.0, %v603
    %v636 = vlaneseq
    %v637 = vshrl.u32 %v636, 7
    %v638 = vsub.s32 0, %v637
    %v639 = vrot.slane %v462, %v638
    %v640 = vlaneseq
    %v641 = vshrl.u32 %v640, 7
    %v642 = vsub.s32 0, %v641
    %v643 = vrot.slane %v463, %v642
    %v644 = vlaneseq
    %v645 = vshrl.u32 %v644, 7
    %v646 = vsub.s32 0, %v645
    %v647 = vrot.slane %v464, %v646
    %v648 = vlaneseq
    %v649 = vshrl.u32 %v648, 7
    %v650 = vsub.s32 0, %v649
    %v651 = vrot.slane %v465, %v650
    %v652 = vmul.f32 %v628, %v639
    %v653 = vmul.f32 %v629, %v643
    %v654 = vmul.f32 %v630, %v647
    %v655 = vmul.f32 %v631, %v651
    %v656 = vmul.f32 %v593, %v639
    %v657 = vmul.f32 %v595, %v643
    %v658 = vmul.f32 %v597, %v647
    %v659 = vmul.f32 %v599, %v651
    %v660 = vmul.f32 %v632, %v639
    %v661 = vmul.f32 %v633, %v643
    %v662 = vmul.f32 %v634, %v647
    %v663 = vmul.f32 %v635, %v651
    %v664 = vmul.f32 %v605, %v639
    %v665 = vmul.f32 %v607, %v643
    %v666 = vmul.f32 %v609, %v647
    %v667 = vmul.f32 %v611, %v651
    %v668 = vadd.f32 %v486, %v652
    %v669 = vadd.f32 %v487, %v653
    %v670 = vadd.f32 %v488, %v654
    %v671 = vadd.f32 %v489, %v655
    %v672 = vadd.f32 %v490, %v656
    %v673 = vadd.f32 %v491, %v657
    %v674 = vadd.f32 %v492, %v658
    %v675 = vadd.f32 %v493, %v659
    %v676 = vadd.f32 %v494, %v660
    %v677 = vadd.f32 %v495, %v661
    %v678 = vadd.f32 %v496, %v662
    %v679 = vadd.f32 %v497, %v663
    %v680 = vadd.f32 %v498, %v664
    %v681 = vadd.f32 %v499, %v665
    %v682 = vadd.f32 %v500, %v666
    %v683 = vadd.f32 %v501, %v667
    %v684 = vlaneseq
    %v685 = vshrl.u32 %v684, 7
    %v686 = vsub.s32 3, %v685
    %v687 = vrot.slane %v462, %v686
    %v688 = vlaneseq
    %v689 = vshrl.u32 %v688, 7
    %v690 = vsub.s32 3, %v689
    %v691 = vrot.slane %v463, %v690
    %v692 = vlaneseq
    %v693 = vshrl.u32 %v692, 7
    %v694 = vsub.s32 3, %v693
    %v695 = vrot.slane %v464, %v694
    %v696 = vlaneseq
    %v697 = vshrl.u32 %v696, 7
    %v698 = vsub.s32 3, %v697
    %v699 = vrot.slane %v465, %v698
    %v700 = vmul.f32 %v579, %v687
    %v701 = vmul.f32 %v551, %v691
    %v702 = vmul.f32 %v552, %v695
    %v703 = vmul.f32 %v553, %v699
    %v704 = vmul.f32 %v580, %v687
    %v705 = vmul.f32 %v554, %v691
    %v706 = vmul.f32 %v555, %v695
    %v707 = vmul.f32 %v556, %v699
    %v708 = vmul.f32 %v581, %v687
    %v709 = vmul.f32 %v557, %v691
    %v710 = vmul.f32 %v558, %v695
    %v711 = vmul.f32 %v559, %v699
    %v712 = vmul.f32 %v582, %v687
    %v713 = vmul.f32 %v560, %v691
    %v714 = vmul.f32 %v561, %v695
    %v715 = vmul.f32 %v562, %v699
    %v716 = vadd.f32 %v668, %v700
    %v717 = vadd.f32 %v669, %v701
    %v718 = vadd.f32 %v670, %v702
    %v719 = vadd.f32 %v671, %v703
    %v720 = vadd.f32 %v672, %v704
    %v721 = vadd.f32 %v673, %v705
    %v722 = vadd.f32 %v674, %v706
    %v723 = vadd.f32 %v675, %v707
    %v724 = vadd.f32 %v676, %v708
    %v725 = vadd.f32 %v677, %v709
    %v726 = vadd.f32 %v678, %v710
    %v727 = vadd.f32 %v679, %v711
    %v728 = vadd.f32 %v680, %v712
    %v729 = vadd.f32 %v681, %v713
    %v730 = vadd.f32 %v682, %v714
    %v731 = vadd.f32 %v683, %v715
    %vm732 = vcmask 1046528
    %v733 = vrot.slane %v579, 1
    %v734 = vrot.slane %v580, 1
    %v735 = vsel %vm732, %v733, %v734
    %v736 = vrot.slane %v551, 1
    %v737 = vrot.slane %v554, 1
    %v738 = vsel %vm732, %v736, %v737
    %v739 = vrot.slane %v552, 1
    %v740 = vrot.slane %v555, 1
    %v741 = vsel %vm732, %v739, %v740
    %v742 = vrot.slane %v553, 1
    %v743 = vrot.slane %v556, 1
    %v744 = vsel %vm732, %v742, %v743
    %v745 = vrot.slane %v581, 1
    %v746 = vrot.slane %v582, 1
    %v747 = vsel %vm732, %v745, %v746
    %v748 = vrot.slane %v557, 1
    %v749 = vrot.slane %v560, 1
    %v750 = vsel %vm732, %v748, %v749
    %v751 = vrot.slane %v558, 1
    %v752 = vrot.slane %v561, 1
    %v753 = vsel %vm732, %v751, %v752
    %v754 = vrot.slane %v559, 1
    %v755 = vrot.slane %v562, 1
    %v756 = vsel %vm732, %v754, %v755
    %v773 = vsel %vm732, %v734, 0.0
    %v774 = vsel %vm732, %v737, 0.0
    %v775 = vsel %vm732, %v740, 0.0
    %v776 = vsel %vm732, %v743, 0.0
    %v777 = vsel %vm732, %v746, 0.0
    %v778 = vsel %vm732, %v749, 0.0
    %v779 = vsel %vm732, %v752, 0.0
    %v780 = vsel %vm732, %v755, 0.0
    %v781 = vlaneseq
    %v782 = vshrl.u32 %v781, 7
    %v783 = vsub.s32 6, %v782
    %v784 = vrot.slane %v462, %v783
    %v785 = vlaneseq
    %v786 = vshrl.u32 %v785, 7
    %v787 = vsub.s32 6, %v786
    %v788 = vrot.slane %v463, %v787
    %v789 = vlaneseq
    %v790 = vshrl.u32 %v789, 7
    %v791 = vsub.s32 6, %v790
    %v792 = vrot.slane %v464, %v791
    %v793 = vlaneseq
    %v794 = vshrl.u32 %v793, 7
    %v795 = vsub.s32 6, %v794
    %v796 = vrot.slane %v465, %v795
    %v797 = vmul.f32 %v735, %v784
    %v798 = vmul.f32 %v738, %v788
    %v799 = vmul.f32 %v741, %v792
    %v800 = vmul.f32 %v744, %v796
    %v801 = vmul.f32 %v773, %v784
    %v802 = vmul.f32 %v774, %v788
    %v803 = vmul.f32 %v775, %v792
    %v804 = vmul.f32 %v776, %v796
    %v805 = vmul.f32 %v747, %v784
    %v806 = vmul.f32 %v750, %v788
    %v807 = vmul.f32 %v753, %v792
    %v808 = vmul.f32 %v756, %v796
    %v809 = vmul.f32 %v777, %v784
    %v810 = vmul.f32 %v778, %v788
    %v811 = vmul.f32 %v779, %v792
    %v812 = vmul.f32 %v780, %v796
    %v813 = vadd.f32 %v716, %v797
    %v814 = vadd.f32 %v717, %v798
    %v815 = vadd.f32 %v718, %v799
    %v816 = vadd.f32 %v719, %v800
    %v817 = vadd.f32 %v720, %v801
    %v818 = vadd.f32 %v721, %v802
    %v819 = vadd.f32 %v722, %v803
    %v820 = vadd.f32 %v723, %v804
    %v821 = vadd.f32 %v724, %v805
    %v822 = vadd.f32 %v725, %v806
    %v823 = vadd.f32 %v726, %v807
    %v824 = vadd.f32 %v727, %v808
    %v825 = vadd.f32 %v728, %v809
    %v826 = vadd.f32 %v729, %v810
    %v827 = vadd.f32 %v730, %v811
    %v828 = vadd.f32 %v731, %v812
    %v829 = vrot.slane %v446, 7
    %v830 = vrot.slane %v447, 7
    %v831 = vrot.slane %v448, 7
    %v832 = vrot.slane %v449, 7
    %v833 = vrot.slane %v450, 7
    %v834 = vsel %vm587, %v829, %v833
    %v835 = vrot.slane %v451, 7
    %v836 = vsel %vm587, %v830, %v835
    %v837 = vrot.slane %v452, 7
    %v838 = vsel %vm587, %v831, %v837
    %v839 = vrot.slane %v453, 7
    %v840 = vsel %vm587, %v832, %v839
    %v841 = vrot.slane %v454, 7
    %v842 = vrot.slane %v455, 7
    %v843 = vrot.slane %v456, 7
    %v844 = vrot.slane %v457, 7
    %v845 = vrot.slane %v458, 7
    %v846 = vsel %vm587, %v841, %v845
    %v847 = vrot.slane %v459, 7
    %v848 = vsel %vm587, %v842, %v847
    %v849 = vrot.slane %v460, 7
    %v850 = vsel %vm587, %v843, %v849
    %v851 = vrot.slane %v461, 7
    %v852 = vsel %vm587, %v844, %v851
    %v869 = vsel %vm587, 0.0, %v829
    %v870 = vsel %vm587, 0.0, %v830
    %v871 = vsel %vm587, 0.0, %v831
    %v872 = vsel %vm587, 0.0, %v832
    %v873 = vsel %vm587, 0.0, %v841
    %v874 = vsel %vm587, 0.0, %v842
    %v875 = vsel %vm587, 0.0, %v843
    %v876 = vsel %vm587, 0.0, %v844
    %v877 = vlaneseq
    %v878 = vshrl.u32 %v877, 7
    %v879 = vsub.s32 1, %v878
    %v880 = vrot.slane %v462, %v879
    %v881 = vlaneseq
    %v882 = vshrl.u32 %v881, 7
    %v883 = vsub.s32 1, %v882
    %v884 = vrot.slane %v463, %v883
    %v885 = vlaneseq
    %v886 = vshrl.u32 %v885, 7
    %v887 = vsub.s32 1, %v886
    %v888 = vrot.slane %v464, %v887
    %v889 = vlaneseq
    %v890 = vshrl.u32 %v889, 7
    %v891 = vsub.s32 1, %v890
    %v892 = vrot.slane %v465, %v891
    %v893 = vmul.f32 %v869, %v880
    %v894 = vmul.f32 %v870, %v884
    %v895 = vmul.f32 %v871, %v888
    %v896 = vmul.f32 %v872, %v892
    %v897 = vmul.f32 %v834, %v880
    %v898 = vmul.f32 %v836, %v884
    %v899 = vmul.f32 %v838, %v888
    %v900 = vmul.f32 %v840, %v892
    %v901 = vmul.f32 %v873, %v880
    %v902 = vmul.f32 %v874, %v884
    %v903 = vmul.f32 %v875, %v888
    %v904 = vmul.f32 %v876, %v892
    %v905 = vmul.f32 %v846, %v880
    %v906 = vmul.f32 %v848, %v884
    %v907 = vmul.f32 %v850, %v888
    %v908 = vmul.f32 %v852, %v892
    %v909 = vadd.f32 %v813, %v893
    %v910 = vadd.f32 %v814, %v894
    %v911 = vadd.f32 %v815, %v895
    %v912 = vadd.f32 %v816, %v896
    %v913 = vadd.f32 %v817, %v897
    %v914 = vadd.f32 %v818, %v898
    %v915 = vadd.f32 %v819, %v899
    %v916 = vadd.f32 %v820, %v900
    %v917 = vadd.f32 %v821, %v901
    %v918 = vadd.f32 %v822, %v902
    %v919 = vadd.f32 %v823, %v903
    %v920 = vadd.f32 %v824, %v904
    %v921 = vadd.f32 %v825, %v905
    %v922 = vadd.f32 %v826, %v906
    %v923 = vadd.f32 %v827, %v907
    %v924 = vadd.f32 %v828, %v908
    %v925 = vrot.slane %v446, 1
    %v926 = vrot.slane %v450, 1
    %v927 = vsel %vm732, %v925, %v926
    %v928 = vrot.slane %v447, 1
    %v929 = vrot.slane %v451, 1
    %v930 = vsel %vm732, %v928, %v929
    %v931 = vrot.slane %v448, 1
    %v932 = vrot.slane %v452, 1
    %v933 = vsel %vm732, %v931, %v932
    %v934 = vrot.slane %v449, 1
    %v935 = vrot.slane %v453, 1
    %v936 = vsel %vm732, %v934, %v935
    %v937 = vrot.slane %v454, 1
    %v938 = vrot.slane %v458, 1
    %v939 = vsel %vm732, %v937, %v938
    %v940 = vrot.slane %v455, 1
    %v941 = vrot.slane %v459, 1
    %v942 = vsel %vm732, %v940, %v941
    %v943 = vrot.slane %v456, 1
    %v944 = vrot.slane %v460, 1
    %v945 = vsel %vm732, %v943, %v944
    %v946 = vrot.slane %v457, 1
    %v947 = vrot.slane %v461, 1
    %v948 = vsel %vm732, %v946, %v947
    %v965 = vsel %vm732, %v926, 0.0
    %v966 = vsel %vm732, %v929, 0.0
    %v967 = vsel %vm732, %v932, 0.0
    %v968 = vsel %vm732, %v935, 0.0
    %v969 = vsel %vm732, %v938, 0.0
    %v970 = vsel %vm732, %v941, 0.0
    %v971 = vsel %vm732, %v944, 0.0
    %v972 = vsel %vm732, %v947, 0.0
    %v973 = vlaneseq
    %v974 = vshrl.u32 %v973, 7
    %v975 = vsub.s32 7, %v974
    %v976 = vrot.slane %v462, %v975
    %v977 = vlaneseq
    %v978 = vshrl.u32 %v977, 7
    %v979 = vsub.s32 7, %v978
    %v980 = vrot.slane %v463, %v979
    %v981 = vlaneseq
    %v982 = vshrl.u32 %v981, 7
    %v983 = vsub.s32 7, %v982
    %v984 = vrot.slane %v464, %v983
    %v985 = vlaneseq
    %v986 = vshrl.u32 %v985, 7
    %v987 = vsub.s32 7, %v986
    %v988 = vrot.slane %v465, %v987
    %v989 = vmul.f32 %v927, %v976
    %v990 = vmul.f32 %v930, %v980
    %v991 = vmul.f32 %v933, %v984
    %v992 = vmul.f32 %v936, %v988
    %v993 = vmul.f32 %v965, %v976
    %v994 = vmul.f32 %v966, %v980
    %v995 = vmul.f32 %v967, %v984
    %v996 = vmul.f32 %v968, %v988
    %v997 = vmul.f32 %v939, %v976
    %v998 = vmul.f32 %v942, %v980
    %v999 = vmul.f32 %v945, %v984
    %v1000 = vmul.f32 %v948, %v988
    %v1001 = vmul.f32 %v969, %v976
    %v1002 = vmul.f32 %v970, %v980
    %v1003 = vmul.f32 %v971, %v984
    %v1004 = vmul.f32 %v972, %v988
    %v1005 = vadd.f32 %v909, %v989
    %v1006 = vadd.f32 %v910, %v990
    %v1007 = vadd.f32 %v911, %v991
    %v1008 = vadd.f32 %v912, %v992
    %v1009 = vadd.f32 %v913, %v993
    %v1010 = vadd.f32 %v914, %v994
    %v1011 = vadd.f32 %v915, %v995
    %v1012 = vadd.f32 %v916, %v996
    %v1013 = vadd.f32 %v917, %v997
    %v1014 = vadd.f32 %v918, %v998
    %v1015 = vadd.f32 %v919, %v999
    %v1016 = vadd.f32 %v920, %v1000
    %v1017 = vadd.f32 %v921, %v1001
    %v1018 = vadd.f32 %v922, %v1002
    %v1019 = vadd.f32 %v923, %v1003
    %v1020 = vadd.f32 %v924, %v1004
    %1021 = vrot.lane.b32.xlu0 %v446, 96
    %v1022 = vpop.permute.xlu0 %1021
    %1023 = vrot.lane.b32.xlu0 %v447, 96
    %v1024 = vpop.permute.xlu0 %1023
    %1025 = vrot.lane.b32.xlu0 %v448, 96
    %v1026 = vpop.permute.xlu0 %1025
    %1027 = vrot.lane.b32.xlu0 %v449, 96
    %v1028 = vpop.permute.xlu0 %1027
    %1029 = vrot.lane.b32.xlu0 %v450, 96
    %v1030 = vpop.permute.xlu0 %1029
    %1031 = vrot.lane.b32.xlu0 %v451, 96
    %v1032 = vpop.permute.xlu0 %1031
    %1033 = vrot.lane.b32.xlu0 %v452, 96
    %v1034 = vpop.permute.xlu0 %1033
    %1035 = vrot.lane.b32.xlu0 %v453, 96
    %v1036 = vpop.permute.xlu0 %1035
    %1037 = vrot.lane.b32.xlu0 %v454, 96
    %v1038 = vpop.permute.xlu0 %1037
    %1039 = vrot.lane.b32.xlu0 %v455, 96
    %v1040 = vpop.permute.xlu0 %1039
    %1041 = vrot.lane.b32.xlu0 %v456, 96
    %v1042 = vpop.permute.xlu0 %1041
    %1043 = vrot.lane.b32.xlu0 %v457, 96
    %v1044 = vpop.permute.xlu0 %1043
    %1045 = vrot.lane.b32.xlu0 %v458, 96
    %v1046 = vpop.permute.xlu0 %1045
    %1047 = vrot.lane.b32.xlu0 %v459, 96
    %v1048 = vpop.permute.xlu0 %1047
    %1049 = vrot.lane.b32.xlu0 %v460, 96
    %v1050 = vpop.permute.xlu0 %1049
    %1051 = vrot.lane.b32.xlu0 %v461, 96
    %v1052 = vpop.permute.xlu0 %1051
    %vm1053 = vcmask 785408
    %v1054 = vsel %vm1053, %v1022, %v1024
    %v1055 = vsel %vm1053, %v1024, %v1026
    %v1056 = vsel %vm1053, %v1026, %v1028
    %v1057 = vsel %vm1053, %v1030, %v1032
    %v1058 = vsel %vm1053, %v1032, %v1034
    %v1059 = vsel %vm1053, %v1034, %v1036
    %v1060 = vsel %vm1053, %v1038, %v1040
    %v1061 = vsel %vm1053, %v1040, %v1042
    %v1062 = vsel %vm1053, %v1042, %v1044
    %v1063 = vsel %vm1053, %v1046, %v1048
    %v1064 = vsel %vm1053, %v1048, %v1050
    %v1065 = vsel %vm1053, %v1050, %v1052
    %v1082 = vsel %vm1053, %v1028, 0.0
    %v1083 = vsel %vm1053, %v1036, 0.0
    %v1084 = vsel %vm1053, %v1044, 0.0
    %v1085 = vsel %vm1053, %v1052, 0.0
    %v1090 = vrot.slane %v1054, 7
    %v1091 = vrot.slane %v1055, 7
    %v1092 = vrot.slane %v1056, 7
    %v1093 = vrot.slane %v1082, 7
    %v1094 = vrot.slane %v1057, 7
    %v1095 = vsel %vm587, %v1090, %v1094
    %v1096 = vrot.slane %v1058, 7
    %v1097 = vsel %vm587, %v1091, %v1096
    %v1098 = vrot.slane %v1059, 7
    %v1099 = vsel %vm587, %v1092, %v1098
    %v1100 = vrot.slane %v1083, 7
    %v1101 = vsel %vm587, %v1093, %v1100
    %v1102 = vrot.slane %v1060, 7
    %v1103 = vrot.slane %v1061, 7
    %v1104 = vrot.slane %v1062, 7
    %v1105 = vrot.slane %v1084, 7
    %v1106 = vrot.slane %v1063, 7
    %v1107 = vsel %vm587, %v1102, %v1106
    %v1108 = vrot.slane %v1064, 7
    %v1109 = vsel %vm587, %v1103, %v1108
    %v1110 = vrot.slane %v1065, 7
    %v1111 = vsel %vm587, %v1104, %v1110
    %v1112 = vrot.slane %v1085, 7
    %v1113 = vsel %vm587, %v1105, %v1112
    %v1130 = vsel %vm587, 0.0, %v1090
    %v1131 = vsel %vm587, 0.0, %v1091
    %v1132 = vsel %vm587, 0.0, %v1092
    %v1133 = vsel %vm587, 0.0, %v1093
    %v1134 = vsel %vm587, 0.0, %v1102
    %v1135 = vsel %vm587, 0.0, %v1103
    %v1136 = vsel %vm587, 0.0, %v1104
    %v1137 = vsel %vm587, 0.0, %v1105
    %v1138 = vlaneseq
    %v1139 = vshrl.u32 %v1138, 7
    %v1140 = vsub.s32 2, %v1139
    %v1141 = vrot.slane %v462, %v1140
    %v1142 = vlaneseq
    %v1143 = vshrl.u32 %v1142, 7
    %v1144 = vsub.s32 2, %v1143
    %v1145 = vrot.slane %v463, %v1144
    %v1146 = vlaneseq
    %v1147 = vshrl.u32 %v1146, 7
    %v1148 = vsub.s32 2, %v1147
    %v1149 = vrot.slane %v464, %v1148
    %v1150 = vlaneseq
    %v1151 = vshrl.u32 %v1150, 7
    %v1152 = vsub.s32 2, %v1151
    %v1153 = vrot.slane %v465, %v1152
    %v1154 = vmul.f32 %v1130, %v1141
    %v1155 = vmul.f32 %v1131, %v1145
    %v1156 = vmul.f32 %v1132, %v1149
    %v1157 = vmul.f32 %v1133, %v1153
    %v1158 = vmul.f32 %v1095, %v1141
    %v1159 = vmul.f32 %v1097, %v1145
    %v1160 = vmul.f32 %v1099, %v1149
    %v1161 = vmul.f32 %v1101, %v1153
    %v1162 = vmul.f32 %v1134, %v1141
    %v1163 = vmul.f32 %v1135, %v1145
    %v1164 = vmul.f32 %v1136, %v1149
    %v1165 = vmul.f32 %v1137, %v1153
    %v1166 = vmul.f32 %v1107, %v1141
    %v1167 = vmul.f32 %v1109, %v1145
    %v1168 = vmul.f32 %v1111, %v1149
    %v1169 = vmul.f32 %v1113, %v1153
    %v1170 = vadd.f32 %v1005, %v1154
    %v1171 = vadd.f32 %v1006, %v1155
    %v1172 = vadd.f32 %v1007, %v1156
    %v1173 = vadd.f32 %v1008, %v1157
    %v1174 = vadd.f32 %v1009, %v1158
    %v1175 = vadd.f32 %v1010, %v1159
    %v1176 = vadd.f32 %v1011, %v1160
    %v1177 = vadd.f32 %v1012, %v1161
    %v1178 = vadd.f32 %v1013, %v1162
    %v1179 = vadd.f32 %v1014, %v1163
    %v1180 = vadd.f32 %v1015, %v1164
    %v1181 = vadd.f32 %v1016, %v1165
    %v1182 = vadd.f32 %v1017, %v1166
    %v1183 = vadd.f32 %v1018, %v1167
    %v1184 = vadd.f32 %v1019, %v1168
    %v1185 = vadd.f32 %v1020, %v1169
    %v1186 = vlaneseq
    %v1187 = vshrl.u32 %v1186, 7
    %v1188 = vsub.s32 5, %v1187
    %v1189 = vrot.slane %v462, %v1188
    %v1190 = vlaneseq
    %v1191 = vshrl.u32 %v1190, 7
    %v1192 = vsub.s32 5, %v1191
    %v1193 = vrot.slane %v463, %v1192
    %v1194 = vlaneseq
    %v1195 = vshrl.u32 %v1194, 7
    %v1196 = vsub.s32 5, %v1195
    %v1197 = vrot.slane %v464, %v1196
    %v1198 = vlaneseq
    %v1199 = vshrl.u32 %v1198, 7
    %v1200 = vsub.s32 5, %v1199
    %v1201 = vrot.slane %v465, %v1200
    %v1202 = vmul.f32 %v1054, %v1189
    %v1203 = vmul.f32 %v1055, %v1193
    %v1204 = vmul.f32 %v1056, %v1197
    %v1205 = vmul.f32 %v1082, %v1201
    %v1206 = vmul.f32 %v1057, %v1189
    %v1207 = vmul.f32 %v1058, %v1193
    %v1208 = vmul.f32 %v1059, %v1197
    %v1209 = vmul.f32 %v1083, %v1201
    %v1210 = vmul.f32 %v1060, %v1189
    %v1211 = vmul.f32 %v1061, %v1193
    %v1212 = vmul.f32 %v1062, %v1197
    %v1213 = vmul.f32 %v1084, %v1201
    %v1214 = vmul.f32 %v1063, %v1189
    %v1215 = vmul.f32 %v1064, %v1193
    %v1216 = vmul.f32 %v1065, %v1197
    %v1217 = vmul.f32 %v1085, %v1201
    %v1218 = vadd.f32 %v1170, %v1202
    %v1219 = vadd.f32 %v1171, %v1203
    %v1220 = vadd.f32 %v1172, %v1204
    %v1221 = vadd.f32 %v1173, %v1205
    %v1222 = vadd.f32 %v1174, %v1206
    %v1223 = vadd.f32 %v1175, %v1207
    %v1224 = vadd.f32 %v1176, %v1208
    %v1225 = vadd.f32 %v1177, %v1209
    %v1226 = vadd.f32 %v1178, %v1210
    %v1227 = vadd.f32 %v1179, %v1211
    %v1228 = vadd.f32 %v1180, %v1212
    %v1229 = vadd.f32 %v1181, %v1213
    %v1230 = vadd.f32 %v1182, %v1214
    %v1231 = vadd.f32 %v1183, %v1215
    %v1232 = vadd.f32 %v1184, %v1216
    %v1233 = vadd.f32 %v1185, %v1217
    %v1234 = vrot.slane %v1054, 1
    %v1235 = vrot.slane %v1057, 1
    %v1236 = vsel %vm732, %v1234, %v1235
    %v1237 = vrot.slane %v1055, 1
    %v1238 = vrot.slane %v1058, 1
    %v1239 = vsel %vm732, %v1237, %v1238
    %v1240 = vrot.slane %v1056, 1
    %v1241 = vrot.slane %v1059, 1
    %v1242 = vsel %vm732, %v1240, %v1241
    %v1243 = vrot.slane %v1082, 1
    %v1244 = vrot.slane %v1083, 1
    %v1245 = vsel %vm732, %v1243, %v1244
    %v1246 = vrot.slane %v1060, 1
    %v1247 = vrot.slane %v1063, 1
    %v1248 = vsel %vm732, %v1246, %v1247
    %v1249 = vrot.slane %v1061, 1
    %v1250 = vrot.slane %v1064, 1
    %v1251 = vsel %vm732, %v1249, %v1250
    %v1252 = vrot.slane %v1062, 1
    %v1253 = vrot.slane %v1065, 1
    %v1254 = vsel %vm732, %v1252, %v1253
    %v1255 = vrot.slane %v1084, 1
    %v1256 = vrot.slane %v1085, 1
    %v1257 = vsel %vm732, %v1255, %v1256
    %v1274 = vsel %vm732, %v1235, 0.0
    %v1275 = vsel %vm732, %v1238, 0.0
    %v1276 = vsel %vm732, %v1241, 0.0
    %v1277 = vsel %vm732, %v1244, 0.0
    %v1278 = vsel %vm732, %v1247, 0.0
    %v1279 = vsel %vm732, %v1250, 0.0
    %v1280 = vsel %vm732, %v1253, 0.0
    %v1281 = vsel %vm732, %v1256, 0.0
    %v1282 = vlaneseq
    %v1283 = vshrl.u32 %v1282, 7
    %v1284 = vsub.s32 0, %v1283
    %v1285 = vrot.slane %v466, %v1284
    %v1286 = vlaneseq
    %v1287 = vshrl.u32 %v1286, 7
    %v1288 = vsub.s32 0, %v1287
    %v1289 = vrot.slane %v467, %v1288
    %v1290 = vlaneseq
    %v1291 = vshrl.u32 %v1290, 7
    %v1292 = vsub.s32 0, %v1291
    %v1293 = vrot.slane %v468, %v1292
    %v1294 = vlaneseq
    %v1295 = vshrl.u32 %v1294, 7
    %v1296 = vsub.s32 0, %v1295
    %v1297 = vrot.slane %v469, %v1296
    %v1298 = vmul.f32 %v1236, %v1285
    %v1299 = vmul.f32 %v1239, %v1289
    %v1300 = vmul.f32 %v1242, %v1293
    %v1301 = vmul.f32 %v1245, %v1297
    %v1302 = vmul.f32 %v1274, %v1285
    %v1303 = vmul.f32 %v1275, %v1289
    %v1304 = vmul.f32 %v1276, %v1293
    %v1305 = vmul.f32 %v1277, %v1297
    %v1306 = vmul.f32 %v1248, %v1285
    %v1307 = vmul.f32 %v1251, %v1289
    %v1308 = vmul.f32 %v1254, %v1293
    %v1309 = vmul.f32 %v1257, %v1297
    %v1310 = vmul.f32 %v1278, %v1285
    %v1311 = vmul.f32 %v1279, %v1289
    %v1312 = vmul.f32 %v1280, %v1293
    %v1313 = vmul.f32 %v1281, %v1297
    %v1314 = vadd.f32 %v1218, %v1298
    %v1315 = vadd.f32 %v1219, %v1299
    %v1316 = vadd.f32 %v1220, %v1300
    %v1317 = vadd.f32 %v1221, %v1301
    %v1318 = vadd.f32 %v1222, %v1302
    %v1319 = vadd.f32 %v1223, %v1303
    %v1320 = vadd.f32 %v1224, %v1304
    %v1321 = vadd.f32 %v1225, %v1305
    %v1322 = vadd.f32 %v1226, %v1306
    %v1323 = vadd.f32 %v1227, %v1307
    %v1324 = vadd.f32 %v1228, %v1308
    %v1325 = vadd.f32 %v1229, %v1309
    %v1326 = vadd.f32 %v1230, %v1310
    %v1327 = vadd.f32 %v1231, %v1311
    %v1328 = vadd.f32 %v1232, %v1312
    %v1329 = vadd.f32 %v1233, %v1313
    %v1330 = vld [vmem:[%s4] sm:$0xf]
    %v1332 = vlaneseq
    %v1333 = vshrl.u32 %v1332, 7
    %v1334 = vsub.s32 0, %v1333
    %v1335 = vrot.slane %v1330, %v1334
    %v1336 = vlaneseq
    %v1337 = vshrl.u32 %v1336, 7
    %v1338 = vsub.s32 1, %v1337
    %v1339 = vrot.slane %v1330, %v1338
    %v1340 = vlaneseq
    %v1341 = vshrl.u32 %v1340, 7
    %v1342 = vsub.s32 2, %v1341
    %v1343 = vrot.slane %v1330, %v1342
    %v1344 = vlaneseq
    %v1345 = vshrl.u32 %v1344, 7
    %v1346 = vsub.s32 3, %v1345
    %v1347 = vrot.slane %v1330, %v1346
    %v1352 = vadd.f32 %v1314, %v1335
    %v1353 = vadd.f32 %v1315, %v1339
    %v1354 = vadd.f32 %v1316, %v1343
    %v1355 = vadd.f32 %v1317, %v1347
    %v1356 = vadd.f32 %v1318, %v1335
    %v1357 = vadd.f32 %v1319, %v1339
    %v1358 = vadd.f32 %v1320, %v1343
    %v1359 = vadd.f32 %v1321, %v1347
    %v1360 = vadd.f32 %v1322, %v1335
    %v1361 = vadd.f32 %v1323, %v1339
    %v1362 = vadd.f32 %v1324, %v1343
    %v1363 = vadd.f32 %v1325, %v1347
    %v1364 = vadd.f32 %v1326, %v1335
    %v1365 = vadd.f32 %v1327, %v1339
    %v1366 = vadd.f32 %v1328, %v1343
    %v1367 = vadd.f32 %v1329, %v1347
    %v1368 = vmax.f32 %v1352, 0.0
    %v1369 = vmax.f32 %v1353, 0.0
    %v1370 = vmax.f32 %v1354, 0.0
    %v1371 = vmax.f32 %v1355, 0.0
    %v1372 = vmax.f32 %v1356, 0.0
    %v1373 = vmax.f32 %v1357, 0.0
    %v1374 = vmax.f32 %v1358, 0.0
    %v1375 = vmax.f32 %v1359, 0.0
    %v1376 = vmax.f32 %v1360, 0.0
    %v1377 = vmax.f32 %v1361, 0.0
    %v1378 = vmax.f32 %v1362, 0.0
    %v1379 = vmax.f32 %v1363, 0.0
    %v1380 = vmax.f32 %v1364, 0.0
    %v1381 = vmax.f32 %v1365, 0.0
    %v1382 = vmax.f32 %v1366, 0.0
    %v1383 = vmax.f32 %v1367, 0.0
    %v1384 = vmin.f32 %v1368, 6.0
    %v1385 = vmin.f32 %v1369, 6.0
    %v1386 = vmin.f32 %v1370, 6.0
    %v1387 = vmin.f32 %v1371, 6.0
    %v1388 = vmin.f32 %v1372, 6.0
    %v1389 = vmin.f32 %v1373, 6.0
    %v1390 = vmin.f32 %v1374, 6.0
    %v1391 = vmin.f32 %v1375, 6.0
    %v1392 = vmin.f32 %v1376, 6.0
    %v1393 = vmin.f32 %v1377, 6.0
    %v1394 = vmin.f32 %v1378, 6.0
    %v1395 = vmin.f32 %v1379, 6.0
    %v1396 = vmin.f32 %v1380, 6.0
    %v1397 = vmin.f32 %v1381, 6.0
    %v1398 = vmin.f32 %v1382, 6.0
    %v1399 = vmin.f32 %v1383, 6.0
    %v1400 = vpack.c.bf16 %v1388, %v1384
    %v1401 = vpack.c.bf16 %v1389, %v1385
    %v1402 = vpack.c.bf16 %v1390, %v1386
    %v1403 = vpack.c.bf16 %v1391, %v1387
    %v1404 = vpack.c.bf16 %v1396, %v1392
    %v1405 = vpack.c.bf16 %v1397, %v1393
    %v1406 = vpack.c.bf16 %v1398, %v1394
    %v1407 = vpack.c.bf16 %v1399, %v1395
    %v1408 = vld [vmem:[#allocation10] sm:$0xf]
    %v1409 = vld [vmem:[#allocation10 + $0x4] sm:$0xf]
    %v1410 = vld [vmem:[#allocation10 + $0x8] sm:$0xf]
    %v1411 = vld [vmem:[#allocation10 + $0xc] sm:$0xf]
    %v1412 = vld [vmem:[#allocation10 + $0x10] sm:$0xf]
    %v1413 = vld [vmem:[#allocation10 + $0x14] sm:$0xf]
    %v1414 = vld [vmem:[#allocation10 + $0x18] sm:$0xf]
    %v1415 = vld [vmem:[#allocation10 + $0x1c] sm:$0xf]
    %v1416 = vld [vmem:[#allocation10 + $0x20] sm:$0xf]
    %v1417 = vld [vmem:[#allocation10 + $0x24] sm:$0xf]
    %v1418 = vld [vmem:[#allocation10 + $0x28] sm:$0xf]
    %v1419 = vld [vmem:[#allocation10 + $0x2c] sm:$0xf]
    %v1420 = vld [vmem:[#allocation10 + $0x30] sm:$0xf]
    %v1421 = vld [vmem:[#allocation10 + $0x34] sm:$0xf]
    %v1422 = vld [vmem:[#allocation10 + $0x38] sm:$0xf]
    %v1423 = vld [vmem:[#allocation10 + $0x3c] sm:$0xf]
    %v1424 = vld [vmem:[#allocation10 + $0x40] sm:$0xf]
    %v1425 = vld [vmem:[#allocation10 + $0x44] sm:$0xf]
    %v1426 = vld [vmem:[#allocation10 + $0x48] sm:$0xf]
    %v1427 = vld [vmem:[#allocation10 + $0x4c] sm:$0xf]
    %v1428 = vld [vmem:[#allocation10 + $0x50] sm:$0xf]
    %v1429 = vld [vmem:[#allocation10 + $0x54] sm:$0xf]
    %v1430 = vld [vmem:[#allocation10 + $0x58] sm:$0xf]
    %v1431 = vld [vmem:[#allocation10 + $0x5c] sm:$0xf]
    %v1432 = vld [vmem:[#allocation10 + $0x60] sm:$0xf]
    %v1433 = vld [vmem:[#allocation10 + $0x64] sm:$0xf]
    %v1434 = vld [vmem:[#allocation10 + $0x68] sm:$0xf]
    %v1435 = vld [vmem:[#allocation10 + $0x6c] sm:$0xf]
    %v1436 = vld [vmem:[#allocation10 + $0x70] sm:$0xf]
    %v1437 = vld [vmem:[#allocation10 + $0x74] sm:$0xf]
    %v1438 = vld [vmem:[#allocation10 + $0x78] sm:$0xf]
    %v1439 = vld [vmem:[#allocation10 + $0x7c] sm:$0xf]
    %v1440 = vld [vmem:[#allocation10 + $0x80] sm:$0xf]
    %v1441 = vld [vmem:[#allocation10 + $0x84] sm:$0xf]
    %v1442 = vld [vmem:[#allocation10 + $0x88] sm:$0xf]
    %v1443 = vld [vmem:[#allocation10 + $0x8c] sm:$0xf]
    %v1444 = vld [vmem:[#allocation10 + $0x90] sm:$0xf]
    %v1445 = vld [vmem:[#allocation10 + $0x94] sm:$0xf]
    %v1446 = vld [vmem:[#allocation10 + $0x98] sm:$0xf]
    %v1447 = vld [vmem:[#allocation10 + $0x9c] sm:$0xf]
    %v1448 = vld [vmem:[#allocation10 + $0xa0] sm:$0xf]
    %v1449 = vld [vmem:[#allocation10 + $0xa4] sm:$0xf]
    %v1450 = vld [vmem:[#allocation10 + $0xa8] sm:$0xf]
    %v1451 = vld [vmem:[#allocation10 + $0xac] sm:$0xf]
    %v1452 = vld [vmem:[#allocation10 + $0xb0] sm:$0xf]
    %v1453 = vld [vmem:[#allocation10 + $0xb4] sm:$0xf]
    %v1454 = vld [vmem:[#allocation10 + $0xb8] sm:$0xf]
    %v1455 = vld [vmem:[#allocation10 + $0xbc] sm:$0xf]
    %v1456 = vld [vmem:[#allocation10 + $0xc0] sm:$0xf]
    %v1457 = vld [vmem:[#allocation10 + $0xc4] sm:$0xf]
    %v1458 = vld [vmem:[#allocation10 + $0xc8] sm:$0xf]
    %v1459 = vld [vmem:[#allocation10 + $0xcc] sm:$0xf]
    %v1460 = vld [vmem:[#allocation10 + $0xd0] sm:$0xf]
    %v1461 = vld [vmem:[#allocation10 + $0xd4] sm:$0xf]
    %v1462 = vld [vmem:[#allocation10 + $0xd8] sm:$0xf]
    %v1463 = vld [vmem:[#allocation10 + $0xdc] sm:$0xf]
    %v1464 = vld [vmem:[#allocation10 + $0xe0] sm:$0xf]
    %v1465 = vld [vmem:[#allocation10 + $0xe4] sm:$0xf]
    %v1466 = vld [vmem:[#allocation10 + $0xe8] sm:$0xf]
    %v1467 = vld [vmem:[#allocation10 + $0xec] sm:$0xf]
    %v1468 = vld [vmem:[#allocation10 + $0xf0] sm:$0xf]
    %v1469 = vld [vmem:[#allocation10 + $0xf4] sm:$0xf]
    %v1470 = vld [vmem:[#allocation10 + $0xf8] sm:$0xf]
    %v1471 = vld [vmem:[#allocation10 + $0xfc] sm:$0xf]
    %v1472 = vld [vmem:[%s6] sm:$0x1]
    %v1474 = vlaneseq
    %v1475 = vshrl.u32 %v1474, 7
    %v1476 = vsub.s32 0, %v1475
    %v1477 = vrot.slane %v1472, %v1476
    %v1543 = vunpack.c.l.b16 %v1408
    %v1544 = vunpack.c.l.b16 %v1409
    %v1545 = vunpack.c.l.b16 %v1410
    %v1546 = vunpack.c.l.b16 %v1411
    %v1547 = vunpack.c.l.b16 %v1412
    %v1548 = vunpack.c.l.b16 %v1413
    %v1549 = vunpack.c.l.b16 %v1414
    %v1550 = vunpack.c.l.b16 %v1415
    %v1551 = vunpack.c.l.b16 %v1416
    %v1552 = vunpack.c.l.b16 %v1417
    %v1553 = vunpack.c.l.b16 %v1418
    %v1554 = vunpack.c.l.b16 %v1419
    %v1555 = vunpack.c.l.b16 %v1420
    %v1556 = vunpack.c.l.b16 %v1421
    %v1557 = vunpack.c.l.b16 %v1422
    %v1558 = vunpack.c.l.b16 %v1423
    %v1559 = vunpack.c.l.b16 %v1424
    %v1560 = vunpack.c.l.b16 %v1425
    %v1561 = vunpack.c.l.b16 %v1426
    %v1562 = vunpack.c.l.b16 %v1427
    %v1563 = vunpack.c.l.b16 %v1428
    %v1564 = vunpack.c.l.b16 %v1429
    %v1565 = vunpack.c.l.b16 %v1430
    %v1566 = vunpack.c.l.b16 %v1431
    %v1567 = vunpack.c.l.b16 %v1432
    %v1568 = vunpack.c.l.b16 %v1433
    %v1569 = vunpack.c.l.b16 %v1434
    %v1570 = vunpack.c.l.b16 %v1435
    %v1571 = vunpack.c.l.b16 %v1436
    %v1572 = vunpack.c.l.b16 %v1437
    %v1573 = vunpack.c.l.b16 %v1438
    %v1574 = vunpack.c.l.b16 %v1439
    %v1575 = vunpack.c.l.b16 %v1440
    %v1576 = vunpack.c.l.b16 %v1441
    %v1577 = vunpack.c.l.b16 %v1442
    %v1578 = vunpack.c.l.b16 %v1443
    %v1579 = vunpack.c.l.b16 %v1444
    %v1580 = vunpack.c.l.b16 %v1445
    %v1581 = vunpack.c.l.b16 %v1446
    %v1582 = vunpack.c.l.b16 %v1447
    %v1583 = vunpack.c.l.b16 %v1448
    %v1584 = vunpack.c.l.b16 %v1449
    %v1585 = vunpack.c.l.b16 %v1450
    %v1586 = vunpack.c.l.b16 %v1451
    %v1587 = vunpack.c.l.b16 %v1452
    %v1588 = vunpack.c.l.b16 %v1453
    %v1589 = vunpack.c.l.b16 %v1454
    %v1590 = vunpack.c.l.b16 %v1455
    %v1591 = vunpack.c.l.b16 %v1456
    %v1592 = vunpack.c.l.b16 %v1457
    %v1593 = vunpack.c.l.b16 %v1458
    %v1594 = vunpack.c.l.b16 %v1459
    %v1595 = vunpack.c.l.b16 %v1460
    %v1596 = vunpack.c.l.b16 %v1461
    %v1597 = vunpack.c.l.b16 %v1462
    %v1598 = vunpack.c.l.b16 %v1463
    %v1599 = vunpack.c.l.b16 %v1464
    %v1600 = vunpack.c.l.b16 %v1465
    %v1601 = vunpack.c.l.b16 %v1466
    %v1602 = vunpack.c.l.b16 %v1467
    %v1603 = vunpack.c.l.b16 %v1468
    %v1604 = vunpack.c.l.b16 %v1469
    %v1605 = vunpack.c.l.b16 %v1470
    %v1606 = vunpack.c.l.b16 %v1471
    %v1607 = vpack.c.b16 %v1544, %v1543
    %v1608 = vpack.c.b16 %v1546, %v1545
    %v1609 = vpack.c.b16 %v1548, %v1547
    %v1610 = vpack.c.b16 %v1550, %v1549
    %v1611 = vpack.c.b16 %v1552, %v1551
    %v1612 = vpack.c.b16 %v1554, %v1553
    %v1613 = vpack.c.b16 %v1556, %v1555
    %v1614 = vpack.c.b16 %v1558, %v1557
    %v1615 = vpack.c.b16 %v1560, %v1559
    %v1616 = vpack.c.b16 %v1562, %v1561
    %v1617 = vpack.c.b16 %v1564, %v1563
    %v1618 = vpack.c.b16 %v1566, %v1565
    %v1619 = vpack.c.b16 %v1568, %v1567
    %v1620 = vpack.c.b16 %v1570, %v1569
    %v1621 = vpack.c.b16 %v1572, %v1571
    %v1622 = vpack.c.b16 %v1574, %v1573
    %v1623 = vpack.c.b16 %v1576, %v1575
    %v1624 = vpack.c.b16 %v1578, %v1577
    %v1625 = vpack.c.b16 %v1580, %v1579
    %v1626 = vpack.c.b16 %v1582, %v1581
    %v1627 = vpack.c.b16 %v1584, %v1583
    %v1628 = vpack.c.b16 %v1586, %v1585
    %v1629 = vpack.c.b16 %v1588, %v1587
    %v1630 = vpack.c.b16 %v1590, %v1589
    %v1631 = vpack.c.b16 %v1592, %v1591
    %v1632 = vpack.c.b16 %v1594, %v1593
    %v1633 = vpack.c.b16 %v1596, %v1595
    %v1634 = vpack.c.b16 %v1598, %v1597
    %v1635 = vpack.c.b16 %v1600, %v1599
    %v1636 = vpack.c.b16 %v1602, %v1601
    %v1637 = vpack.c.b16 %v1604, %v1603
    %v1638 = vpack.c.b16 %v1606, %v1605
    %1671 = vmatprep.subr.bf16.mxu0 0
    %1672 = vmatpush1.bf16.msra.mxu0 %v1614
    %1673 = vmatprep.subr.bf16.mxu0 0
    %1674 = vmatpush1.bf16.msra.mxu0 %v1613
    %1675 = vmatprep.subr.bf16.mxu0 0
    %1676 = vmatpush1.bf16.msra.mxu0 %v1612
    %1677 = vmatprep.subr.bf16.mxu0 0
    %1678 = vmatpush1.bf16.msra.mxu0 %v1611
    %1679 = vmatprep.subr.bf16.mxu0 0
    %1680 = vmatpush1.bf16.msra.mxu0 %v1610
    %1681 = vmatprep.subr.bf16.mxu0 0
    %1682 = vmatpush1.bf16.msra.mxu0 %v1609
    %1683 = vmatprep.subr.bf16.mxu0 0
    %1684 = vmatpush1.bf16.msra.mxu0 %v1608
    %1685 = vmatprep.subr.bf16.mxu0 0
    %1686 = vmatpush1.bf16.msra.mxu0 %v1607
    %1687 = vmatprep.subr.bf16.mxu0 0
    %1688 = vmatpush2.bf16.msra.mxu0 %v1622
    %1689 = vmatprep.subr.bf16.mxu0 0
    %1690 = vmatpush2.bf16.msra.mxu0 %v1621
    %1691 = vmatprep.subr.bf16.mxu0 0
    %1692 = vmatpush2.bf16.msra.mxu0 %v1620
    %1693 = vmatprep.subr.bf16.mxu0 0
    %1694 = vmatpush2.bf16.msra.mxu0 %v1619
    %1695 = vmatprep.subr.bf16.mxu0 0
    %1696 = vmatpush2.bf16.msra.mxu0 %v1618
    %1697 = vmatprep.subr.bf16.mxu0 0
    %1698 = vmatpush2.bf16.msra.mxu0 %v1617
    %1699 = vmatprep.subr.bf16.mxu0 0
    %1700 = vmatpush2.bf16.msra.mxu0 %v1616
    %1701 = vmatprep.subr.bf16.mxu0 0
    %1702 = vmatpush2.bf16.msra.mxu0 %v1615
    %1703 = vmatprep.mubr.bf16.mxu0 %v1401
    %1704 = vmatmul.mubr.bf16.gmra.mxu0 %v1400
    %v1705 = vpop.f32.mrf.mxu0
    %v1706 = vadd.f32 %v1477, %v1705
    %v1707 = vpop.f32.mrf.mxu0
    %v1708 = vpop.f32.mrf.mxu0
    %v1709 = vadd.f32 %v1477, %v1708
    %v1710 = vpop.f32.mrf.mxu0
    %1711 = vmatprep.mubr.bf16.mxu0 %v1405
    %1712 = vmatmul.mubr.bf16.gmra.mxu0 %v1404
    %v1713 = vpop.f32.mrf.mxu0
    %v1714 = vadd.f32 %v1477, %v1713
    %v1715 = vpop.f32.mrf.mxu0
    %v1716 = vpop.f32.mrf.mxu0
    %v1717 = vadd.f32 %v1477, %v1716
    %v1718 = vpop.f32.mrf.mxu0
    %1719 = vdwg.mxu0
    %1720 = vmatprep.subr.bf16.mxu0 0
    %1721 = vmatpush1.bf16.msra.mxu0 %v1630
    %1722 = vmatprep.subr.bf16.mxu0 0
    %1723 = vmatpush1.bf16.msra.mxu0 %v1629
    %1724 = vmatprep.subr.bf16.mxu0 0
    %1725 = vmatpush1.bf16.msra.mxu0 %v1628
    %1726 = vmatprep.subr.bf16.mxu0 0
    %1727 = vmatpush1.bf16.msra.mxu0 %v1627
    %1728 = vmatprep.subr.bf16.mxu0 0
    %1729 = vmatpush1.bf16.msra.mxu0 %v1626
    %1730 = vmatprep.subr.bf16.mxu0 0
    %1731 = vmatpush1.bf16.msra.mxu0 %v1625
    %1732 = vmatprep.subr.bf16.mxu0 0
    %1733 = vmatpush1.bf16.msra.mxu0 %v1624
    %1734 = vmatprep.subr.bf16.mxu0 0
    %1735 = vmatpush1.bf16.msra.mxu0 %v1623
    %1736 = vmatprep.subr.bf16.mxu0 0
    %1737 = vmatpush2.bf16.msra.mxu0 %v1638
    %1738 = vmatprep.subr.bf16.mxu0 0
    %1739 = vmatpush2.bf16.msra.mxu0 %v1637
    %1740 = vmatprep.subr.bf16.mxu0 0
    %1741 = vmatpush2.bf16.msra.mxu0 %v1636
    %1742 = vmatprep.subr.bf16.mxu0 0
    %1743 = vmatpush2.bf16.msra.mxu0 %v1635
    %1744 = vmatprep.subr.bf16.mxu0 0
    %1745 = vmatpush2.bf16.msra.mxu0 %v1634
    %1746 = vmatprep.subr.bf16.mxu0 0
    %1747 = vmatpush2.bf16.msra.mxu0 %v1633
    %1748 = vmatprep.subr.bf16.mxu0 0
    %1749 = vmatpush2.bf16.msra.mxu0 %v1632
    %1750 = vmatprep.subr.bf16.mxu0 0
    %1751 = vmatpush2.bf16.msra.mxu0 %v1631
    %1752 = vmatprep.mubr.bf16.mxu0 %v1403
    %1753 = vmatmul.mubr.bf16.gmra.mxu0 %v1402
    %v1754 = vpop.f32.mrf.mxu0
    %v1755 = vadd.f32 %v1706, %v1754
    %v1756 = vpop.f32.mrf.mxu0
    %v1757 = vpop.f32.mrf.mxu0
    %v1758 = vadd.f32 %v1709, %v1757
    %v1759 = vpop.f32.mrf.mxu0
    %1760 = vmatprep.mubr.bf16.mxu0 %v1407
    %1761 = vmatmul.mubr.bf16.gmra.mxu0 %v1406
    %v1762 = vpop.f32.mrf.mxu0
    %v1763 = vadd.f32 %v1714, %v1762
    %v1764 = vpop.f32.mrf.mxu0
    %v1765 = vpop.f32.mrf.mxu0
    %v1766 = vadd.f32 %v1717, %v1765
    %v1767 = vpop.f32.mrf.mxu0
    %1768 = vdwg.mxu0
    %v1769 = vunpack.c.l.bf16 %v94
    %v1770 = vunpack.c.l.bf16 %v95
    %v1771 = vunpack.c.l.bf16 %v96
    %v1772 = vunpack.c.l.bf16 %v97
    %v1773 = vadd.f32 %v1755, %v1769
    %v1774 = vadd.f32 %v1758, %v1770
    %v1775 = vadd.f32 %v1763, %v1771
    %v1776 = vadd.f32 %v1766, %v1772
    %1777 = vst [vmem:[#allocation11] sm:$0xff] %v1773
    %1778 = vst [vmem:[#allocation11 + $0x8] sm:$0xff] %v1774
    %1779 = vst [vmem:[#allocation11 + $0x10] sm:$0xff] %v1775
    %1780 = vst [vmem:[#allocation11 + $0x18] sm:$0xff] %v1776
    // Predicated region
    $region50: #{tpu_custom_call.1} parent=1 // pred_check
      _
    $region51: #{tpu_custom_call.1} parent=1 // pred_check_branch
      %1782 = sbr.rel (0) target = $region53
    $region52: #{tpu_custom_call.1} parent=1 // pred_region
      %s1784 = ssub.s32 512, 512
      %1785 = vsyncadd [#allocation4], %s1784
      %s1786 = sshll.u32 [#allocation11], 4
      %s1787 = int_to_ptr.vmem [resolvable:$true] %s1786
      %1792 = dma.vmem_to_hbm [thread:$0]  %s1787, 512, %s7, [#allocation4], 128, 128, 8
    $region53: #{tpu_custom_call.1} parent=1 // pred_fallthru
      _
    // Predicated region
    $region54: #{tpu_custom_call.1} parent=1 // pred_check
      _
    $region55: #{tpu_custom_call.1} parent=1 // pred_check_branch
      %1794 = sbr.rel (0) target = $region57
    $region56: #{tpu_custom_call.1} parent=1 // pred_region
      %1795 = dma.done [#allocation4], 512
    $region57: #{tpu_custom_call.1} parent=1 // pred_fallthru
      _
    %1796 = vsyncpa [#allocation3], 1
    %1797 = vsyncpa [#allocation6], 1
    %1798 = vsyncpa [#allocation9], 1
    %1799 = vsyncpa [#allocation4], 1

</llo_original>
